<compile_context>
chip_gen: v7x
topology: tpu7x:2x2x1
jax: 0.10.0
libtpu: 0.0.40
codegen_flags: <defaults>
</compile_context>

<pallas_src>
import functools

import jax
import jax.numpy as jnp
from jax.experimental import pallas as pl
from jax.experimental.pallas import tpu as pltpu


def _layernorm_f32(h, gamma, beta, eps=1e-5):
    # h: (T, D) float32 — statistics stay in f32.
    mu = jnp.mean(h, axis=-1, keepdims=True)
    var = jnp.mean(jnp.square(h - mu), axis=-1, keepdims=True)
    return (h - mu) * jax.lax.rsqrt(var + eps) * gamma + beta


def residual_attention_block_kernel(
    x_ref,                 # (B_t, L, D)  f32 activations
    g1_ref, b1_ref,        # (1, D)       f32 LayerNorm 1
    wqkv_ref, bqkv_ref,    # (D, 3D) bf16 / (1, 3D) f32   in_proj (pre-transposed, Q pre-scaled)
    wo_ref, bo_ref,        # (H, hd, D) bf16 / (1, D) f32 out_proj split per head
    g2_ref, b2_ref,        # (1, D)       f32 LayerNorm 2
    wfc_ref, bfc_ref,      # (D, 4D) bf16 / (1, 4D) f32   mlp.c_fc (pre-transposed)
    wpr_ref, bpr_ref,      # (4D, D) bf16 / (1, D) f32    mlp.c_proj (pre-transposed)
    o_ref,                 # (B_t, L, D)
    *, n_head,
):
    bt, L, D = x_ref.shape
    hd = D // n_head
    T = bt * L

    # Flatten batch tile + sequence into one token axis (rows ordered (b, l)).
    x = x_ref[...].reshape(T, D)                                     # f32

    # ---------------- attention branch ----------------
    h = _layernorm_f32(x, g1_ref[...], b1_ref[...])
    qkv = jnp.dot(h.astype(jnp.bfloat16), wqkv_ref[...],
                  preferred_element_type=jnp.float32) + bqkv_ref[...]  # (T, 3D) f32
    q = qkv[:, 0 * D:1 * D].astype(jnp.bfloat16)   # 1/sqrt(hd) already folded into W_q
    k = qkv[:, 1 * D:2 * D].astype(jnp.bfloat16)
    v = qkv[:, 2 * D:3 * D].astype(jnp.bfloat16)

    def to_heads(t):
        # (T, D) -> (n_head * bt, L, hd); batch index = head * bt + batch_elem.
        parts = [t[:, hh * hd:(hh + 1) * hd].reshape(bt, L, hd) for hh in range(n_head)]
        return jnp.stack(parts, axis=0).reshape(n_head * bt, L, hd)

    qs, ks, vs = to_heads(q), to_heads(k), to_heads(v)

    # Batched attention over all (head, batch) pairs at once; softmax in f32.
    s = jnp.einsum("bqe,bke->bqk", qs, ks, preferred_element_type=jnp.float32)
    s = s - jnp.max(s, axis=-1, keepdims=True)
    p = jnp.exp(s)
    inv = pl.reciprocal(jnp.sum(p, axis=-1, keepdims=True), approx=True)
    p = (p * inv).astype(jnp.bfloat16)
    av = jnp.einsum("bqk,bke->bqe", p, vs, preferred_element_type=jnp.float32)

    # Out-projection without lane-axis concatenate:
    #   concat_h(a_h) @ Wo  ==  sum_h  a_h @ Wo[h*hd:(h+1)*hd, :]
    av = av.reshape(n_head, T, hd).astype(jnp.bfloat16)
    attn = jnp.dot(av[0], wo_ref[0], preferred_element_type=jnp.float32)
    for hh in range(1, n_head):
        attn = attn + jnp.dot(av[hh], wo_ref[hh], preferred_element_type=jnp.float32)
    attn = attn + bo_ref[...]

    x1 = x + attn                                                     # residual, f32

    # ---------------- MLP branch ----------------
    h2 = _layernorm_f32(x1, g2_ref[...], b2_ref[...])
    f = jnp.dot(h2.astype(jnp.bfloat16), wfc_ref[...],
                preferred_element_type=jnp.float32) + bfc_ref[...]
    f = f * jax.nn.sigmoid(1.702 * f)                                 # QuickGELU, f32
    m = jnp.dot(f.astype(jnp.bfloat16), wpr_ref[...],
                preferred_element_type=jnp.float32) + bpr_ref[...]

    o_ref[...] = (x1 + m).reshape(bt, L, D).astype(o_ref.dtype)


def residual_attention_block(x_lnd, params, n_head, batch_tile=None):
    """x_lnd: (L, N, D) float32 -> (L, N, D) float32."""
    L, N, D = x_lnd.shape
    assert D % n_head == 0
    hd = D // n_head

    # Choose how many batch elements to process per grid step: make the token-slab
    # M dimension MXU-sized (<=512 rows) while keeping >=2 grid steps when possible
    # so both v7x TensorCores get work.
    if batch_tile is None:
        candidates = [c for c in range(1, N + 1) if N % c == 0 and c * L <= 512] or [1]
        pref = [c for c in candidates if N // c >= 2] or candidates
        batch_tile = max(pref)
    assert N % batch_tile == 0

    # ---- parameter prep (pure JAX, tiny vs. the block itself) ----
    scale = 1.0 / (hd ** 0.5)
    col_scale = jnp.concatenate(
        [jnp.full((1, D), scale, jnp.float32), jnp.ones((1, 2 * D), jnp.float32)], axis=1)
    w_qkv = (params["w_qkv"] * col_scale).astype(jnp.bfloat16)   # fold q-scaling into W
    b_qkv = params["b_qkv"] * col_scale
    w_out3 = params["w_out"].reshape(n_head, hd, D).astype(jnp.bfloat16)
    w_fc = params["w_fc"].astype(jnp.bfloat16)
    w_proj = params["w_proj"].astype(jnp.bfloat16)

    # Batch-major layout for the grid (PyTorch MultiheadAttention default is seq-first).
    x_nld = jnp.transpose(x_lnd, (1, 0, 2))                      # (N, L, D)

    def _rep(shape):  # full-array block, identical for every grid step
        n = len(shape)
        return pl.BlockSpec(shape, lambda b, n=n: (0,) * n)

    kern = functools.partial(residual_attention_block_kernel, n_head=n_head)
    out_nld = pl.pallas_call(
        kern,
        out_shape=jax.ShapeDtypeStruct((N, L, D), x_lnd.dtype),
        grid_spec=pltpu.PrefetchScalarGridSpec(
            num_scalar_prefetch=0,
            grid=(N // batch_tile,),
            in_specs=[
                pl.BlockSpec((batch_tile, L, D), lambda b: (b, 0, 0)),   # x
                _rep((1, D)), _rep((1, D)),                              # ln_1 gamma/beta
                _rep((D, 3 * D)), _rep((1, 3 * D)),                      # in_proj W^T, b
                _rep((n_head, hd, D)), _rep((1, D)),                     # out_proj (per-head), b
                _rep((1, D)), _rep((1, D)),                              # ln_2 gamma/beta
                _rep((D, 4 * D)), _rep((1, 4 * D)),                      # c_fc W^T, b
                _rep((4 * D, D)), _rep((1, D)),                          # c_proj W^T, b
            ],
            out_specs=pl.BlockSpec((batch_tile, L, D), lambda b: (b, 0, 0)),
        ),
        compiler_params=pltpu.CompilerParams(
            dimension_semantics=("parallel",),
            vmem_limit_bytes=48 * 1024 * 1024,
        ),
    )(
        x_nld,
        params["ln1_g"], params["ln1_b"],
        w_qkv, b_qkv,
        w_out3, params["b_out"],
        params["ln2_g"], params["ln2_b"],
        w_fc, params["b_fc"],
        w_proj, params["b_proj"],
    )
    return jnp.transpose(out_nld, (1, 0, 2))


# ------------------------- pure-JAX f32 reference ---------------------------
def reference_block(x_lnd, params, n_head):
    L, N, D = x_lnd.shape
    hd = D // n_head

    def ln(h, g, b):
        mu = jnp.mean(h, axis=-1, keepdims=True)
        var = jnp.mean((h - mu) ** 2, axis=-1, keepdims=True)
        return (h - mu) * jax.lax.rsqrt(var + 1e-5) * g + b

    x = jnp.transpose(x_lnd, (1, 0, 2))                      # (N, L, D)
    h = ln(x, params["ln1_g"], params["ln1_b"])
    qkv = h @ params["w_qkv"] + params["b_qkv"]              # (N, L, 3D)
    q, k, v = jnp.split(qkv, 3, axis=-1)
    q = q.reshape(N, L, n_head, hd).transpose(0, 2, 1, 3)
    k = k.reshape(N, L, n_head, hd).transpose(0, 2, 1, 3)
    v = v.reshape(N, L, n_head, hd).transpose(0, 2, 1, 3)
    s = jnp.einsum("nhqd,nhkd->nhqk", q, k) / (hd ** 0.5)
    p = jax.nn.softmax(s, axis=-1)
    a = jnp.einsum("nhqk,nhkd->nhqd", p, v).transpose(0, 2, 1, 3).reshape(N, L, D)
    a = a @ params["w_out"] + params["b_out"]
    x1 = x + a
    h2 = ln(x1, params["ln2_g"], params["ln2_b"])
    f = h2 @ params["w_fc"] + params["b_fc"]
    f = f * jax.nn.sigmoid(1.702 * f)
    m = f @ params["w_proj"] + params["b_proj"]
    return jnp.transpose(x1 + m, (1, 0, 2))


if __name__ == "__main__":
    # Small but lane-aligned shapes (D multiple of 128 avoids pathological masked paths).
    L, N, D, n_head = 16, 4, 128, 4

    key = jax.random.PRNGKey(0)
    ks = jax.random.split(key, 10)
    scale = 0.02
    params = {
        "ln1_g": jnp.ones((1, D), jnp.float32),
        "ln1_b": jnp.zeros((1, D), jnp.float32),
        # weights stored pre-transposed (y = x @ W^T + b in PyTorch -> x @ w here)
        "w_qkv": scale * jax.random.normal(ks[0], (D, 3 * D), jnp.float32),
        "b_qkv": scale * jax.random.normal(ks[1], (1, 3 * D), jnp.float32),
        "w_out": scale * jax.random.normal(ks[2], (D, D), jnp.float32),
        "b_out": scale * jax.random.normal(ks[3], (1, D), jnp.float32),
        "ln2_g": jnp.ones((1, D), jnp.float32),
        "ln2_b": jnp.zeros((1, D), jnp.float32),
        "w_fc": scale * jax.random.normal(ks[4], (D, 4 * D), jnp.float32),
        "b_fc": scale * jax.random.normal(ks[5], (1, 4 * D), jnp.float32),
        "w_proj": scale * jax.random.normal(ks[6], (4 * D, D), jnp.float32),
        "b_proj": scale * jax.random.normal(ks[7], (1, D), jnp.float32),
    }

    x = jax.random.normal(ks[8], (L, N, D), jnp.float32)

    out = jax.block_until_ready(residual_attention_block(x, params, n_head))
    ref = reference_block(x, params, n_head)

    assert out.shape == (L, N, D)
    max_err = float(jnp.max(jnp.abs(out - ref)))
    # bf16 matmul operands (f32 accumulation) -> compare against the f32 reference with
    # a bf16-appropriate tolerance.
    assert jnp.allclose(out, ref, atol=2e-2, rtol=2e-2), f"mismatch vs reference: {max_err}"

    print("KERNEL_OK")
</pallas_src>

<mosaic_0001>
module attributes {stable_mosaic.version = 11 : i64} {
  func.func @residual_attention_block_kernel(%arg0: i32, %arg1: memref<2x16x128xf32, #tpu.memory_space<vmem>>, %arg2: memref<1x128xf32, #tpu.memory_space<vmem>>, %arg3: memref<1x128xf32, #tpu.memory_space<vmem>>, %arg4: memref<128x384xbf16, #tpu.memory_space<vmem>>, %arg5: memref<1x384xf32, #tpu.memory_space<vmem>>, %arg6: memref<4x32x128xbf16, #tpu.memory_space<vmem>>, %arg7: memref<1x128xf32, #tpu.memory_space<vmem>>, %arg8: memref<1x128xf32, #tpu.memory_space<vmem>>, %arg9: memref<1x128xf32, #tpu.memory_space<vmem>>, %arg10: memref<128x512xbf16, #tpu.memory_space<vmem>>, %arg11: memref<1x512xf32, #tpu.memory_space<vmem>>, %arg12: memref<512x128xbf16, #tpu.memory_space<vmem>>, %arg13: memref<1x128xf32, #tpu.memory_space<vmem>>, %arg14: memref<2x16x128xf32, #tpu.memory_space<vmem>>) attributes {dimension_semantics = [#tpu.dimension_semantics<parallel>], iteration_bounds = array<i64: 2>, scalar_prefetch = 0 : i64, scratch_operands = 0 : i64, tpu.core_type = #tpu.core_type<tc>, window_params = [{transform_indices = @transform_0, window_bounds = array<i64: 2, 16, 128>}, {pipeline_mode = #tpu.pipeline_mode<synchronous>, transform_indices = @transform_1, window_bounds = array<i64: 1, 128>}, {pipeline_mode = #tpu.pipeline_mode<synchronous>, transform_indices = @transform_2, window_bounds = array<i64: 1, 128>}, {pipeline_mode = #tpu.pipeline_mode<synchronous>, transform_indices = @transform_3, window_bounds = array<i64: 128, 384>}, {pipeline_mode = #tpu.pipeline_mode<synchronous>, transform_indices = @transform_4, window_bounds = array<i64: 1, 384>}, {pipeline_mode = #tpu.pipeline_mode<synchronous>, transform_indices = @transform_5, window_bounds = array<i64: 4, 32, 128>}, {pipeline_mode = #tpu.pipeline_mode<synchronous>, transform_indices = @transform_6, window_bounds = array<i64: 1, 128>}, {pipeline_mode = #tpu.pipeline_mode<synchronous>, transform_indices = @transform_7, window_bounds = array<i64: 1, 128>}, {pipeline_mode = #tpu.pipeline_mode<synchronous>, transform_indices = @transform_8, window_bounds = array<i64: 1, 128>}, {pipeline_mode = #tpu.pipeline_mode<synchronous>, transform_indices = @transform_9, window_bounds = array<i64: 128, 512>}, {pipeline_mode = #tpu.pipeline_mode<synchronous>, transform_indices = @transform_10, window_bounds = array<i64: 1, 512>}, {pipeline_mode = #tpu.pipeline_mode<synchronous>, transform_indices = @transform_11, window_bounds = array<i64: 512, 128>}, {pipeline_mode = #tpu.pipeline_mode<synchronous>, transform_indices = @transform_12, window_bounds = array<i64: 1, 128>}, {transform_indices = @transform_13, window_bounds = array<i64: 2, 16, 128>}]} {
    %c0 = arith.constant 0 : index
    %c0_0 = arith.constant 0 : index
    %c0_1 = arith.constant 0 : index
    %0 = vector.load %arg1[%c0, %c0_0, %c0_1] : memref<2x16x128xf32, #tpu.memory_space<vmem>>, vector<2x16x128xf32>
    %1 = vector.shape_cast %0 : vector<2x16x128xf32> to vector<32x128xf32>
    %c0_2 = arith.constant 0 : index
    %c0_3 = arith.constant 0 : index
    %2 = vector.load %arg2[%c0_2, %c0_3] : memref<1x128xf32, #tpu.memory_space<vmem>>, vector<1x128xf32>
    %c0_4 = arith.constant 0 : index
    %c0_5 = arith.constant 0 : index
    %3 = vector.load %arg3[%c0_4, %c0_5] : memref<1x128xf32, #tpu.memory_space<vmem>>, vector<1x128xf32>
    %cst = arith.constant dense<0.000000e+00> : vector<32xf32>
    %4 = vector.multi_reduction <add>, %1, %cst [1] : vector<32x128xf32> to vector<32xf32>
    %5 = vector.shape_cast %4 : vector<32xf32> to vector<32x1xf32>
    %cst_6 = arith.constant 1.280000e+02 : f32
    %6 = vector.broadcast %cst_6 : f32 to vector<32x1xf32>
    %7 = arith.divf %5, %6 : vector<32x1xf32>
    %8 = vector.broadcast %7 : vector<32x1xf32> to vector<32x128xf32>
    %9 = arith.subf %1, %8 : vector<32x128xf32>
    %10 = arith.mulf %9, %9 : vector<32x128xf32>
    %cst_7 = arith.constant dense<0.000000e+00> : vector<32xf32>
    %11 = vector.multi_reduction <add>, %10, %cst_7 [1] : vector<32x128xf32> to vector<32xf32>
    %12 = vector.shape_cast %11 : vector<32xf32> to vector<32x1xf32>
    %cst_8 = arith.constant 1.280000e+02 : f32
    %13 = vector.broadcast %cst_8 : f32 to vector<32x1xf32>
    %14 = arith.divf %12, %13 : vector<32x1xf32>
    %15 = vector.broadcast %7 : vector<32x1xf32> to vector<32x128xf32>
    %16 = arith.subf %1, %15 : vector<32x128xf32>
    %cst_9 = arith.constant 9.99999974E-6 : f32
    %17 = vector.broadcast %cst_9 : f32 to vector<32x1xf32>
    %18 = arith.addf %14, %17 : vector<32x1xf32>
    %19 = math.rsqrt %18 : vector<32x1xf32>
    %20 = vector.broadcast %19 : vector<32x1xf32> to vector<32x128xf32>
    %21 = arith.mulf %16, %20 : vector<32x128xf32>
    %22 = vector.broadcast %2 : vector<1x128xf32> to vector<32x128xf32>
    %23 = arith.mulf %21, %22 : vector<32x128xf32>
    %24 = vector.broadcast %3 : vector<1x128xf32> to vector<32x128xf32>
    %25 = arith.addf %23, %24 : vector<32x128xf32>
    %26 = arith.truncf %25 : vector<32x128xf32> to vector<32x128xbf16>
    %c0_10 = arith.constant 0 : index
    %c0_11 = arith.constant 0 : index
    %27 = vector.load %arg4[%c0_10, %c0_11] : memref<128x384xbf16, #tpu.memory_space<vmem>>, vector<128x384xbf16>
    %cst_12 = arith.constant dense<0.000000e+00> : vector<32x384xf32>
    %28 = tpu.matmul %26, %27, %cst_12 {dimension_numbers = #tpu.dot_dimension_numbers<[1], [0], [0], [1], [0, 0, 1, 1], [], []>} : vector<32x128xbf16>, vector<128x384xbf16>, vector<32x384xf32> -> vector<32x384xf32>
    %c0_13 = arith.constant 0 : index
    %c0_14 = arith.constant 0 : index
    %29 = vector.load %arg5[%c0_13, %c0_14] : memref<1x384xf32, #tpu.memory_space<vmem>>, vector<1x384xf32>
    %30 = vector.broadcast %29 : vector<1x384xf32> to vector<32x384xf32>
    %31 = arith.addf %28, %30 : vector<32x384xf32>
    %32 = vector.extract_strided_slice %31 {offsets = [0, 0], sizes = [32, 128], strides = [1, 1]} : vector<32x384xf32> to vector<32x128xf32>
    %33 = arith.truncf %32 : vector<32x128xf32> to vector<32x128xbf16>
    %34 = vector.extract_strided_slice %31 {offsets = [0, 128], sizes = [32, 128], strides = [1, 1]} : vector<32x384xf32> to vector<32x128xf32>
    %35 = arith.truncf %34 : vector<32x128xf32> to vector<32x128xbf16>
    %36 = vector.extract_strided_slice %31 {offsets = [0, 256], sizes = [32, 128], strides = [1, 1]} : vector<32x384xf32> to vector<32x128xf32>
    %37 = arith.truncf %36 : vector<32x128xf32> to vector<32x128xbf16>
    %38 = vector.extract_strided_slice %33 {offsets = [0, 0], sizes = [32, 32], strides = [1, 1]} : vector<32x128xbf16> to vector<32x32xbf16>
    %39 = vector.shape_cast %38 : vector<32x32xbf16> to vector<2x16x32xbf16>
    %40 = vector.extract_strided_slice %33 {offsets = [0, 32], sizes = [32, 32], strides = [1, 1]} : vector<32x128xbf16> to vector<32x32xbf16>
    %41 = vector.shape_cast %40 : vector<32x32xbf16> to vector<2x16x32xbf16>
    %42 = vector.extract_strided_slice %33 {offsets = [0, 64], sizes = [32, 32], strides = [1, 1]} : vector<32x128xbf16> to vector<32x32xbf16>
    %43 = vector.shape_cast %42 : vector<32x32xbf16> to vector<2x16x32xbf16>
    %44 = vector.extract_strided_slice %33 {offsets = [0, 96], sizes = [32, 32], strides = [1, 1]} : vector<32x128xbf16> to vector<32x32xbf16>
    %45 = vector.shape_cast %44 : vector<32x32xbf16> to vector<2x16x32xbf16>
    %46 = vector.shape_cast %39 : vector<2x16x32xbf16> to vector<1x2x16x32xbf16>
    %47 = vector.shape_cast %41 : vector<2x16x32xbf16> to vector<1x2x16x32xbf16>
    %48 = vector.shape_cast %43 : vector<2x16x32xbf16> to vector<1x2x16x32xbf16>
    %49 = vector.shape_cast %45 : vector<2x16x32xbf16> to vector<1x2x16x32xbf16>
    %50 = tpu.concatenate %46, %47, %48, %49 in 0 : vector<1x2x16x32xbf16>, vector<1x2x16x32xbf16>, vector<1x2x16x32xbf16>, vector<1x2x16x32xbf16> -> vector<4x2x16x32xbf16>
    %51 = vector.shape_cast %50 : vector<4x2x16x32xbf16> to vector<8x16x32xbf16>
    %52 = vector.extract_strided_slice %35 {offsets = [0, 0], sizes = [32, 32], strides = [1, 1]} : vector<32x128xbf16> to vector<32x32xbf16>
    %53 = vector.shape_cast %52 : vector<32x32xbf16> to vector<2x16x32xbf16>
    %54 = vector.extract_strided_slice %35 {offsets = [0, 32], sizes = [32, 32], strides = [1, 1]} : vector<32x128xbf16> to vector<32x32xbf16>
    %55 = vector.shape_cast %54 : vector<32x32xbf16> to vector<2x16x32xbf16>
    %56 = vector.extract_strided_slice %35 {offsets = [0, 64], sizes = [32, 32], strides = [1, 1]} : vector<32x128xbf16> to vector<32x32xbf16>
    %57 = vector.shape_cast %56 : vector<32x32xbf16> to vector<2x16x32xbf16>
    %58 = vector.extract_strided_slice %35 {offsets = [0, 96], sizes = [32, 32], strides = [1, 1]} : vector<32x128xbf16> to vector<32x32xbf16>
    %59 = vector.shape_cast %58 : vector<32x32xbf16> to vector<2x16x32xbf16>
    %60 = vector.shape_cast %53 : vector<2x16x32xbf16> to vector<1x2x16x32xbf16>
    %61 = vector.shape_cast %55 : vector<2x16x32xbf16> to vector<1x2x16x32xbf16>
    %62 = vector.shape_cast %57 : vector<2x16x32xbf16> to vector<1x2x16x32xbf16>
    %63 = vector.shape_cast %59 : vector<2x16x32xbf16> to vector<1x2x16x32xbf16>
    %64 = tpu.concatenate %60, %61, %62, %63 in 0 : vector<1x2x16x32xbf16>, vector<1x2x16x32xbf16>, vector<1x2x16x32xbf16>, vector<1x2x16x32xbf16> -> vector<4x2x16x32xbf16>
    %65 = vector.shape_cast %64 : vector<4x2x16x32xbf16> to vector<8x16x32xbf16>
    %66 = vector.extract_strided_slice %37 {offsets = [0, 0], sizes = [32, 32], strides = [1, 1]} : vector<32x128xbf16> to vector<32x32xbf16>
    %67 = vector.shape_cast %66 : vector<32x32xbf16> to vector<2x16x32xbf16>
    %68 = vector.extract_strided_slice %37 {offsets = [0, 32], sizes = [32, 32], strides = [1, 1]} : vector<32x128xbf16> to vector<32x32xbf16>
    %69 = vector.shape_cast %68 : vector<32x32xbf16> to vector<2x16x32xbf16>
    %70 = vector.extract_strided_slice %37 {offsets = [0, 64], sizes = [32, 32], strides = [1, 1]} : vector<32x128xbf16> to vector<32x32xbf16>
    %71 = vector.shape_cast %70 : vector<32x32xbf16> to vector<2x16x32xbf16>
    %72 = vector.extract_strided_slice %37 {offsets = [0, 96], sizes = [32, 32], strides = [1, 1]} : vector<32x128xbf16> to vector<32x32xbf16>
    %73 = vector.shape_cast %72 : vector<32x32xbf16> to vector<2x16x32xbf16>
    %74 = vector.shape_cast %67 : vector<2x16x32xbf16> to vector<1x2x16x32xbf16>
    %75 = vector.shape_cast %69 : vector<2x16x32xbf16> to vector<1x2x16x32xbf16>
    %76 = vector.shape_cast %71 : vector<2x16x32xbf16> to vector<1x2x16x32xbf16>
    %77 = vector.shape_cast %73 : vector<2x16x32xbf16> to vector<1x2x16x32xbf16>
    %78 = tpu.concatenate %74, %75, %76, %77 in 0 : vector<1x2x16x32xbf16>, vector<1x2x16x32xbf16>, vector<1x2x16x32xbf16>, vector<1x2x16x32xbf16> -> vector<4x2x16x32xbf16>
    %79 = vector.shape_cast %78 : vector<4x2x16x32xbf16> to vector<8x16x32xbf16>
    "tpu.trace_start"() <{level = 10 : i32, message = "bqe,bke->bqk"}> : () -> ()
    %cst_15 = arith.constant dense<0.000000e+00> : vector<8x16x16xf32>
    %80 = tpu.matmul %51, %65, %cst_15 {dimension_numbers = #tpu.dot_dimension_numbers<[2], [2], [1], [1], [0, 0, 0, 1, 1, 1], [0], [0]>} : vector<8x16x32xbf16>, vector<8x16x32xbf16>, vector<8x16x16xf32> -> vector<8x16x16xf32>
    "tpu.trace_stop"() : () -> ()
    %cst_16 = arith.constant dense<0xFF800000> : vector<8x16xf32>
    %81 = vector.multi_reduction <maximumf>, %80, %cst_16 [2] : vector<8x16x16xf32> to vector<8x16xf32>
    %82 = vector.shape_cast %81 : vector<8x16xf32> to vector<8x16x1xf32>
    %83 = vector.broadcast %82 : vector<8x16x1xf32> to vector<8x16x16xf32>
    %84 = arith.subf %80, %83 : vector<8x16x16xf32>
    %85 = math.exp %84 : vector<8x16x16xf32>
    %cst_17 = arith.constant dense<0.000000e+00> : vector<8x16xf32>
    %86 = vector.multi_reduction <add>, %85, %cst_17 [2] : vector<8x16x16xf32> to vector<8x16xf32>
    %87 = vector.shape_cast %86 : vector<8x16xf32> to vector<8x16x1xf32>
    %88 = tpu.reciprocal %87 {approx = true} : vector<8x16x1xf32> -> vector<8x16x1xf32>
    %89 = vector.broadcast %88 : vector<8x16x1xf32> to vector<8x16x16xf32>
    %90 = arith.mulf %85, %89 : vector<8x16x16xf32>
    %91 = arith.truncf %90 : vector<8x16x16xf32> to vector<8x16x16xbf16>
    "tpu.trace_start"() <{level = 10 : i32, message = "bqk,bke->bqe"}> : () -> ()
    %cst_18 = arith.constant dense<0.000000e+00> : vector<8x16x32xf32>
    %92 = tpu.matmul %91, %79, %cst_18 {dimension_numbers = #tpu.dot_dimension_numbers<[2], [1], [1], [2], [0, 0, 0, 1, 1, 2], [0], [0]>} : vector<8x16x16xbf16>, vector<8x16x32xbf16>, vector<8x16x32xf32> -> vector<8x16x32xf32>
    "tpu.trace_stop"() : () -> ()
    %93 = vector.shape_cast %92 : vector<8x16x32xf32> to vector<4x32x32xf32>
    %94 = arith.truncf %93 : vector<4x32x32xf32> to vector<4x32x32xbf16>
    %95 = vector.extract_strided_slice %94 {offsets = [0, 0, 0], sizes = [1, 32, 32], strides = [1, 1, 1]} : vector<4x32x32xbf16> to vector<1x32x32xbf16>
    %96 = vector.shape_cast %95 : vector<1x32x32xbf16> to vector<32x32xbf16>
    %c0_19 = arith.constant 0 : index
    %c0_20 = arith.constant 0 : index
    %c0_21 = arith.constant 0 : index
    %97 = vector.load %arg6[%c0_19, %c0_20, %c0_21] : memref<4x32x128xbf16, #tpu.memory_space<vmem>>, vector<1x32x128xbf16>
    %98 = vector.shape_cast %97 : vector<1x32x128xbf16> to vector<32x128xbf16>
    %cst_22 = arith.constant dense<0.000000e+00> : vector<32x128xf32>
    %99 = tpu.matmul %96, %98, %cst_22 {dimension_numbers = #tpu.dot_dimension_numbers<[1], [0], [0], [1], [0, 0, 1, 1], [], []>} : vector<32x32xbf16>, vector<32x128xbf16>, vector<32x128xf32> -> vector<32x128xf32>
    %100 = vector.extract_strided_slice %94 {offsets = [1, 0, 0], sizes = [1, 32, 32], strides = [1, 1, 1]} : vector<4x32x32xbf16> to vector<1x32x32xbf16>
    %101 = vector.shape_cast %100 : vector<1x32x32xbf16> to vector<32x32xbf16>
    %c1 = arith.constant 1 : index
    %c0_23 = arith.constant 0 : index
    %c0_24 = arith.constant 0 : index
    %102 = vector.load %arg6[%c1, %c0_23, %c0_24] : memref<4x32x128xbf16, #tpu.memory_space<vmem>>, vector<1x32x128xbf16>
    %103 = vector.shape_cast %102 : vector<1x32x128xbf16> to vector<32x128xbf16>
    %cst_25 = arith.constant dense<0.000000e+00> : vector<32x128xf32>
    %104 = tpu.matmul %101, %103, %cst_25 {dimension_numbers = #tpu.dot_dimension_numbers<[1], [0], [0], [1], [0, 0, 1, 1], [], []>} : vector<32x32xbf16>, vector<32x128xbf16>, vector<32x128xf32> -> vector<32x128xf32>
    %105 = arith.addf %99, %104 : vector<32x128xf32>
    %106 = vector.extract_strided_slice %94 {offsets = [2, 0, 0], sizes = [1, 32, 32], strides = [1, 1, 1]} : vector<4x32x32xbf16> to vector<1x32x32xbf16>
    %107 = vector.shape_cast %106 : vector<1x32x32xbf16> to vector<32x32xbf16>
    %c2 = arith.constant 2 : index
    %c0_26 = arith.constant 0 : index
    %c0_27 = arith.constant 0 : index
    %108 = vector.load %arg6[%c2, %c0_26, %c0_27] : memref<4x32x128xbf16, #tpu.memory_space<vmem>>, vector<1x32x128xbf16>
    %109 = vector.shape_cast %108 : vector<1x32x128xbf16> to vector<32x128xbf16>
    %cst_28 = arith.constant dense<0.000000e+00> : vector<32x128xf32>
    %110 = tpu.matmul %107, %109, %cst_28 {dimension_numbers = #tpu.dot_dimension_numbers<[1], [0], [0], [1], [0, 0, 1, 1], [], []>} : vector<32x32xbf16>, vector<32x128xbf16>, vector<32x128xf32> -> vector<32x128xf32>
    %111 = arith.addf %105, %110 : vector<32x128xf32>
    %112 = vector.extract_strided_slice %94 {offsets = [3, 0, 0], sizes = [1, 32, 32], strides = [1, 1, 1]} : vector<4x32x32xbf16> to vector<1x32x32xbf16>
    %113 = vector.shape_cast %112 : vector<1x32x32xbf16> to vector<32x32xbf16>
    %c3 = arith.constant 3 : index
    %c0_29 = arith.constant 0 : index
    %c0_30 = arith.constant 0 : index
    %114 = vector.load %arg6[%c3, %c0_29, %c0_30] : memref<4x32x128xbf16, #tpu.memory_space<vmem>>, vector<1x32x128xbf16>
    %115 = vector.shape_cast %114 : vector<1x32x128xbf16> to vector<32x128xbf16>
    %cst_31 = arith.constant dense<0.000000e+00> : vector<32x128xf32>
    %116 = tpu.matmul %113, %115, %cst_31 {dimension_numbers = #tpu.dot_dimension_numbers<[1], [0], [0], [1], [0, 0, 1, 1], [], []>} : vector<32x32xbf16>, vector<32x128xbf16>, vector<32x128xf32> -> vector<32x128xf32>
    %117 = arith.addf %111, %116 : vector<32x128xf32>
    %c0_32 = arith.constant 0 : index
    %c0_33 = arith.constant 0 : index
    %118 = vector.load %arg7[%c0_32, %c0_33] : memref<1x128xf32, #tpu.memory_space<vmem>>, vector<1x128xf32>
    %119 = vector.broadcast %118 : vector<1x128xf32> to vector<32x128xf32>
    %120 = arith.addf %117, %119 : vector<32x128xf32>
    %121 = arith.addf %1, %120 : vector<32x128xf32>
    %c0_34 = arith.constant 0 : index
    %c0_35 = arith.constant 0 : index
    %122 = vector.load %arg8[%c0_34, %c0_35] : memref<1x128xf32, #tpu.memory_space<vmem>>, vector<1x128xf32>
    %c0_36 = arith.constant 0 : index
    %c0_37 = arith.constant 0 : index
    %123 = vector.load %arg9[%c0_36, %c0_37] : memref<1x128xf32, #tpu.memory_space<vmem>>, vector<1x128xf32>
    %cst_38 = arith.constant dense<0.000000e+00> : vector<32xf32>
    %124 = vector.multi_reduction <add>, %121, %cst_38 [1] : vector<32x128xf32> to vector<32xf32>
    %125 = vector.shape_cast %124 : vector<32xf32> to vector<32x1xf32>
    %cst_39 = arith.constant 1.280000e+02 : f32
    %126 = vector.broadcast %cst_39 : f32 to vector<32x1xf32>
    %127 = arith.divf %125, %126 : vector<32x1xf32>
    %128 = vector.broadcast %127 : vector<32x1xf32> to vector<32x128xf32>
    %129 = arith.subf %121, %128 : vector<32x128xf32>
    %130 = arith.mulf %129, %129 : vector<32x128xf32>
    %cst_40 = arith.constant dense<0.000000e+00> : vector<32xf32>
    %131 = vector.multi_reduction <add>, %130, %cst_40 [1] : vector<32x128xf32> to vector<32xf32>
    %132 = vector.shape_cast %131 : vector<32xf32> to vector<32x1xf32>
    %cst_41 = arith.constant 1.280000e+02 : f32
    %133 = vector.broadcast %cst_41 : f32 to vector<32x1xf32>
    %134 = arith.divf %132, %133 : vector<32x1xf32>
    %135 = vector.broadcast %127 : vector<32x1xf32> to vector<32x128xf32>
    %136 = arith.subf %121, %135 : vector<32x128xf32>
    %cst_42 = arith.constant 9.99999974E-6 : f32
    %137 = vector.broadcast %cst_42 : f32 to vector<32x1xf32>
    %138 = arith.addf %134, %137 : vector<32x1xf32>
    %139 = math.rsqrt %138 : vector<32x1xf32>
    %140 = vector.broadcast %139 : vector<32x1xf32> to vector<32x128xf32>
    %141 = arith.mulf %136, %140 : vector<32x128xf32>
    %142 = vector.broadcast %122 : vector<1x128xf32> to vector<32x128xf32>
    %143 = arith.mulf %141, %142 : vector<32x128xf32>
    %144 = vector.broadcast %123 : vector<1x128xf32> to vector<32x128xf32>
    %145 = arith.addf %143, %144 : vector<32x128xf32>
    %146 = arith.truncf %145 : vector<32x128xf32> to vector<32x128xbf16>
    %c0_43 = arith.constant 0 : index
    %c0_44 = arith.constant 0 : index
    %147 = vector.load %arg10[%c0_43, %c0_44] : memref<128x512xbf16, #tpu.memory_space<vmem>>, vector<128x512xbf16>
    %cst_45 = arith.constant dense<0.000000e+00> : vector<32x512xf32>
    %148 = tpu.matmul %146, %147, %cst_45 {dimension_numbers = #tpu.dot_dimension_numbers<[1], [0], [0], [1], [0, 0, 1, 1], [], []>} : vector<32x128xbf16>, vector<128x512xbf16>, vector<32x512xf32> -> vector<32x512xf32>
    %c0_46 = arith.constant 0 : index
    %c0_47 = arith.constant 0 : index
    %149 = vector.load %arg11[%c0_46, %c0_47] : memref<1x512xf32, #tpu.memory_space<vmem>>, vector<1x512xf32>
    %150 = vector.broadcast %149 : vector<1x512xf32> to vector<32x512xf32>
    %151 = arith.addf %148, %150 : vector<32x512xf32>
    %cst_48 = arith.constant 1.702000e+00 : f32
    %152 = vector.broadcast %cst_48 : f32 to vector<32x512xf32>
    %153 = arith.mulf %152, %151 : vector<32x512xf32>
    %154 = arith.negf %153 : vector<32x512xf32>
    %155 = math.exp %154 : vector<32x512xf32>
    %cst_49 = arith.constant 1.000000e+00 : f32
    %156 = vector.broadcast %cst_49 : f32 to vector<32x512xf32>
    %157 = arith.addf %156, %155 : vector<32x512xf32>
    %158 = arith.divf %156, %157 : vector<32x512xf32>
    %159 = arith.mulf %151, %158 : vector<32x512xf32>
    %160 = arith.truncf %159 : vector<32x512xf32> to vector<32x512xbf16>
    %c0_50 = arith.constant 0 : index
    %c0_51 = arith.constant 0 : index
    %161 = vector.load %arg12[%c0_50, %c0_51] : memref<512x128xbf16, #tpu.memory_space<vmem>>, vector<512x128xbf16>
    %cst_52 = arith.constant dense<0.000000e+00> : vector<32x128xf32>
    %162 = tpu.matmul %160, %161, %cst_52 {dimension_numbers = #tpu.dot_dimension_numbers<[1], [0], [0], [1], [0, 0, 1, 1], [], []>} : vector<32x512xbf16>, vector<512x128xbf16>, vector<32x128xf32> -> vector<32x128xf32>
    %c0_53 = arith.constant 0 : index
    %c0_54 = arith.constant 0 : index
    %163 = vector.load %arg13[%c0_53, %c0_54] : memref<1x128xf32, #tpu.memory_space<vmem>>, vector<1x128xf32>
    %164 = vector.broadcast %163 : vector<1x128xf32> to vector<32x128xf32>
    %165 = arith.addf %162, %164 : vector<32x128xf32>
    %166 = arith.addf %121, %165 : vector<32x128xf32>
    %167 = vector.shape_cast %166 : vector<32x128xf32> to vector<2x16x128xf32>
    %c0_55 = arith.constant 0 : index
    %c0_56 = arith.constant 0 : index
    %c0_57 = arith.constant 0 : index
    %168 = vector.load %arg14[%c0_55, %c0_56, %c0_57] : memref<2x16x128xf32, #tpu.memory_space<vmem>>, vector<2x16x128xf32>
    tpu.vector_store %arg14[%c0_55, %c0_56, %c0_57], %167 {strides = array<i32>} : memref<2x16x128xf32, #tpu.memory_space<vmem>>, vector<2x16x128xf32>,
    return
  }
  func.func @transform_0(%arg0: i32) -> (i32, i32, i32) {
    %c0_i32 = arith.constant 0 : i32
    %c0_i32_0 = arith.constant 0 : i32
    %c0_i32_1 = arith.constant 0 : i32
    return %arg0, %c0_i32, %c0_i32_0 : i32, i32, i32
  }
  func.func @transform_1(%arg0: i32) -> (i32, i32) {
    %c0_i32 = arith.constant 0 : i32
    %c0_i32_0 = arith.constant 0 : i32
    %c0_i32_1 = arith.constant 0 : i32
    return %c0_i32, %c0_i32_0 : i32, i32
  }
  func.func @transform_2(%arg0: i32) -> (i32, i32) {
    %c0_i32 = arith.constant 0 : i32
    %c0_i32_0 = arith.constant 0 : i32
    %c0_i32_1 = arith.constant 0 : i32
    return %c0_i32, %c0_i32_0 : i32, i32
  }
  func.func @transform_3(%arg0: i32) -> (i32, i32) {
    %c0_i32 = arith.constant 0 : i32
    %c0_i32_0 = arith.constant 0 : i32
    %c0_i32_1 = arith.constant 0 : i32
    return %c0_i32, %c0_i32_0 : i32, i32
  }
  func.func @transform_4(%arg0: i32) -> (i32, i32) {
    %c0_i32 = arith.constant 0 : i32
    %c0_i32_0 = arith.constant 0 : i32
    %c0_i32_1 = arith.constant 0 : i32
    return %c0_i32, %c0_i32_0 : i32, i32
  }
  func.func @transform_5(%arg0: i32) -> (i32, i32, i32) {
    %c0_i32 = arith.constant 0 : i32
    %c0_i32_0 = arith.constant 0 : i32
    %c0_i32_1 = arith.constant 0 : i32
    %c0_i32_2 = arith.constant 0 : i32
    return %c0_i32, %c0_i32_0, %c0_i32_1 : i32, i32, i32
  }
  func.func @transform_6(%arg0: i32) -> (i32, i32) {
    %c0_i32 = arith.constant 0 : i32
    %c0_i32_0 = arith.constant 0 : i32
    %c0_i32_1 = arith.constant 0 : i32
    return %c0_i32, %c0_i32_0 : i32, i32
  }
  func.func @transform_7(%arg0: i32) -> (i32, i32) {
    %c0_i32 = arith.constant 0 : i32
    %c0_i32_0 = arith.constant 0 : i32
    %c0_i32_1 = arith.constant 0 : i32
    return %c0_i32, %c0_i32_0 : i32, i32
  }
  func.func @transform_8(%arg0: i32) -> (i32, i32) {
    %c0_i32 = arith.constant 0 : i32
    %c0_i32_0 = arith.constant 0 : i32
    %c0_i32_1 = arith.constant 0 : i32
    return %c0_i32, %c0_i32_0 : i32, i32
  }
  func.func @transform_9(%arg0: i32) -> (i32, i32) {
    %c0_i32 = arith.constant 0 : i32
    %c0_i32_0 = arith.constant 0 : i32
    %c0_i32_1 = arith.constant 0 : i32
    return %c0_i32, %c0_i32_0 : i32, i32
  }
  func.func @transform_10(%arg0: i32) -> (i32, i32) {
    %c0_i32 = arith.constant 0 : i32
    %c0_i32_0 = arith.constant 0 : i32
    %c0_i32_1 = arith.constant 0 : i32
    return %c0_i32, %c0_i32_0 : i32, i32
  }
  func.func @transform_11(%arg0: i32) -> (i32, i32) {
    %c0_i32 = arith.constant 0 : i32
    %c0_i32_0 = arith.constant 0 : i32
    %c0_i32_1 = arith.constant 0 : i32
    return %c0_i32, %c0_i32_0 : i32, i32
  }
  func.func @transform_12(%arg0: i32) -> (i32, i32) {
    %c0_i32 = arith.constant 0 : i32
    %c0_i32_0 = arith.constant 0 : i32
    %c0_i32_1 = arith.constant 0 : i32
    return %c0_i32, %c0_i32_0 : i32, i32
  }
  func.func @transform_13(%arg0: i32) -> (i32, i32, i32) {
    %c0_i32 = arith.constant 0 : i32
    %c0_i32_0 = arith.constant 0 : i32
    %c0_i32_1 = arith.constant 0 : i32
    return %arg0, %c0_i32, %c0_i32_0 : i32, i32, i32
  }
}

</mosaic_0001>

<llo_original>
// kernel: tpu_custom_call.1
$region0: #{tpu_custom_call.1}
  #allocation0 [shape = 'u32[]', space=smem, size = 0x4, offset = 0x4, fixed_abs, tag = 'smem constant byte address 0x4 - core index']
  #allocation1 [shape = 'u32[144,128]{1,0:T(1,128)}', space=vmem, size = 0x12000, scoped, tag = 'internal scratch']
  %s0 = inlined_call_operand.hbm [shape: f32[4,16,128], index: 0, kind: input, shape index: {}]
  %s1 = inlined_call_operand.hbm [shape: f32[1,128], index: 1, kind: input, shape index: {}]
  %s2 = inlined_call_operand.hbm [shape: f32[1,128], index: 2, kind: input, shape index: {}]
  %s3 = inlined_call_operand.hbm [shape: bf16[128,384], index: 3, kind: input, shape index: {}]
  %s4 = inlined_call_operand.vmem [shape: f32[1,384], index: 4, kind: input, shape index: {}]
  %s5 = inlined_call_operand.hbm [shape: bf16[4,32,128], index: 5, kind: input, shape index: {}]
  %s6 = inlined_call_operand.vmem [shape: f32[1,128], index: 6, kind: input, shape index: {}]
  %s7 = inlined_call_operand.vmem [shape: f32[1,128], index: 7, kind: input, shape index: {}]
  %s8 = inlined_call_operand.vmem [shape: f32[1,128], index: 8, kind: input, shape index: {}]
  %s9 = inlined_call_operand.hbm [shape: bf16[128,512], index: 9, kind: input, shape index: {}]
  %s10 = inlined_call_operand.vmem [shape: f32[1,512], index: 10, kind: input, shape index: {}]
  %s11 = inlined_call_operand.hbm [shape: bf16[512,128], index: 11, kind: input, shape index: {}]
  %s12 = inlined_call_operand.vmem [shape: f32[1,128], index: 12, kind: input, shape index: {}]
  %s13 = inlined_call_operand.hbm [shape: f32[4,16,128], index: 13, kind: output, shape index: {}]
  %s14 = sld [smem:[#allocation0]]
  $region113: #{tpu_custom_call.1} parent=0
    _
  %s16 = ssub.s32 1, %s14
  %s17 = scalar_select 0, %s16, %s14
  $region1: #{tpu_custom_call.1} parent=0
    #allocation2 [shape = 'u8[32768]{0}', space=vmem, size = 0x8000, scoped, tag = 'input window, operand 0']
    #allocation3 [shape = 's32[2]{0}', space=sflag, size = 0x8, scoped, tag = 'scoped memory for tpu_custom_call.1']
    #allocation4 [shape = 's32[2]{0}', space=sflag, size = 0x8, scoped, tag = 'scoped memory for tpu_custom_call.1']
    #allocation5 [shape = 'u8[512]{0}', space=vmem, size = 0x400, scoped, tag = 'input window, operand 1, single buffered']
    #allocation6 [shape = 's32[1]{0}', space=sflag, size = 0x4, scoped, tag = 'scoped memory for tpu_custom_call.1']
    #allocation7 [shape = 'u8[512]{0}', space=vmem, size = 0x400, scoped, tag = 'input window, operand 2, single buffered']
    #allocation8 [shape = 'u8[98304]{0}', space=vmem, size = 0x18000, scoped, tag = 'input window, operand 3, single buffered']
    #allocation9 [shape = 's32[1]{0}', space=sflag, size = 0x4, scoped, tag = 'scoped memory for tpu_custom_call.1']
    #allocation10 [shape = 'u8[32768]{0}', space=vmem, size = 0x8000, scoped, tag = 'input window, operand 5, single buffered']
    #allocation11 [shape = 'u8[131072]{0}', space=vmem, size = 0x20000, scoped, tag = 'input window, operand 9, single buffered']
    #allocation12 [shape = 's32[1]{0}', space=sflag, size = 0x4, scoped, tag = 'scoped memory for tpu_custom_call.1']
    #allocation13 [shape = 'u8[131072]{0}', space=vmem, size = 0x20000, scoped, tag = 'input window, operand 11, single buffered']
    #allocation14 [shape = 'u8[32768]{0}', space=vmem, size = 0x8000, scoped, tag = 'output window, operand 0']
    %18 = vsyncpa [#allocation3], 0
    %s19 = scalar_lea.sflag [#allocation3], 1
    %20 = vsyncpa %s19, 0
    %21 = vsyncpa [#allocation6], 0
    %22 = vsyncpa [#allocation9], 0
    %23 = vsyncpa [#allocation12], 0
    %24 = vsyncpa [#allocation4], 0
    %s25 = scalar_lea.sflag [#allocation4], 1
    %26 = vsyncpa %s25, 0
    loop: start=0, step=1, limit=4
    $region2: #{tpu_custom_call.1} parent=1 // loop_pre_header
      _
    $region3: #{tpu_custom_call.1} parent=1 // loop_header
      %s28 = sphi 0, %s32
      %p29 = scmp.ge.s32.totalorder %s28, 4
      %s38 = sphi 0, %s40
      %s41 = sphi 0, %s38
      %s42 = sphi 0, %s41
      %s58 = sphi 0, %s42
      %s62 = sphi 0, %s62
      %s64 = sphi 0, %s62
      %s65 = sphi 0, %s64
      %s79 = sphi 0, %s65
      %s83 = sphi 0, %s83
      %s85 = sphi 0, %s83
      %s86 = sphi 0, %s85
      %s100 = sphi 0, %s86
      %s104 = sphi 0, %s104
      %s106 = sphi 0, %s104
      %s107 = sphi 0, %s106
      %s121 = sphi 0, %s107
      %s125 = sphi 0, %s125
      %s127 = sphi 0, %s125
      %s128 = sphi 0, %s127
      %s142 = sphi 0, %s128
      %s146 = sphi 0, %s146
      %s148 = sphi 0, %s146
      %s149 = sphi 0, %s148
      %s163 = sphi 0, %s149
      %s167 = sphi 0, %s167
      %s169 = sphi 0, %s167
      %s170 = sphi 0, %s169
      %s184 = sphi 0, %s170
      %s188 = sphi 0, %s188
      %s190 = sphi 0, %s188
      %s191 = sphi 0, %s190
      %s205 = sphi 0, %s191
      %s209 = sphi 0, %s209
      %s211 = sphi 0, %s209
      %s212 = sphi 0, %s211
      %s226 = sphi 0, %s212
      %s230 = sphi 0, %s230
      %s232 = sphi 0, %s230
      %s233 = sphi 0, %s232
      %s247 = sphi 0, %s233
      %s251 = sphi 0, %s251
      %s253 = sphi 0, %s251
      %s254 = sphi 0, %s253
      %s268 = sphi 0, %s254
      %s272 = sphi 0, %s272
      %s274 = sphi 0, %s272
      %s275 = sphi 0, %s274
      %s289 = sphi 0, %s275
      %s293 = sphi 0, %s293
      %s295 = sphi 0, %s293
      %s296 = sphi 0, %s295
      %s310 = sphi 0, %s296
      %s316 = sphi 0, %s318
      %s319 = sphi 0, %s316
      %s320 = sphi 0, %s319
      %s336 = sphi 0, %s320
    $region4: #{tpu_custom_call.1} parent=1 // loop_header_branch
      %31 = sbr.rel (%p29) target = $region8
    $region5: #{tpu_custom_call.1} parent=1 // loop_body
      %s33 = ssub.s32 %s28, 1
      %s34 = ssub.s32 %s28, 2
      %s35 = sadd.s32 %s28, 1
      %s36 = ssub.s32 %s28, %s35
      %p37 = scmp.eq.s32.totalorder %s36, 0
      %s39 = sadd.s32 %s38, 1
      %s40 = scalar_select %p37, %s38, %s39
      %p43 = pneg %p37
      %p44 = scmp.eq.s32.totalorder %s28, 1
      %p45 = por %p43, %p44
      %p46 = scmp.ne.s32.totalorder %s38, %s41
      %p47 = scmp.eq.s32.totalorder %s28, 0
      %p48 = por %p46, %p47
      %p49 = scmp.ne.s32.totalorder %s38, %s41
      %p50 = scmp.eq.s32.totalorder %s33, 1
      %p51 = por %p49, %p50
      %p52 = scmp.ne.s32.totalorder %s41, %s42
      %p53 = scmp.eq.s32.totalorder %s33, 0
      %p54 = por %p52, %p53
      %p55 = scmp.ne.s32.totalorder %s41, %s42
      %p56 = scmp.eq.s32.totalorder %s34, 1
      %p57 = por %p55, %p56
      %p59 = scmp.ne.s32.totalorder %s42, %s58
      %p60 = scmp.eq.s32.totalorder %s34, 0
      %p61 = por %p59, %p60
      %s63 = sadd.s32 %s62, 1
      %p66 = scmp.eq.s32.totalorder %s28, 1
      %p67 = scmp.ne.s32.totalorder %s62, %s64
      %p68 = scmp.eq.s32.totalorder %s28, 0
      %p69 = por %p67, %p68
      %p70 = scmp.ne.s32.totalorder %s62, %s64
      %p71 = scmp.eq.s32.totalorder %s33, 1
      %p72 = por %p70, %p71
      %p73 = scmp.ne.s32.totalorder %s64, %s65
      %p74 = scmp.eq.s32.totalorder %s33, 0
      %p75 = por %p73, %p74
      %p76 = scmp.ne.s32.totalorder %s64, %s65
      %p77 = scmp.eq.s32.totalorder %s34, 1
      %p78 = por %p76, %p77
      %p80 = scmp.ne.s32.totalorder %s65, %s79
      %p81 = scmp.eq.s32.totalorder %s34, 0
      %p82 = por %p80, %p81
      %s84 = sadd.s32 %s83, 1
      %p87 = scmp.eq.s32.totalorder %s28, 1
      %p88 = scmp.ne.s32.totalorder %s83, %s85
      %p89 = scmp.eq.s32.totalorder %s28, 0
      %p90 = por %p88, %p89
      %p91 = scmp.ne.s32.totalorder %s83, %s85
      %p92 = scmp.eq.s32.totalorder %s33, 1
      %p93 = por %p91, %p92
      %p94 = scmp.ne.s32.totalorder %s85, %s86
      %p95 = scmp.eq.s32.totalorder %s33, 0
      %p96 = por %p94, %p95
      %p97 = scmp.ne.s32.totalorder %s85, %s86
      %p98 = scmp.eq.s32.totalorder %s34, 1
      %p99 = por %p97, %p98
      %p101 = scmp.ne.s32.totalorder %s86, %s100
      %p102 = scmp.eq.s32.totalorder %s34, 0
      %p103 = por %p101, %p102
      %s105 = sadd.s32 %s104, 1
      %p108 = scmp.eq.s32.totalorder %s28, 1
      %p109 = scmp.ne.s32.totalorder %s104, %s106
      %p110 = scmp.eq.s32.totalorder %s28, 0
      %p111 = por %p109, %p110
      %p112 = scmp.ne.s32.totalorder %s104, %s106
      %p113 = scmp.eq.s32.totalorder %s33, 1
      %p114 = por %p112, %p113
      %p115 = scmp.ne.s32.totalorder %s106, %s107
      %p116 = scmp.eq.s32.totalorder %s33, 0
      %p117 = por %p115, %p116
      %p118 = scmp.ne.s32.totalorder %s106, %s107
      %p119 = scmp.eq.s32.totalorder %s34, 1
      %p120 = por %p118, %p119
      %p122 = scmp.ne.s32.totalorder %s107, %s121
      %p123 = scmp.eq.s32.totalorder %s34, 0
      %p124 = por %p122, %p123
      %s126 = sadd.s32 %s125, 1
      %p129 = scmp.eq.s32.totalorder %s28, 1
      %p130 = scmp.ne.s32.totalorder %s125, %s127
      %p131 = scmp.eq.s32.totalorder %s28, 0
      %p132 = por %p130, %p131
      %p133 = scmp.ne.s32.totalorder %s125, %s127
      %p134 = scmp.eq.s32.totalorder %s33, 1
      %p135 = por %p133, %p134
      %p136 = scmp.ne.s32.totalorder %s127, %s128
      %p137 = scmp.eq.s32.totalorder %s33, 0
      %p138 = por %p136, %p137
      %p139 = scmp.ne.s32.totalorder %s127, %s128
      %p140 = scmp.eq.s32.totalorder %s34, 1
      %p141 = por %p139, %p140
      %p143 = scmp.ne.s32.totalorder %s128, %s142
      %p144 = scmp.eq.s32.totalorder %s34, 0
      %p145 = por %p143, %p144
      %s147 = sadd.s32 %s146, 1
      %p150 = scmp.eq.s32.totalorder %s28, 1
      %p151 = scmp.ne.s32.totalorder %s146, %s148
      %p152 = scmp.eq.s32.totalorder %s28, 0
      %p153 = por %p151, %p152
      %p154 = scmp.ne.s32.totalorder %s146, %s148
      %p155 = scmp.eq.s32.totalorder %s33, 1
      %p156 = por %p154, %p155
      %p157 = scmp.ne.s32.totalorder %s148, %s149
      %p158 = scmp.eq.s32.totalorder %s33, 0
      %p159 = por %p157, %p158
      %p160 = scmp.ne.s32.totalorder %s148, %s149
      %p161 = scmp.eq.s32.totalorder %s34, 1
      %p162 = por %p160, %p161
      %p164 = scmp.ne.s32.totalorder %s149, %s163
      %p165 = scmp.eq.s32.totalorder %s34, 0
      %p166 = por %p164, %p165
      %s168 = sadd.s32 %s167, 1
      %p171 = scmp.eq.s32.totalorder %s28, 1
      %p172 = scmp.ne.s32.totalorder %s167, %s169
      %p173 = scmp.eq.s32.totalorder %s28, 0
      %p174 = por %p172, %p173
      %p175 = scmp.ne.s32.totalorder %s167, %s169
      %p176 = scmp.eq.s32.totalorder %s33, 1
      %p177 = por %p175, %p176
      %p178 = scmp.ne.s32.totalorder %s169, %s170
      %p179 = scmp.eq.s32.totalorder %s33, 0
      %p180 = por %p178, %p179
      %p181 = scmp.ne.s32.totalorder %s169, %s170
      %p182 = scmp.eq.s32.totalorder %s34, 1
      %p183 = por %p181, %p182
      %p185 = scmp.ne.s32.totalorder %s170, %s184
      %p186 = scmp.eq.s32.totalorder %s34, 0
      %p187 = por %p185, %p186
      %s189 = sadd.s32 %s188, 1
      %p192 = scmp.eq.s32.totalorder %s28, 1
      %p193 = scmp.ne.s32.totalorder %s188, %s190
      %p194 = scmp.eq.s32.totalorder %s28, 0
      %p195 = por %p193, %p194
      %p196 = scmp.ne.s32.totalorder %s188, %s190
      %p197 = scmp.eq.s32.totalorder %s33, 1
      %p198 = por %p196, %p197
      %p199 = scmp.ne.s32.totalorder %s190, %s191
      %p200 = scmp.eq.s32.totalorder %s33, 0
      %p201 = por %p199, %p200
      %p202 = scmp.ne.s32.totalorder %s190, %s191
      %p203 = scmp.eq.s32.totalorder %s34, 1
      %p204 = por %p202, %p203
      %p206 = scmp.ne.s32.totalorder %s191, %s205
      %p207 = scmp.eq.s32.totalorder %s34, 0
      %p208 = por %p206, %p207
      %s210 = sadd.s32 %s209, 1
      %p213 = scmp.eq.s32.totalorder %s28, 1
      %p214 = scmp.ne.s32.totalorder %s209, %s211
      %p215 = scmp.eq.s32.totalorder %s28, 0
      %p216 = por %p214, %p215
      %p217 = scmp.ne.s32.totalorder %s209, %s211
      %p218 = scmp.eq.s32.totalorder %s33, 1
      %p219 = por %p217, %p218
      %p220 = scmp.ne.s32.totalorder %s211, %s212
      %p221 = scmp.eq.s32.totalorder %s33, 0
      %p222 = por %p220, %p221
      %p223 = scmp.ne.s32.totalorder %s211, %s212
      %p224 = scmp.eq.s32.totalorder %s34, 1
      %p225 = por %p223, %p224
      %p227 = scmp.ne.s32.totalorder %s212, %s226
      %p228 = scmp.eq.s32.totalorder %s34, 0
      %p229 = por %p227, %p228
      %s231 = sadd.s32 %s230, 1
      %p234 = scmp.eq.s32.totalorder %s28, 1
      %p235 = scmp.ne.s32.totalorder %s230, %s232
      %p236 = scmp.eq.s32.totalorder %s28, 0
      %p237 = por %p235, %p236
      %p238 = scmp.ne.s32.totalorder %s230, %s232
      %p239 = scmp.eq.s32.totalorder %s33, 1
      %p240 = por %p238, %p239
      %p241 = scmp.ne.s32.totalorder %s232, %s233
      %p242 = scmp.eq.s32.totalorder %s33, 0
      %p243 = por %p241, %p242
      %p244 = scmp.ne.s32.totalorder %s232, %s233
      %p245 = scmp.eq.s32.totalorder %s34, 1
      %p246 = por %p244, %p245
      %p248 = scmp.ne.s32.totalorder %s233, %s247
      %p249 = scmp.eq.s32.totalorder %s34, 0
      %p250 = por %p248, %p249
      %s252 = sadd.s32 %s251, 1
      %p255 = scmp.eq.s32.totalorder %s28, 1
      %p256 = scmp.ne.s32.totalorder %s251, %s253
      %p257 = scmp.eq.s32.totalorder %s28, 0
      %p258 = por %p256, %p257
      %p259 = scmp.ne.s32.totalorder %s251, %s253
      %p260 = scmp.eq.s32.totalorder %s33, 1
      %p261 = por %p259, %p260
      %p262 = scmp.ne.s32.totalorder %s253, %s254
      %p263 = scmp.eq.s32.totalorder %s33, 0
      %p264 = por %p262, %p263
      %p265 = scmp.ne.s32.totalorder %s253, %s254
      %p266 = scmp.eq.s32.totalorder %s34, 1
      %p267 = por %p265, %p266
      %p269 = scmp.ne.s32.totalorder %s254, %s268
      %p270 = scmp.eq.s32.totalorder %s34, 0
      %p271 = por %p269, %p270
      %s273 = sadd.s32 %s272, 1
      %p276 = scmp.eq.s32.totalorder %s28, 1
      %p277 = scmp.ne.s32.totalorder %s272, %s274
      %p278 = scmp.eq.s32.totalorder %s28, 0
      %p279 = por %p277, %p278
      %p280 = scmp.ne.s32.totalorder %s272, %s274
      %p281 = scmp.eq.s32.totalorder %s33, 1
      %p282 = por %p280, %p281
      %p283 = scmp.ne.s32.totalorder %s274, %s275
      %p284 = scmp.eq.s32.totalorder %s33, 0
      %p285 = por %p283, %p284
      %p286 = scmp.ne.s32.totalorder %s274, %s275
      %p287 = scmp.eq.s32.totalorder %s34, 1
      %p288 = por %p286, %p287
      %p290 = scmp.ne.s32.totalorder %s275, %s289
      %p291 = scmp.eq.s32.totalorder %s34, 0
      %p292 = por %p290, %p291
      %s294 = sadd.s32 %s293, 1
      %p297 = scmp.eq.s32.totalorder %s28, 1
      %p298 = scmp.ne.s32.totalorder %s293, %s295
      %p299 = scmp.eq.s32.totalorder %s28, 0
      %p300 = por %p298, %p299
      %p301 = scmp.ne.s32.totalorder %s293, %s295
      %p302 = scmp.eq.s32.totalorder %s33, 1
      %p303 = por %p301, %p302
      %p304 = scmp.ne.s32.totalorder %s295, %s296
      %p305 = scmp.eq.s32.totalorder %s33, 0
      %p306 = por %p304, %p305
      %p307 = scmp.ne.s32.totalorder %s295, %s296
      %p308 = scmp.eq.s32.totalorder %s34, 1
      %p309 = por %p307, %p308
      %p311 = scmp.ne.s32.totalorder %s296, %s310
      %p312 = scmp.eq.s32.totalorder %s34, 0
      %p313 = por %p311, %p312
      %s314 = ssub.s32 %s28, %s35
      %p315 = scmp.eq.s32.totalorder %s314, 0
      %s317 = sadd.s32 %s316, 1
      %s318 = scalar_select %p315, %s316, %s317
      %p321 = pneg %p315
      %p322 = scmp.eq.s32.totalorder %s28, 1
      %p323 = por %p321, %p322
      %p324 = scmp.ne.s32.totalorder %s316, %s319
      %p325 = scmp.eq.s32.totalorder %s28, 0
      %p326 = por %p324, %p325
      %p327 = scmp.ne.s32.totalorder %s316, %s319
      %p328 = scmp.eq.s32.totalorder %s33, 1
      %p329 = por %p327, %p328
      %p330 = scmp.ne.s32.totalorder %s319, %s320
      %p331 = scmp.eq.s32.totalorder %s33, 0
      %p332 = por %p330, %p331
      %p333 = scmp.ne.s32.totalorder %s319, %s320
      %p334 = scmp.eq.s32.totalorder %s34, 1
      %p335 = por %p333, %p334
      %p337 = scmp.ne.s32.totalorder %s320, %s336
      %p338 = scmp.eq.s32.totalorder %s34, 0
      %p339 = por %p337, %p338
      %p340 = scmp.le.s32.totalorder 1, %s28
      %p341 = scmp.lt.s32.totalorder %s28, 3
      %p342 = pnand %p340, %p341
      %p343 = pneg %p342
      // Predicated region
      $region9: #{tpu_custom_call.1} parent=5 // pred_check
        _
      $region10: #{tpu_custom_call.1} parent=5 // pred_check_branch
        %345 = sbr.rel (%p342) target = $region12
      $region11: #{tpu_custom_call.1} parent=5 // pred_region
        %s346 = ssub.s32 %s28, 1
        // Predicated region
        $region13: #{tpu_custom_call.1} parent=11 // pred_check
          %p347 = pneg %p75
        $region14: #{tpu_custom_call.1} parent=11 // pred_check_branch
          %349 = sbr.rel (%p347) target = $region16
        $region15: #{tpu_custom_call.1} parent=11 // pred_region
          %s351 = ssub.s32 16, 16
          %352 = vsyncadd [#allocation6], %s351
          %s354 = sshll.u32 [#allocation5], 4
          %s355 = int_to_ptr.vmem [resolvable:$true] %s354
          %357 = dma.hbm_to_vmem [thread:$0]  %s1, 16, %s355, [#allocation6]
        $region16: #{tpu_custom_call.1} parent=11 // pred_fallthru
          _
        // Predicated region
        $region17: #{tpu_custom_call.1} parent=11 // pred_check
          %p358 = pneg %p96
        $region18: #{tpu_custom_call.1} parent=11 // pred_check_branch
          %360 = sbr.rel (%p358) target = $region20
        $region19: #{tpu_custom_call.1} parent=11 // pred_region
          %s362 = ssub.s32 16, 16
          %363 = vsyncadd [#allocation6], %s362
          %s365 = sshll.u32 [#allocation7], 4
          %s366 = int_to_ptr.vmem [resolvable:$true] %s365
          %368 = dma.hbm_to_vmem [thread:$0]  %s2, 16, %s366, [#allocation6]
        $region20: #{tpu_custom_call.1} parent=11 // pred_fallthru
          _
        // Predicated region
        $region21: #{tpu_custom_call.1} parent=11 // pred_check
          %p369 = pneg %p117
        $region22: #{tpu_custom_call.1} parent=11 // pred_check_branch
          %371 = sbr.rel (%p369) target = $region24
        $region23: #{tpu_custom_call.1} parent=11 // pred_region
          %s373 = ssub.s32 3072, 3072
          %374 = vsyncadd [#allocation9], %s373
          %s375 = sshll.u32 [#allocation8], 4
          %s376 = int_to_ptr.vmem [resolvable:$true] %s375
          %381 = dma.hbm_to_vmem [thread:$0]  %s3, 3072, %s376, [#allocation9], 192, 192, 12
        $region24: #{tpu_custom_call.1} parent=11 // pred_fallthru
          _
        // Predicated region
        $region25: #{tpu_custom_call.1} parent=11 // pred_check
          %p382 = pneg %p138
        $region26: #{tpu_custom_call.1} parent=11 // pred_check_branch
          %384 = sbr.rel (%p382) target = $region28
        $region27: #{tpu_custom_call.1} parent=11 // pred_region
          _
        $region28: #{tpu_custom_call.1} parent=11 // pred_fallthru
          _
        // Predicated region
        $region29: #{tpu_custom_call.1} parent=11 // pred_check
          %p385 = pneg %p159
        $region30: #{tpu_custom_call.1} parent=11 // pred_check_branch
          %387 = sbr.rel (%p385) target = $region32
        $region31: #{tpu_custom_call.1} parent=11 // pred_region
          %s389 = ssub.s32 1024, 1024
          %390 = vsyncadd [#allocation9], %s389
          %s391 = sshll.u32 [#allocation10], 4
          %s392 = int_to_ptr.vmem [resolvable:$true] %s391
          %397 = dma.hbm_to_vmem [thread:$0]  %s5, 1024, %s392, [#allocation9], 64, 64, 4
        $region32: #{tpu_custom_call.1} parent=11 // pred_fallthru
          _
        // Predicated region
        $region33: #{tpu_custom_call.1} parent=11 // pred_check
          %p398 = pneg %p180
        $region34: #{tpu_custom_call.1} parent=11 // pred_check_branch
          %400 = sbr.rel (%p398) target = $region36
        $region35: #{tpu_custom_call.1} parent=11 // pred_region
          _
        $region36: #{tpu_custom_call.1} parent=11 // pred_fallthru
          _
        // Predicated region
        $region37: #{tpu_custom_call.1} parent=11 // pred_check
          %p401 = pneg %p201
        $region38: #{tpu_custom_call.1} parent=11 // pred_check_branch
          %403 = sbr.rel (%p401) target = $region40
        $region39: #{tpu_custom_call.1} parent=11 // pred_region
          _
        $region40: #{tpu_custom_call.1} parent=11 // pred_fallthru
          _
        // Predicated region
        $region41: #{tpu_custom_call.1} parent=11 // pred_check
          %p404 = pneg %p222
        $region42: #{tpu_custom_call.1} parent=11 // pred_check_branch
          %406 = sbr.rel (%p404) target = $region44
        $region43: #{tpu_custom_call.1} parent=11 // pred_region
          _
        $region44: #{tpu_custom_call.1} parent=11 // pred_fallthru
          _
        // Predicated region
        $region45: #{tpu_custom_call.1} parent=11 // pred_check
          %p407 = pneg %p243
        $region46: #{tpu_custom_call.1} parent=11 // pred_check_branch
          %409 = sbr.rel (%p407) target = $region48
        $region47: #{tpu_custom_call.1} parent=11 // pred_region
          %s411 = ssub.s32 4096, 4096
          %412 = vsyncadd [#allocation12], %s411
          %s413 = sshll.u32 [#allocation11], 4
          %s414 = int_to_ptr.vmem [resolvable:$true] %s413
          %419 = dma.hbm_to_vmem [thread:$0]  %s9, 4096, %s414, [#allocation12], 256, 256, 16
        $region48: #{tpu_custom_call.1} parent=11 // pred_fallthru
          _
        // Predicated region
        $region49: #{tpu_custom_call.1} parent=11 // pred_check
          %p420 = pneg %p264
        $region50: #{tpu_custom_call.1} parent=11 // pred_check_branch
          %422 = sbr.rel (%p420) target = $region52
        $region51: #{tpu_custom_call.1} parent=11 // pred_region
          _
        $region52: #{tpu_custom_call.1} parent=11 // pred_fallthru
          _
        // Predicated region
        $region53: #{tpu_custom_call.1} parent=11 // pred_check
          %p423 = pneg %p285
        $region54: #{tpu_custom_call.1} parent=11 // pred_check_branch
          %425 = sbr.rel (%p423) target = $region56
        $region55: #{tpu_custom_call.1} parent=11 // pred_region
          %s427 = ssub.s32 4096, 4096
          %428 = vsyncadd [#allocation12], %s427
          %s429 = sshll.u32 [#allocation13], 4
          %s430 = int_to_ptr.vmem [resolvable:$true] %s429
          %435 = dma.hbm_to_vmem [thread:$0]  %s11, 4096, %s430, [#allocation12], 64, 64, 4
        $region56: #{tpu_custom_call.1} parent=11 // pred_fallthru
          _
        // Predicated region
        $region57: #{tpu_custom_call.1} parent=11 // pred_check
          %p436 = pneg %p306
        $region58: #{tpu_custom_call.1} parent=11 // pred_check_branch
          %438 = sbr.rel (%p436) target = $region60
        $region59: #{tpu_custom_call.1} parent=11 // pred_region
          _
        $region60: #{tpu_custom_call.1} parent=11 // pred_fallthru
          _
      $region12: #{tpu_custom_call.1} parent=5 // pred_fallthru
        _
      %p439 = scmp.lt.s32.totalorder %s28, 2
      // Predicated region
      $region61: #{tpu_custom_call.1} parent=5 // pred_check
        %p440 = pneg %p439
      $region62: #{tpu_custom_call.1} parent=5 // pred_check_branch
        %442 = sbr.rel (%p440) target = $region64
      $region63: #{tpu_custom_call.1} parent=5 // pred_region
        // Predicated region
        $region65: #{tpu_custom_call.1} parent=63 // pred_check
          %p443 = pneg %p48
        $region66: #{tpu_custom_call.1} parent=63 // pred_check_branch
          %445 = sbr.rel (%p443) target = $region68
        $region67: #{tpu_custom_call.1} parent=63 // pred_region
          %s446 = sand.u32 %s38, 1
          %s447 = scalar_lea.sflag [#allocation3], %s446
          %s448 = sand.u32 %s38, 1
          %s449 = smul.addr %s448, 32
          %s450 = scalar_lea.vmem [#allocation2], %s449
          %s451 = smul.u32 2, %s28
          %s453 = ssub.s32 512, 512
          %454 = vsyncadd %s447, %s453
          %s455 = smul.addr %s451, 2
          %s456 = smul.addr %s455, 128
          %s457 = scalar_lea.hbm %s0, %s456
          %s458 = sshll.u32 %s450, 4
          %s459 = int_to_ptr.vmem [resolvable:$true] %s458
          %464 = dma.hbm_to_vmem [thread:$0]  %s457, 512, %s459, %s447, 128, 128, 8
        $region68: #{tpu_custom_call.1} parent=63 // pred_fallthru
          _
      $region64: #{tpu_custom_call.1} parent=5 // pred_fallthru
        _
      %p465 = scmp.le.s32.totalorder 1, %s28
      %p466 = scmp.lt.s32.totalorder %s28, 3
      %p467 = pnand %p465, %p466
      %p468 = pneg %p467
      // Predicated region
      $region69: #{tpu_custom_call.1} parent=5 // pred_check
        _
      $region70: #{tpu_custom_call.1} parent=5 // pred_check_branch
        %470 = sbr.rel (%p467) target = $region72
      $region71: #{tpu_custom_call.1} parent=5 // pred_region
        %s471 = ssub.s32 %s28, 1
        %s472 = sand.u32 %s41, 1
        %s473 = scalar_lea.sflag [#allocation3], %s472
        %s474 = sand.u32 %s41, 1
        %s475 = smul.addr %s474, 32
        %s476 = scalar_lea.vmem [#allocation2], %s475
        // Predicated region
        $region73: #{tpu_custom_call.1} parent=71 // pred_check
          %p477 = pneg %p54
        $region74: #{tpu_custom_call.1} parent=71 // pred_check_branch
          %479 = sbr.rel (%p477) target = $region76
        $region75: #{tpu_custom_call.1} parent=71 // pred_region
          %480 = dma.done %s473, 512
        $region76: #{tpu_custom_call.1} parent=71 // pred_fallthru
          _
        // Predicated region
        $region77: #{tpu_custom_call.1} parent=71 // pred_check
          %p481 = pneg %p75
        $region78: #{tpu_custom_call.1} parent=71 // pred_check_branch
          %483 = sbr.rel (%p481) target = $region80
        $region79: #{tpu_custom_call.1} parent=71 // pred_region
          %484 = dma.done [#allocation6], 16
        $region80: #{tpu_custom_call.1} parent=71 // pred_fallthru
          _
        // Predicated region
        $region81: #{tpu_custom_call.1} parent=71 // pred_check
          %p485 = pneg %p96
        $region82: #{tpu_custom_call.1} parent=71 // pred_check_branch
          %487 = sbr.rel (%p485) target = $region84
        $region83: #{tpu_custom_call.1} parent=71 // pred_region
          %488 = dma.done [#allocation6], 16
        $region84: #{tpu_custom_call.1} parent=71 // pred_fallthru
          _
        // Predicated region
        $region85: #{tpu_custom_call.1} parent=71 // pred_check
          %p489 = pneg %p117
        $region86: #{tpu_custom_call.1} parent=71 // pred_check_branch
          %491 = sbr.rel (%p489) target = $region88
        $region87: #{tpu_custom_call.1} parent=71 // pred_region
          %492 = dma.done [#allocation9], 3072
        $region88: #{tpu_custom_call.1} parent=71 // pred_fallthru
          _
        // Predicated region
        $region89: #{tpu_custom_call.1} parent=71 // pred_check
          %p493 = pneg %p159
        $region90: #{tpu_custom_call.1} parent=71 // pred_check_branch
          %495 = sbr.rel (%p493) target = $region92
        $region91: #{tpu_custom_call.1} parent=71 // pred_region
          %496 = dma.done [#allocation9], 1024
        $region92: #{tpu_custom_call.1} parent=71 // pred_fallthru
          _
        // Predicated region
        $region93: #{tpu_custom_call.1} parent=71 // pred_check
          %p497 = pneg %p243
        $region94: #{tpu_custom_call.1} parent=71 // pred_check_branch
          %499 = sbr.rel (%p497) target = $region96
        $region95: #{tpu_custom_call.1} parent=71 // pred_region
          %500 = dma.done [#allocation12], 4096
        $region96: #{tpu_custom_call.1} parent=71 // pred_fallthru
          _
        // Predicated region
        $region97: #{tpu_custom_call.1} parent=71 // pred_check
          %p501 = pneg %p285
        $region98: #{tpu_custom_call.1} parent=71 // pred_check_branch
          %503 = sbr.rel (%p501) target = $region100
        $region99: #{tpu_custom_call.1} parent=71 // pred_region
          %504 = dma.done [#allocation12], 4096
        $region100: #{tpu_custom_call.1} parent=71 // pred_fallthru
          _
        %s505 = sand.u32 %s41, 1
        %s506 = scalar_lea.sflag [#allocation3], %s505
        %s507 = sand.u32 %s41, 1
        %s508 = smul.addr %s507, 32
        %s509 = scalar_lea.vmem [#allocation2], %s508
        %p510 = pneg %p54
        %p511 = pneg %p51
        %p512 = pneg %p75
        %p513 = pneg %p72
        %p514 = pneg %p96
        %p515 = pneg %p93
        %p516 = pneg %p117
        %p517 = pneg %p114
        %p518 = pneg %p138
        %p519 = pneg %p135
        %p520 = pneg %p159
        %p521 = pneg %p156
        %p522 = pneg %p180
        %p523 = pneg %p177
        %p524 = pneg %p201
        %p525 = pneg %p198
        %p526 = pneg %p222
        %p527 = pneg %p219
        %p528 = pneg %p243
        %p529 = pneg %p240
        %p530 = pneg %p264
        %p531 = pneg %p261
        %p532 = pneg %p285
        %p533 = pneg %p282
        %p534 = pneg %p306
        %p535 = pneg %p303
        %p536 = pneg %p332
        %p537 = pneg %p329
        %s538 = sand.u32 %s319, 1
        %s539 = scalar_lea.sflag [#allocation4], %s538
        %s540 = sand.u32 %s319, 1
        %s541 = smul.addr %s540, 32
        %s542 = scalar_lea.vmem [#allocation14], %s541
        %s543 = smul.u32 2, %s33
        %s544 = smul.u32 2, %s33
        %v546 = vld [vmem:[%s476] sm:$0xff]
        %v547 = vld [vmem:[%s476 + $0x8] sm:$0xff]
        %v548 = vld [vmem:[%s476 + $0x10] sm:$0xff]
        %v549 = vld [vmem:[%s476 + $0x18] sm:$0xff]
        %v550 = vld [vmem:[#allocation5] sm:$0x1]
        %v551 = vld [vmem:[#allocation7] sm:$0x1]
        %552 = vadd.xlane.f32.xlu0 %v546
        %v553 = vpop.xlane.xlu0 %552
        %554 = vadd.xlane.f32.xlu0 %v547
        %v555 = vpop.xlane.xlu0 %554
        %556 = vadd.xlane.f32.xlu0 %v548
        %v557 = vpop.xlane.xlu0 %556
        %558 = vadd.xlane.f32.xlu0 %v549
        %v559 = vpop.xlane.xlu0 %558
        %v560 = vrcp.pop 128.0
        %v561 = vmul.f32 %v553, %v560
        %v562 = vmul.f32 %v555, %v560
        %v563 = vmul.f32 %v557, %v560
        %v564 = vmul.f32 %v559, %v560
        %v565 = vsub.f32 %v546, %v561
        %v566 = vsub.f32 %v547, %v562
        %v567 = vsub.f32 %v548, %v563
        %v568 = vsub.f32 %v549, %v564
        %v569 = vmul.f32 %v565, %v565
        %v570 = vmul.f32 %v566, %v566
        %v571 = vmul.f32 %v567, %v567
        %v572 = vmul.f32 %v568, %v568
        %573 = vadd.xlane.f32.xlu0 %v569
        %v574 = vpop.xlane.xlu0 %573
        %575 = vadd.xlane.f32.xlu0 %v570
        %v576 = vpop.xlane.xlu0 %575
        %577 = vadd.xlane.f32.xlu0 %v571
        %v578 = vpop.xlane.xlu0 %577
        %579 = vadd.xlane.f32.xlu0 %v572
        %v580 = vpop.xlane.xlu0 %579
        %v581 = vmul.f32 %v574, %v560
        %v582 = vmul.f32 %v576, %v560
        %v583 = vmul.f32 %v578, %v560
        %v584 = vmul.f32 %v580, %v560
        %v585 = vadd.f32 %v581, 1e-05
        %v586 = vadd.f32 %v582, 1e-05
        %v587 = vadd.f32 %v583, 1e-05
        %v588 = vadd.f32 %v584, 1e-05
        %v589 = vrsqrt.pop %v585
        %v590 = vrsqrt.pop %v586
        %v591 = vrsqrt.pop %v587
        %v592 = vrsqrt.pop %v588
        %v593 = vmul.f32 %v565, %v589
        %v594 = vmul.f32 %v566, %v590
        %v595 = vmul.f32 %v567, %v591
        %v596 = vmul.f32 %v568, %v592
        %v598 = vlaneseq
        %v599 = vshrl.u32 %v598, 7
        %v600 = vsub.s32 0, %v599
        %v601 = vrot.slane %v550, %v600
        %v603 = vmul.f32 %v593, %v601
        %v604 = vmul.f32 %v594, %v601
        %v605 = vmul.f32 %v595, %v601
        %v606 = vmul.f32 %v596, %v601
        %v608 = vlaneseq
        %v609 = vshrl.u32 %v608, 7
        %v610 = vsub.s32 0, %v609
        %v611 = vrot.slane %v551, %v610
        %v613 = vadd.f32 %v603, %v611
        %v614 = vadd.f32 %v604, %v611
        %v615 = vadd.f32 %v605, %v611
        %v616 = vadd.f32 %v606, %v611
        %v617 = vpack.c.bf16 %v614, %v613
        %v618 = vpack.c.bf16 %v616, %v615
        %v619 = vld [vmem:[#allocation8] sm:$0xff]
        %v620 = vld [vmem:[#allocation8 + $0x8] sm:$0xf]
        %v621 = vld [vmem:[#allocation8 + $0xc] sm:$0xff]
        %v622 = vld [vmem:[#allocation8 + $0x14] sm:$0xf]
        %v623 = vld [vmem:[#allocation8 + $0x18] sm:$0xff]
        %v624 = vld [vmem:[#allocation8 + $0x20] sm:$0xf]
        %v625 = vld [vmem:[#allocation8 + $0x24] sm:$0xff]
        %v626 = vld [vmem:[#allocation8 + $0x2c] sm:$0xf]
        %v627 = vld [vmem:[#allocation8 + $0x30] sm:$0xff]
        %v628 = vld [vmem:[#allocation8 + $0x38] sm:$0xf]
        %v629 = vld [vmem:[#allocation8 + $0x3c] sm:$0xff]
        %v630 = vld [vmem:[#allocation8 + $0x44] sm:$0xf]
        %v631 = vld [vmem:[#allocation8 + $0x48] sm:$0xff]
        %v632 = vld [vmem:[#allocation8 + $0x50] sm:$0xf]
        %v633 = vld [vmem:[#allocation8 + $0x54] sm:$0xff]
        %v634 = vld [vmem:[#allocation8 + $0x5c] sm:$0xf]
        %v635 = vld [vmem:[#allocation8 + $0x60] sm:$0xff]
        %v636 = vld [vmem:[#allocation8 + $0x68] sm:$0xf]
        %v637 = vld [vmem:[#allocation8 + $0x6c] sm:$0xff]
        %v638 = vld [vmem:[#allocation8 + $0x74] sm:$0xf]
        %v639 = vld [vmem:[#allocation8 + $0x78] sm:$0xff]
        %v640 = vld [vmem:[#allocation8 + $0x80] sm:$0xf]
        %v641 = vld [vmem:[#allocation8 + $0x84] sm:$0xff]
        %v642 = vld [vmem:[#allocation8 + $0x8c] sm:$0xf]
        %v643 = vld [vmem:[#allocation8 + $0x90] sm:$0xff]
        %v644 = vld [vmem:[#allocation8 + $0x98] sm:$0xf]
        %v645 = vld [vmem:[#allocation8 + $0x9c] sm:$0xff]
        %v646 = vld [vmem:[#allocation8 + $0xa4] sm:$0xf]
        %v647 = vld [vmem:[#allocation8 + $0xa8] sm:$0xff]
        %v648 = vld [vmem:[#allocation8 + $0xb0] sm:$0xf]
        %v649 = vld [vmem:[#allocation8 + $0xb4] sm:$0xff]
        %v650 = vld [vmem:[#allocation8 + $0xbc] sm:$0xf]
        %v651 = vld [vmem:[%s4] sm:$0x7]
        %v653 = vlaneseq
        %v654 = vshrl.u32 %v653, 7
        %v655 = vsub.s32 0, %v654
        %v656 = vrot.slane %v651, %v655
        %v657 = vlaneseq
        %v658 = vshrl.u32 %v657, 7
        %v659 = vsub.s32 1, %v658
        %v660 = vrot.slane %v651, %v659
        %v661 = vlaneseq
        %v662 = vshrl.u32 %v661, 7
        %v663 = vsub.s32 2, %v662
        %v664 = vrot.slane %v651, %v663
        %v700 = vunpack.c.l.b16 %v619
        %v701 = vunpack.c.h.b16 %v619
        %v702 = vunpack.c.l.b16 %v620
        %v703 = vunpack.c.l.b16 %v621
        %v704 = vunpack.c.h.b16 %v621
        %v705 = vunpack.c.l.b16 %v622
        %v706 = vunpack.c.l.b16 %v623
        %v707 = vunpack.c.h.b16 %v623
        %v708 = vunpack.c.l.b16 %v624
        %v709 = vunpack.c.l.b16 %v625
        %v710 = vunpack.c.h.b16 %v625
        %v711 = vunpack.c.l.b16 %v626
        %v712 = vunpack.c.l.b16 %v627
        %v713 = vunpack.c.h.b16 %v627
        %v714 = vunpack.c.l.b16 %v628
        %v715 = vunpack.c.l.b16 %v629
        %v716 = vunpack.c.h.b16 %v629
        %v717 = vunpack.c.l.b16 %v630
        %v718 = vunpack.c.l.b16 %v631
        %v719 = vunpack.c.h.b16 %v631
        %v720 = vunpack.c.l.b16 %v632
        %v721 = vunpack.c.l.b16 %v633
        %v722 = vunpack.c.h.b16 %v633
        %v723 = vunpack.c.l.b16 %v634
        %v724 = vunpack.c.l.b16 %v635
        %v725 = vunpack.c.h.b16 %v635
        %v726 = vunpack.c.l.b16 %v636
        %v727 = vunpack.c.l.b16 %v637
        %v728 = vunpack.c.h.b16 %v637
        %v729 = vunpack.c.l.b16 %v638
        %v730 = vunpack.c.l.b16 %v639
        %v731 = vunpack.c.h.b16 %v639
        %v732 = vunpack.c.l.b16 %v640
        %v733 = vunpack.c.l.b16 %v641
        %v734 = vunpack.c.h.b16 %v641
        %v735 = vunpack.c.l.b16 %v642
        %v736 = vunpack.c.l.b16 %v643
        %v737 = vunpack.c.h.b16 %v643
        %v738 = vunpack.c.l.b16 %v644
        %v739 = vunpack.c.l.b16 %v645
        %v740 = vunpack.c.h.b16 %v645
        %v741 = vunpack.c.l.b16 %v646
        %v742 = vunpack.c.l.b16 %v647
        %v743 = vunpack.c.h.b16 %v647
        %v744 = vunpack.c.l.b16 %v648
        %v745 = vunpack.c.l.b16 %v649
        %v746 = vunpack.c.h.b16 %v649
        %v747 = vunpack.c.l.b16 %v650
        %v748 = vpack.c.b16 %v703, %v700
        %v749 = vpack.c.b16 %v704, %v701
        %v750 = vpack.c.b16 %v705, %v702
        %v751 = vpack.c.b16 %v709, %v706
        %v752 = vpack.c.b16 %v710, %v707
        %v753 = vpack.c.b16 %v711, %v708
        %v754 = vpack.c.b16 %v715, %v712
        %v755 = vpack.c.b16 %v716, %v713
        %v756 = vpack.c.b16 %v717, %v714
        %v757 = vpack.c.b16 %v721, %v718
        %v758 = vpack.c.b16 %v722, %v719
        %v759 = vpack.c.b16 %v723, %v720
        %v760 = vpack.c.b16 %v727, %v724
        %v761 = vpack.c.b16 %v728, %v725
        %v762 = vpack.c.b16 %v729, %v726
        %v763 = vpack.c.b16 %v733, %v730
        %v764 = vpack.c.b16 %v734, %v731
        %v765 = vpack.c.b16 %v735, %v732
        %v766 = vpack.c.b16 %v739, %v736
        %v767 = vpack.c.b16 %v740, %v737
        %v768 = vpack.c.b16 %v741, %v738
        %v769 = vpack.c.b16 %v745, %v742
        %v770 = vpack.c.b16 %v746, %v743
        %v771 = vpack.c.b16 %v747, %v744
        %796 = vmatprep.subr.bf16.mxu0 %v749
        %797 = vmatpush1.bf16.msra.mxu0 %v748
        %798 = vmatprep.subr.bf16.mxu0 %v752
        %799 = vmatpush1.bf16.msra.mxu0 %v751
        %800 = vmatprep.subr.bf16.mxu0 %v755
        %801 = vmatpush1.bf16.msra.mxu0 %v754
        %802 = vmatprep.subr.bf16.mxu0 %v758
        %803 = vmatpush1.bf16.msra.mxu0 %v757
        %804 = vmatprep.subr.bf16.mxu0 %v761
        %805 = vmatpush1.bf16.msra.mxu0 %v760
        %806 = vmatprep.subr.bf16.mxu0 %v764
        %807 = vmatpush1.bf16.msra.mxu0 %v763
        %808 = vmatprep.subr.bf16.mxu0 %v767
        %809 = vmatpush1.bf16.msra.mxu0 %v766
        %810 = vmatprep.subr.bf16.mxu0 %v770
        %811 = vmatpush1.bf16.msra.mxu0 %v769
        %812 = vmatprep.subr.bf16.mxu0 0
        %813 = vmatpush1.bf16.msra.mxu0 0
        %814 = vmatprep.subr.bf16.mxu0 0
        %815 = vmatpush1.bf16.msra.mxu0 0
        %816 = vmatprep.subr.bf16.mxu0 0
        %817 = vmatpush1.bf16.msra.mxu0 0
        %818 = vmatprep.subr.bf16.mxu0 0
        %819 = vmatpush1.bf16.msra.mxu0 0
        %820 = vmatprep.subr.bf16.mxu0 0
        %821 = vmatpush1.bf16.msra.mxu0 0
        %822 = vmatprep.subr.bf16.mxu0 0
        %823 = vmatpush1.bf16.msra.mxu0 0
        %824 = vmatprep.subr.bf16.mxu0 0
        %825 = vmatpush1.bf16.msra.mxu0 0
        %826 = vmatprep.subr.bf16.mxu0 0
        %827 = vmatpush1.bf16.msra.mxu0 0
        %828 = vmatprep.mubr.bf16.mxu0 0
        %829 = vmatmul.mubr.bf16.gmra.mrb[0].mxu0 %v617
        %v830 = vpop.f32.mrb[0].mxu0
        %v831 = vadd.f32 %v656, %v830
        %v832 = vpop.f32.mrb[0].mxu0
        %v833 = vadd.f32 %v660, %v832
        %v834 = vpop.f32.mrb[0].mxu0
        %v835 = vadd.f32 %v656, %v834
        %v836 = vpop.f32.mrb[0].mxu0
        %v837 = vadd.f32 %v660, %v836
        %838 = vmatprep.mubr.bf16.mxu0 0
        %839 = vmatmul.mubr.bf16.gmra.mrb[0].mxu0 %v618
        %v840 = vpop.f32.mrb[0].mxu0
        %v841 = vadd.f32 %v656, %v840
        %v842 = vpop.f32.mrb[0].mxu0
        %v843 = vadd.f32 %v660, %v842
        %v844 = vpop.f32.mrb[0].mxu0
        %v845 = vadd.f32 %v656, %v844
        %v846 = vpop.f32.mrb[0].mxu0
        %v847 = vadd.f32 %v660, %v846
        %848 = vdwg.mxu0
        %849 = vmatprep.subr.bf16.mxu0 0
        %850 = vmatpush1.bf16.msra.mxu0 %v750
        %851 = vmatprep.subr.bf16.mxu0 0
        %852 = vmatpush1.bf16.msra.mxu0 %v753
        %853 = vmatprep.subr.bf16.mxu0 0
        %854 = vmatpush1.bf16.msra.mxu0 %v756
        %855 = vmatprep.subr.bf16.mxu0 0
        %856 = vmatpush1.bf16.msra.mxu0 %v759
        %857 = vmatprep.subr.bf16.mxu0 0
        %858 = vmatpush1.bf16.msra.mxu0 %v762
        %859 = vmatprep.subr.bf16.mxu0 0
        %860 = vmatpush1.bf16.msra.mxu0 %v765
        %861 = vmatprep.subr.bf16.mxu0 0
        %862 = vmatpush1.bf16.msra.mxu0 %v768
        %863 = vmatprep.subr.bf16.mxu0 0
        %864 = vmatpush1.bf16.msra.mxu0 %v771
        %865 = vmatprep.subr.bf16.mxu0 0
        %866 = vmatpush1.bf16.msra.mxu0 0
        %867 = vmatprep.subr.bf16.mxu0 0
        %868 = vmatpush1.bf16.msra.mxu0 0
        %869 = vmatprep.subr.bf16.mxu0 0
        %870 = vmatpush1.bf16.msra.mxu0 0
        %871 = vmatprep.subr.bf16.mxu0 0
        %872 = vmatpush1.bf16.msra.mxu0 0
        %873 = vmatprep.subr.bf16.mxu0 0
        %874 = vmatpush1.bf16.msra.mxu0 0
        %875 = vmatprep.subr.bf16.mxu0 0
        %876 = vmatpush1.bf16.msra.mxu0 0
        %877 = vmatprep.subr.bf16.mxu0 0
        %878 = vmatpush1.bf16.msra.mxu0 0
        %879 = vmatprep.subr.bf16.mxu0 0
        %880 = vmatpush1.bf16.msra.mxu0 0
        %881 = vmatprep.mubr.bf16.mxu0 0
        %882 = vmatmul.mubr.bf16.gmra.mrb[0].mxu0 %v617
        %v883 = vpop.f32.mrb[0].mxu0
        %v884 = vadd.f32 %v664, %v883
        %v885 = vpop.f32.mrb[0].mxu0
        %v886 = vpop.f32.mrb[0].mxu0
        %v887 = vadd.f32 %v664, %v886
        %v888 = vpop.f32.mrb[0].mxu0
        %889 = vmatprep.mubr.bf16.mxu0 0
        %890 = vmatmul.mubr.bf16.gmra.mrb[0].mxu0 %v618
        %v891 = vpop.f32.mrb[0].mxu0
        %v892 = vadd.f32 %v664, %v891
        %v893 = vpop.f32.mrb[0].mxu0
        %v894 = vpop.f32.mrb[0].mxu0
        %v895 = vadd.f32 %v664, %v894
        %v896 = vpop.f32.mrb[0].mxu0
        %897 = vdwg.mxu0
        %v898 = vpack.c.bf16 %v835, %v831
        %v899 = vpack.c.bf16 %v845, %v841
        %v900 = vpack.c.bf16 %v837, %v833
        %v901 = vpack.c.bf16 %v847, %v843
        %v902 = vpack.c.bf16 %v887, %v884
        %v903 = vpack.c.bf16 %v895, %v892
        %906 = vrot.lane.b32.xlu0 %v898, 96
        %v907 = vpop.permute.xlu0 %906
        %908 = vrot.lane.b32.xlu0 %v899, 96
        %v909 = vpop.permute.xlu0 %908
        %910 = vrot.lane.b32.xlu0 %v898, 64
        %v911 = vpop.permute.xlu0 %910
        %912 = vrot.lane.b32.xlu0 %v899, 64
        %v913 = vpop.permute.xlu0 %912
        %914 = vrot.lane.b32.xlu0 %v898, 32
        %v915 = vpop.permute.xlu0 %914
        %916 = vrot.lane.b32.xlu0 %v899, 32
        %v917 = vpop.permute.xlu0 %916
        %920 = vrot.lane.b32.xlu0 %v900, 96
        %v921 = vpop.permute.xlu0 %920
        %922 = vrot.lane.b32.xlu0 %v901, 96
        %v923 = vpop.permute.xlu0 %922
        %924 = vrot.lane.b32.xlu0 %v900, 64
        %v925 = vpop.permute.xlu0 %924
        %926 = vrot.lane.b32.xlu0 %v901, 64
        %v927 = vpop.permute.xlu0 %926
        %928 = vrot.lane.b32.xlu0 %v900, 32
        %v929 = vpop.permute.xlu0 %928
        %930 = vrot.lane.b32.xlu0 %v901, 32
        %v931 = vpop.permute.xlu0 %930
        %934 = vrot.lane.b32.xlu0 %v902, 96
        %v935 = vpop.permute.xlu0 %934
        %936 = vrot.lane.b32.xlu0 %v903, 96
        %v937 = vpop.permute.xlu0 %936
        %940 = vrot.lane.b32.xlu0 %v902, 64
        %v941 = vpop.permute.xlu0 %940
        %942 = vrot.lane.b32.xlu0 %v903, 64
        %v943 = vpop.permute.xlu0 %942
        %946 = vrot.lane.b32.xlu0 %v902, 32
        %v947 = vpop.permute.xlu0 %946
        %948 = vrot.lane.b32.xlu0 %v903, 32
        %v949 = vpop.permute.xlu0 %948
        %vm952 = vcmask 261120
        %v954 = vsel %vm952, %v898, 0
        %v957 = vsel %vm952, %v900, 0
        %959 = vmatprep.subr.bf16.mxu0 0
        %960 = vmatpush1.bf16.xpose.msra.mxu0 %v957
        %961 = vmatprep.subr.bf16.mxu0 0
        %962 = vmatpush1.bf16.xpose.msra.mxu0 0
        %963 = vmatprep.subr.bf16.mxu0 0
        %964 = vmatpush1.bf16.xpose.msra.mxu0 0
        %965 = vmatprep.subr.bf16.mxu0 0
        %966 = vmatpush1.bf16.xpose.msra.mxu0 0
        %967 = vmatprep.subr.bf16.mxu0 0
        %968 = vmatpush1.bf16.xpose.msra.mxu0 0
        %969 = vmatprep.subr.bf16.mxu0 0
        %970 = vmatpush1.bf16.xpose.msra.mxu0 0
        %971 = vmatprep.subr.bf16.mxu0 0
        %972 = vmatpush1.bf16.xpose.msra.mxu0 0
        %973 = vmatprep.subr.bf16.mxu0 0
        %974 = vmatpush1.bf16.xpose.msra.mxu0 0
        %975 = vmatprep.subr.bf16.mxu0 0
        %976 = vmatpush1.bf16.xpose.msra.mxu0 0
        %977 = vmatprep.subr.bf16.mxu0 0
        %978 = vmatpush1.bf16.xpose.msra.mxu0 0
        %979 = vmatprep.subr.bf16.mxu0 0
        %980 = vmatpush1.bf16.xpose.msra.mxu0 0
        %981 = vmatprep.subr.bf16.mxu0 0
        %982 = vmatpush1.bf16.xpose.msra.mxu0 0
        %983 = vmatprep.subr.bf16.mxu0 0
        %984 = vmatpush1.bf16.xpose.msra.mxu0 0
        %985 = vmatprep.subr.bf16.mxu0 0
        %986 = vmatpush1.bf16.xpose.msra.mxu0 0
        %987 = vmatprep.subr.bf16.mxu0 0
        %988 = vmatpush1.bf16.xpose.msra.mxu0 0
        %989 = vmatprep.subr.bf16.mxu0 0
        %990 = vmatpush1.bf16.xpose.msra.mxu0 0
        %991 = vmatprep.mubr.bf16.mxu0 0
        %992 = vmatmul.mubr.bf16.gmra.mrb[0].mxu0 %v954
        %v993 = vpop.f32.mrb[0].mxu0
        %v994 = vadd.f32 0.0, %v993
        %v995 = vpop.f32.mrb[0].mxu0
        %v996 = vpop.f32.mrb[0].mxu0
        %v997 = vadd.f32 0.0, %v996
        %v998 = vpop.f32.mrb[0].mxu0
        %999 = vdwg.mxu0
        %v1001 = vsel %vm952, %v899, 0
        %v1004 = vsel %vm952, %v901, 0
        %1006 = vmatprep.subr.bf16.mxu0 0
        %1007 = vmatpush1.bf16.xpose.msra.mxu0 %v1004
        %1008 = vmatprep.subr.bf16.mxu0 0
        %1009 = vmatpush1.bf16.xpose.msra.mxu0 0
        %1010 = vmatprep.subr.bf16.mxu0 0
        %1011 = vmatpush1.bf16.xpose.msra.mxu0 0
        %1012 = vmatprep.subr.bf16.mxu0 0
        %1013 = vmatpush1.bf16.xpose.msra.mxu0 0
        %1014 = vmatprep.subr.bf16.mxu0 0
        %1015 = vmatpush1.bf16.xpose.msra.mxu0 0
        %1016 = vmatprep.subr.bf16.mxu0 0
        %1017 = vmatpush1.bf16.xpose.msra.mxu0 0
        %1018 = vmatprep.subr.bf16.mxu0 0
        %1019 = vmatpush1.bf16.xpose.msra.mxu0 0
        %1020 = vmatprep.subr.bf16.mxu0 0
        %1021 = vmatpush1.bf16.xpose.msra.mxu0 0
        %1022 = vmatprep.subr.bf16.mxu0 0
        %1023 = vmatpush1.bf16.xpose.msra.mxu0 0
        %1024 = vmatprep.subr.bf16.mxu0 0
        %1025 = vmatpush1.bf16.xpose.msra.mxu0 0
        %1026 = vmatprep.subr.bf16.mxu0 0
        %1027 = vmatpush1.bf16.xpose.msra.mxu0 0
        %1028 = vmatprep.subr.bf16.mxu0 0
        %1029 = vmatpush1.bf16.xpose.msra.mxu0 0
        %1030 = vmatprep.subr.bf16.mxu0 0
        %1031 = vmatpush1.bf16.xpose.msra.mxu0 0
        %1032 = vmatprep.subr.bf16.mxu0 0
        %1033 = vmatpush1.bf16.xpose.msra.mxu0 0
        %1034 = vmatprep.subr.bf16.mxu0 0
        %1035 = vmatpush1.bf16.xpose.msra.mxu0 0
        %1036 = vmatprep.subr.bf16.mxu0 0
        %1037 = vmatpush1.bf16.xpose.msra.mxu0 0
        %1038 = vmatprep.mubr.bf16.mxu0 0
        %1039 = vmatmul.mubr.bf16.gmra.mrb[0].mxu0 %v1001
        %v1040 = vpop.f32.mrb[0].mxu0
        %v1041 = vadd.f32 0.0, %v1040
        %v1042 = vpop.f32.mrb[0].mxu0
        %v1043 = vpop.f32.mrb[0].mxu0
        %v1044 = vadd.f32 0.0, %v1043
        %v1045 = vpop.f32.mrb[0].mxu0
        %1046 = vdwg.mxu0
        %v1048 = vsel %vm952, %v907, 0
        %v1051 = vsel %vm952, %v921, 0
        %1053 = vmatprep.subr.bf16.mxu0 0
        %1054 = vmatpush1.bf16.xpose.msra.mxu0 %v1051
        %1055 = vmatprep.subr.bf16.mxu0 0
        %1056 = vmatpush1.bf16.xpose.msra.mxu0 0
        %1057 = vmatprep.subr.bf16.mxu0 0
        %1058 = vmatpush1.bf16.xpose.msra.mxu0 0
        %1059 = vmatprep.subr.bf16.mxu0 0
        %1060 = vmatpush1.bf16.xpose.msra.mxu0 0
        %1061 = vmatprep.subr.bf16.mxu0 0
        %1062 = vmatpush1.bf16.xpose.msra.mxu0 0
        %1063 = vmatprep.subr.bf16.mxu0 0
        %1064 = vmatpush1.bf16.xpose.msra.mxu0 0
        %1065 = vmatprep.subr.bf16.mxu0 0
        %1066 = vmatpush1.bf16.xpose.msra.mxu0 0
        %1067 = vmatprep.subr.bf16.mxu0 0
        %1068 = vmatpush1.bf16.xpose.msra.mxu0 0
        %1069 = vmatprep.subr.bf16.mxu0 0
        %1070 = vmatpush1.bf16.xpose.msra.mxu0 0
        %1071 = vmatprep.subr.bf16.mxu0 0
        %1072 = vmatpush1.bf16.xpose.msra.mxu0 0
        %1073 = vmatprep.subr.bf16.mxu0 0
        %1074 = vmatpush1.bf16.xpose.msra.mxu0 0
        %1075 = vmatprep.subr.bf16.mxu0 0
        %1076 = vmatpush1.bf16.xpose.msra.mxu0 0
        %1077 = vmatprep.subr.bf16.mxu0 0
        %1078 = vmatpush1.bf16.xpose.msra.mxu0 0
        %1079 = vmatprep.subr.bf16.mxu0 0
        %1080 = vmatpush1.bf16.xpose.msra.mxu0 0
        %1081 = vmatprep.subr.bf16.mxu0 0
        %1082 = vmatpush1.bf16.xpose.msra.mxu0 0
        %1083 = vmatprep.subr.bf16.mxu0 0
        %1084 = vmatpush1.bf16.xpose.msra.mxu0 0
        %1085 = vmatprep.mubr.bf16.mxu0 0
        %1086 = vmatmul.mubr.bf16.gmra.mrb[0].mxu0 %v1048
        %v1087 = vpop.f32.mrb[0].mxu0
        %v1088 = vadd.f32 0.0, %v1087
        %v1089 = vpop.f32.mrb[0].mxu0
        %v1090 = vpop.f32.mrb[0].mxu0
        %v1091 = vadd.f32 0.0, %v1090
        %v1092 = vpop.f32.mrb[0].mxu0
        %1093 = vdwg.mxu0
        %v1095 = vsel %vm952, %v909, 0
        %v1098 = vsel %vm952, %v923, 0
        %1100 = vmatprep.subr.bf16.mxu0 0
        %1101 = vmatpush1.bf16.xpose.msra.mxu0 %v1098
        %1102 = vmatprep.subr.bf16.mxu0 0
        %1103 = vmatpush1.bf16.xpose.msra.mxu0 0
        %1104 = vmatprep.subr.bf16.mxu0 0
        %1105 = vmatpush1.bf16.xpose.msra.mxu0 0
        %1106 = vmatprep.subr.bf16.mxu0 0
        %1107 = vmatpush1.bf16.xpose.msra.mxu0 0
        %1108 = vmatprep.subr.bf16.mxu0 0
        %1109 = vmatpush1.bf16.xpose.msra.mxu0 0
        %1110 = vmatprep.subr.bf16.mxu0 0
        %1111 = vmatpush1.bf16.xpose.msra.mxu0 0
        %1112 = vmatprep.subr.bf16.mxu0 0
        %1113 = vmatpush1.bf16.xpose.msra.mxu0 0
        %1114 = vmatprep.subr.bf16.mxu0 0
        %1115 = vmatpush1.bf16.xpose.msra.mxu0 0
        %1116 = vmatprep.subr.bf16.mxu0 0
        %1117 = vmatpush1.bf16.xpose.msra.mxu0 0
        %1118 = vmatprep.subr.bf16.mxu0 0
        %1119 = vmatpush1.bf16.xpose.msra.mxu0 0
        %1120 = vmatprep.subr.bf16.mxu0 0
        %1121 = vmatpush1.bf16.xpose.msra.mxu0 0
        %1122 = vmatprep.subr.bf16.mxu0 0
        %1123 = vmatpush1.bf16.xpose.msra.mxu0 0
        %1124 = vmatprep.subr.bf16.mxu0 0
        %1125 = vmatpush1.bf16.xpose.msra.mxu0 0
        %1126 = vmatprep.subr.bf16.mxu0 0
        %1127 = vmatpush1.bf16.xpose.msra.mxu0 0
        %1128 = vmatprep.subr.bf16.mxu0 0
        %1129 = vmatpush1.bf16.xpose.msra.mxu0 0
        %1130 = vmatprep.subr.bf16.mxu0 0
        %1131 = vmatpush1.bf16.xpose.msra.mxu0 0
        %1132 = vmatprep.mubr.bf16.mxu0 0
        %1133 = vmatmul.mubr.bf16.gmra.mrb[0].mxu0 %v1095
        %v1134 = vpop.f32.mrb[0].mxu0
        %v1135 = vadd.f32 0.0, %v1134
        %v1136 = vpop.f32.mrb[0].mxu0
        %v1137 = vpop.f32.mrb[0].mxu0
        %v1138 = vadd.f32 0.0, %v1137
        %v1139 = vpop.f32.mrb[0].mxu0
        %1140 = vdwg.mxu0
        %v1142 = vsel %vm952, %v911, 0
        %v1145 = vsel %vm952, %v925, 0
        %1147 = vmatprep.subr.bf16.mxu0 0
        %1148 = vmatpush1.bf16.xpose.msra.mxu0 %v1145
        %1149 = vmatprep.subr.bf16.mxu0 0
        %1150 = vmatpush1.bf16.xpose.msra.mxu0 0
        %1151 = vmatprep.subr.bf16.mxu0 0
        %1152 = vmatpush1.bf16.xpose.msra.mxu0 0
        %1153 = vmatprep.subr.bf16.mxu0 0
        %1154 = vmatpush1.bf16.xpose.msra.mxu0 0
        %1155 = vmatprep.subr.bf16.mxu0 0
        %1156 = vmatpush1.bf16.xpose.msra.mxu0 0
        %1157 = vmatprep.subr.bf16.mxu0 0
        %1158 = vmatpush1.bf16.xpose.msra.mxu0 0
        %1159 = vmatprep.subr.bf16.mxu0 0
        %1160 = vmatpush1.bf16.xpose.msra.mxu0 0
        %1161 = vmatprep.subr.bf16.mxu0 0
        %1162 = vmatpush1.bf16.xpose.msra.mxu0 0
        %1163 = vmatprep.subr.bf16.mxu0 0
        %1164 = vmatpush1.bf16.xpose.msra.mxu0 0
        %1165 = vmatprep.subr.bf16.mxu0 0
        %1166 = vmatpush1.bf16.xpose.msra.mxu0 0
        %1167 = vmatprep.subr.bf16.mxu0 0
        %1168 = vmatpush1.bf16.xpose.msra.mxu0 0
        %1169 = vmatprep.subr.bf16.mxu0 0
        %1170 = vmatpush1.bf16.xpose.msra.mxu0 0
        %1171 = vmatprep.subr.bf16.mxu0 0
        %1172 = vmatpush1.bf16.xpose.msra.mxu0 0
        %1173 = vmatprep.subr.bf16.mxu0 0
        %1174 = vmatpush1.bf16.xpose.msra.mxu0 0
        %1175 = vmatprep.subr.bf16.mxu0 0
        %1176 = vmatpush1.bf16.xpose.msra.mxu0 0
        %1177 = vmatprep.subr.bf16.mxu0 0
        %1178 = vmatpush1.bf16.xpose.msra.mxu0 0
        %1179 = vmatprep.mubr.bf16.mxu0 0
        %1180 = vmatmul.mubr.bf16.gmra.mrb[0].mxu0 %v1142
        %v1181 = vpop.f32.mrb[0].mxu0
        %v1182 = vadd.f32 0.0, %v1181
        %v1183 = vpop.f32.mrb[0].mxu0
        %v1184 = vpop.f32.mrb[0].mxu0
        %v1185 = vadd.f32 0.0, %v1184
        %v1186 = vpop.f32.mrb[0].mxu0
        %1187 = vdwg.mxu0
        %v1189 = vsel %vm952, %v913, 0
        %v1192 = vsel %vm952, %v927, 0
        %1194 = vmatprep.subr.bf16.mxu0 0
        %1195 = vmatpush1.bf16.xpose.msra.mxu0 %v1192
        %1196 = vmatprep.subr.bf16.mxu0 0
        %1197 = vmatpush1.bf16.xpose.msra.mxu0 0
        %1198 = vmatprep.subr.bf16.mxu0 0
        %1199 = vmatpush1.bf16.xpose.msra.mxu0 0
        %1200 = vmatprep.subr.bf16.mxu0 0
        %1201 = vmatpush1.bf16.xpose.msra.mxu0 0
        %1202 = vmatprep.subr.bf16.mxu0 0
        %1203 = vmatpush1.bf16.xpose.msra.mxu0 0
        %1204 = vmatprep.subr.bf16.mxu0 0
        %1205 = vmatpush1.bf16.xpose.msra.mxu0 0
        %1206 = vmatprep.subr.bf16.mxu0 0
        %1207 = vmatpush1.bf16.xpose.msra.mxu0 0
        %1208 = vmatprep.subr.bf16.mxu0 0
        %1209 = vmatpush1.bf16.xpose.msra.mxu0 0
        %1210 = vmatprep.subr.bf16.mxu0 0
        %1211 = vmatpush1.bf16.xpose.msra.mxu0 0
        %1212 = vmatprep.subr.bf16.mxu0 0
        %1213 = vmatpush1.bf16.xpose.msra.mxu0 0
        %1214 = vmatprep.subr.bf16.mxu0 0
        %1215 = vmatpush1.bf16.xpose.msra.mxu0 0
        %1216 = vmatprep.subr.bf16.mxu0 0
        %1217 = vmatpush1.bf16.xpose.msra.mxu0 0
        %1218 = vmatprep.subr.bf16.mxu0 0
        %1219 = vmatpush1.bf16.xpose.msra.mxu0 0
        %1220 = vmatprep.subr.bf16.mxu0 0
        %1221 = vmatpush1.bf16.xpose.msra.mxu0 0
        %1222 = vmatprep.subr.bf16.mxu0 0
        %1223 = vmatpush1.bf16.xpose.msra.mxu0 0
        %1224 = vmatprep.subr.bf16.mxu0 0
        %1225 = vmatpush1.bf16.xpose.msra.mxu0 0
        %1226 = vmatprep.mubr.bf16.mxu0 0
        %1227 = vmatmul.mubr.bf16.gmra.mrb[0].mxu0 %v1189
        %v1228 = vpop.f32.mrb[0].mxu0
        %v1229 = vadd.f32 0.0, %v1228
        %v1230 = vpop.f32.mrb[0].mxu0
        %v1231 = vpop.f32.mrb[0].mxu0
        %v1232 = vadd.f32 0.0, %v1231
        %v1233 = vpop.f32.mrb[0].mxu0
        %1234 = vdwg.mxu0
        %v1236 = vsel %vm952, %v915, 0
        %v1239 = vsel %vm952, %v929, 0
        %1241 = vmatprep.subr.bf16.mxu0 0
        %1242 = vmatpush1.bf16.xpose.msra.mxu0 %v1239
        %1243 = vmatprep.subr.bf16.mxu0 0
        %1244 = vmatpush1.bf16.xpose.msra.mxu0 0
        %1245 = vmatprep.subr.bf16.mxu0 0
        %1246 = vmatpush1.bf16.xpose.msra.mxu0 0
        %1247 = vmatprep.subr.bf16.mxu0 0
        %1248 = vmatpush1.bf16.xpose.msra.mxu0 0
        %1249 = vmatprep.subr.bf16.mxu0 0
        %1250 = vmatpush1.bf16.xpose.msra.mxu0 0
        %1251 = vmatprep.subr.bf16.mxu0 0
        %1252 = vmatpush1.bf16.xpose.msra.mxu0 0
        %1253 = vmatprep.subr.bf16.mxu0 0
        %1254 = vmatpush1.bf16.xpose.msra.mxu0 0
        %1255 = vmatprep.subr.bf16.mxu0 0
        %1256 = vmatpush1.bf16.xpose.msra.mxu0 0
        %1257 = vmatprep.subr.bf16.mxu0 0
        %1258 = vmatpush1.bf16.xpose.msra.mxu0 0
        %1259 = vmatprep.subr.bf16.mxu0 0
        %1260 = vmatpush1.bf16.xpose.msra.mxu0 0
        %1261 = vmatprep.subr.bf16.mxu0 0
        %1262 = vmatpush1.bf16.xpose.msra.mxu0 0
        %1263 = vmatprep.subr.bf16.mxu0 0
        %1264 = vmatpush1.bf16.xpose.msra.mxu0 0
        %1265 = vmatprep.subr.bf16.mxu0 0
        %1266 = vmatpush1.bf16.xpose.msra.mxu0 0
        %1267 = vmatprep.subr.bf16.mxu0 0
        %1268 = vmatpush1.bf16.xpose.msra.mxu0 0
        %1269 = vmatprep.subr.bf16.mxu0 0
        %1270 = vmatpush1.bf16.xpose.msra.mxu0 0
        %1271 = vmatprep.subr.bf16.mxu0 0
        %1272 = vmatpush1.bf16.xpose.msra.mxu0 0
        %1273 = vmatprep.mubr.bf16.mxu0 0
        %1274 = vmatmul.mubr.bf16.gmra.mrb[0].mxu0 %v1236
        %v1275 = vpop.f32.mrb[0].mxu0
        %v1276 = vadd.f32 0.0, %v1275
        %v1277 = vpop.f32.mrb[0].mxu0
        %v1278 = vpop.f32.mrb[0].mxu0
        %v1279 = vadd.f32 0.0, %v1278
        %v1280 = vpop.f32.mrb[0].mxu0
        %1281 = vdwg.mxu0
        %v1283 = vsel %vm952, %v917, 0
        %v1286 = vsel %vm952, %v931, 0
        %1288 = vmatprep.subr.bf16.mxu0 0
        %1289 = vmatpush1.bf16.xpose.msra.mxu0 %v1286
        %1290 = vmatprep.subr.bf16.mxu0 0
        %1291 = vmatpush1.bf16.xpose.msra.mxu0 0
        %1292 = vmatprep.subr.bf16.mxu0 0
        %1293 = vmatpush1.bf16.xpose.msra.mxu0 0
        %1294 = vmatprep.subr.bf16.mxu0 0
        %1295 = vmatpush1.bf16.xpose.msra.mxu0 0
        %1296 = vmatprep.subr.bf16.mxu0 0
        %1297 = vmatpush1.bf16.xpose.msra.mxu0 0
        %1298 = vmatprep.subr.bf16.mxu0 0
        %1299 = vmatpush1.bf16.xpose.msra.mxu0 0
        %1300 = vmatprep.subr.bf16.mxu0 0
        %1301 = vmatpush1.bf16.xpose.msra.mxu0 0
        %1302 = vmatprep.subr.bf16.mxu0 0
        %1303 = vmatpush1.bf16.xpose.msra.mxu0 0
        %1304 = vmatprep.subr.bf16.mxu0 0
        %1305 = vmatpush1.bf16.xpose.msra.mxu0 0
        %1306 = vmatprep.subr.bf16.mxu0 0
        %1307 = vmatpush1.bf16.xpose.msra.mxu0 0
        %1308 = vmatprep.subr.bf16.mxu0 0
        %1309 = vmatpush1.bf16.xpose.msra.mxu0 0
        %1310 = vmatprep.subr.bf16.mxu0 0
        %1311 = vmatpush1.bf16.xpose.msra.mxu0 0
        %1312 = vmatprep.subr.bf16.mxu0 0
        %1313 = vmatpush1.bf16.xpose.msra.mxu0 0
        %1314 = vmatprep.subr.bf16.mxu0 0
        %1315 = vmatpush1.bf16.xpose.msra.mxu0 0
        %1316 = vmatprep.subr.bf16.mxu0 0
        %1317 = vmatpush1.bf16.xpose.msra.mxu0 0
        %1318 = vmatprep.subr.bf16.mxu0 0
        %1319 = vmatpush1.bf16.xpose.msra.mxu0 0
        %1320 = vmatprep.mubr.bf16.mxu0 0
        %1321 = vmatmul.mubr.bf16.gmra.mrb[0].mxu0 %v1283
        %v1322 = vpop.f32.mrb[0].mxu0
        %v1323 = vadd.f32 0.0, %v1322
        %v1324 = vpop.f32.mrb[0].mxu0
        %v1325 = vpop.f32.mrb[0].mxu0
        %v1326 = vadd.f32 0.0, %v1325
        %v1327 = vpop.f32.mrb[0].mxu0
        %1328 = vdwg.mxu0
        %vm1329 = vcmask 130048
        %v1330 = vsel %vm1329, %v994, -inf
        %1331 = vmax.xlane.f32.xlu0 %v1330
        %v1332 = vpop.xlane.xlu0 %1331
        %v1333 = vsel %vm1329, %v997, -inf
        %1334 = vmax.xlane.f32.xlu0 %v1333
        %v1335 = vpop.xlane.xlu0 %1334
        %v1336 = vsel %vm1329, %v1041, -inf
        %1337 = vmax.xlane.f32.xlu0 %v1336
        %v1338 = vpop.xlane.xlu0 %1337
        %v1339 = vsel %vm1329, %v1044, -inf
        %1340 = vmax.xlane.f32.xlu0 %v1339
        %v1341 = vpop.xlane.xlu0 %1340
        %v1342 = vsel %vm1329, %v1088, -inf
        %1343 = vmax.xlane.f32.xlu0 %v1342
        %v1344 = vpop.xlane.xlu0 %1343
        %v1345 = vsel %vm1329, %v1091, -inf
        %1346 = vmax.xlane.f32.xlu0 %v1345
        %v1347 = vpop.xlane.xlu0 %1346
        %v1348 = vsel %vm1329, %v1135, -inf
        %1349 = vmax.xlane.f32.xlu0 %v1348
        %v1350 = vpop.xlane.xlu0 %1349
        %v1351 = vsel %vm1329, %v1138, -inf
        %1352 = vmax.xlane.f32.xlu0 %v1351
        %v1353 = vpop.xlane.xlu0 %1352
        %v1354 = vsel %vm1329, %v1182, -inf
        %1355 = vmax.xlane.f32.xlu0 %v1354
        %v1356 = vpop.xlane.xlu0 %1355
        %v1357 = vsel %vm1329, %v1185, -inf
        %1358 = vmax.xlane.f32.xlu0 %v1357
        %v1359 = vpop.xlane.xlu0 %1358
        %v1360 = vsel %vm1329, %v1229, -inf
        %1361 = vmax.xlane.f32.xlu0 %v1360
        %v1362 = vpop.xlane.xlu0 %1361
        %v1363 = vsel %vm1329, %v1232, -inf
        %1364 = vmax.xlane.f32.xlu0 %v1363
        %v1365 = vpop.xlane.xlu0 %1364
        %v1366 = vsel %vm1329, %v1276, -inf
        %1367 = vmax.xlane.f32.xlu0 %v1366
        %v1368 = vpop.xlane.xlu0 %1367
        %v1369 = vsel %vm1329, %v1279, -inf
        %1370 = vmax.xlane.f32.xlu0 %v1369
        %v1371 = vpop.xlane.xlu0 %1370
        %v1372 = vsel %vm1329, %v1323, -inf
        %1373 = vmax.xlane.f32.xlu0 %v1372
        %v1374 = vpop.xlane.xlu0 %1373
        %v1375 = vsel %vm1329, %v1326, -inf
        %1376 = vmax.xlane.f32.xlu0 %v1375
        %v1377 = vpop.xlane.xlu0 %1376
        %v1378 = vsub.f32 %v994, %v1332
        %v1379 = vsub.f32 %v997, %v1335
        %v1380 = vsub.f32 %v1041, %v1338
        %v1381 = vsub.f32 %v1044, %v1341
        %v1382 = vsub.f32 %v1088, %v1344
        %v1383 = vsub.f32 %v1091, %v1347
        %v1384 = vsub.f32 %v1135, %v1350
        %v1385 = vsub.f32 %v1138, %v1353
        %v1386 = vsub.f32 %v1182, %v1356
        %v1387 = vsub.f32 %v1185, %v1359
        %v1388 = vsub.f32 %v1229, %v1362
        %v1389 = vsub.f32 %v1232, %v1365
        %v1390 = vsub.f32 %v1276, %v1368
        %v1391 = vsub.f32 %v1279, %v1371
        %v1392 = vsub.f32 %v1323, %v1374
        %v1393 = vsub.f32 %v1326, %v1377
        %v1394 = vmul.f32 %v1378, 1.442695
        %v1395 = vpow.pop %v1394
        %v1396 = vmul.f32 %v1379, 1.442695
        %v1397 = vpow.pop %v1396
        %v1398 = vmul.f32 %v1380, 1.442695
        %v1399 = vpow.pop %v1398
        %v1400 = vmul.f32 %v1381, 1.442695
        %v1401 = vpow.pop %v1400
        %v1402 = vmul.f32 %v1382, 1.442695
        %v1403 = vpow.pop %v1402
        %v1404 = vmul.f32 %v1383, 1.442695
        %v1405 = vpow.pop %v1404
        %v1406 = vmul.f32 %v1384, 1.442695
        %v1407 = vpow.pop %v1406
        %v1408 = vmul.f32 %v1385, 1.442695
        %v1409 = vpow.pop %v1408
        %v1410 = vmul.f32 %v1386, 1.442695
        %v1411 = vpow.pop %v1410
        %v1412 = vmul.f32 %v1387, 1.442695
        %v1413 = vpow.pop %v1412
        %v1414 = vmul.f32 %v1388, 1.442695
        %v1415 = vpow.pop %v1414
        %v1416 = vmul.f32 %v1389, 1.442695
        %v1417 = vpow.pop %v1416
        %v1418 = vmul.f32 %v1390, 1.442695
        %v1419 = vpow.pop %v1418
        %v1420 = vmul.f32 %v1391, 1.442695
        %v1421 = vpow.pop %v1420
        %v1422 = vmul.f32 %v1392, 1.442695
        %v1423 = vpow.pop %v1422
        %v1424 = vmul.f32 %v1393, 1.442695
        %v1425 = vpow.pop %v1424
        %v1426 = vsel %vm1329, %v1395, 0.0
        %1427 = vadd.xlane.f32.xlu0 %v1426
        %v1428 = vpop.xlane.xlu0 %1427
        %v1429 = vsel %vm1329, %v1397, 0.0
        %1430 = vadd.xlane.f32.xlu0 %v1429
        %v1431 = vpop.xlane.xlu0 %1430
        %v1432 = vsel %vm1329, %v1399, 0.0
        %1433 = vadd.xlane.f32.xlu0 %v1432
        %v1434 = vpop.xlane.xlu0 %1433
        %v1435 = vsel %vm1329, %v1401, 0.0
        %1436 = vadd.xlane.f32.xlu0 %v1435
        %v1437 = vpop.xlane.xlu0 %1436
        %v1438 = vsel %vm1329, %v1403, 0.0
        %1439 = vadd.xlane.f32.xlu0 %v1438
        %v1440 = vpop.xlane.xlu0 %1439
        %v1441 = vsel %vm1329, %v1405, 0.0
        %1442 = vadd.xlane.f32.xlu0 %v1441
        %v1443 = vpop.xlane.xlu0 %1442
        %v1444 = vsel %vm1329, %v1407, 0.0
        %1445 = vadd.xlane.f32.xlu0 %v1444
        %v1446 = vpop.xlane.xlu0 %1445
        %v1447 = vsel %vm1329, %v1409, 0.0
        %1448 = vadd.xlane.f32.xlu0 %v1447
        %v1449 = vpop.xlane.xlu0 %1448
        %v1450 = vsel %vm1329, %v1411, 0.0
        %1451 = vadd.xlane.f32.xlu0 %v1450
        %v1452 = vpop.xlane.xlu0 %1451
        %v1453 = vsel %vm1329, %v1413, 0.0
        %1454 = vadd.xlane.f32.xlu0 %v1453
        %v1455 = vpop.xlane.xlu0 %1454
        %v1456 = vsel %vm1329, %v1415, 0.0
        %1457 = vadd.xlane.f32.xlu0 %v1456
        %v1458 = vpop.xlane.xlu0 %1457
        %v1459 = vsel %vm1329, %v1417, 0.0
        %1460 = vadd.xlane.f32.xlu0 %v1459
        %v1461 = vpop.xlane.xlu0 %1460
        %v1462 = vsel %vm1329, %v1419, 0.0
        %1463 = vadd.xlane.f32.xlu0 %v1462
        %v1464 = vpop.xlane.xlu0 %1463
        %v1465 = vsel %vm1329, %v1421, 0.0
        %1466 = vadd.xlane.f32.xlu0 %v1465
        %v1467 = vpop.xlane.xlu0 %1466
        %v1468 = vsel %vm1329, %v1423, 0.0
        %1469 = vadd.xlane.f32.xlu0 %v1468
        %v1470 = vpop.xlane.xlu0 %1469
        %v1471 = vsel %vm1329, %v1425, 0.0
        %1472 = vadd.xlane.f32.xlu0 %v1471
        %v1473 = vpop.xlane.xlu0 %1472
        %v1474 = vrcp.pop %v1428
        %v1475 = vrcp.pop %v1431
        %v1476 = vrcp.pop %v1434
        %v1477 = vrcp.pop %v1437
        %v1478 = vrcp.pop %v1440
        %v1479 = vrcp.pop %v1443
        %v1480 = vrcp.pop %v1446
        %v1481 = vrcp.pop %v1449
        %v1482 = vrcp.pop %v1452
        %v1483 = vrcp.pop %v1455
        %v1484 = vrcp.pop %v1458
        %v1485 = vrcp.pop %v1461
        %v1486 = vrcp.pop %v1464
        %v1487 = vrcp.pop %v1467
        %v1488 = vrcp.pop %v1470
        %v1489 = vrcp.pop %v1473
        %v1490 = vmul.f32 %v1395, %v1474
        %v1491 = vmul.f32 %v1397, %v1475
        %v1492 = vmul.f32 %v1399, %v1476
        %v1493 = vmul.f32 %v1401, %v1477
        %v1494 = vmul.f32 %v1403, %v1478
        %v1495 = vmul.f32 %v1405, %v1479
        %v1496 = vmul.f32 %v1407, %v1480
        %v1497 = vmul.f32 %v1409, %v1481
        %v1498 = vmul.f32 %v1411, %v1482
        %v1499 = vmul.f32 %v1413, %v1483
        %v1500 = vmul.f32 %v1415, %v1484
        %v1501 = vmul.f32 %v1417, %v1485
        %v1502 = vmul.f32 %v1419, %v1486
        %v1503 = vmul.f32 %v1421, %v1487
        %v1504 = vmul.f32 %v1423, %v1488
        %v1505 = vmul.f32 %v1425, %v1489
        %v1506 = vpack.c.bf16 %v1491, %v1490
        %v1507 = vpack.c.bf16 %v1493, %v1492
        %v1508 = vpack.c.bf16 %v1495, %v1494
        %v1509 = vpack.c.bf16 %v1497, %v1496
        %v1510 = vpack.c.bf16 %v1499, %v1498
        %v1511 = vpack.c.bf16 %v1501, %v1500
        %v1512 = vpack.c.bf16 %v1503, %v1502
        %v1513 = vpack.c.bf16 %v1505, %v1504
        %v1515 = vsel %vm1329, %v1506, 0
        %1517 = vmatprep.subr.bf16.mxu0 0
        %1518 = vmatpush1.bf16.msra.mxu0 %v902
        %1519 = vmatprep.subr.bf16.mxu0 0
        %1520 = vmatpush1.bf16.msra.mxu0 0
        %1521 = vmatprep.subr.bf16.mxu0 0
        %1522 = vmatpush1.bf16.msra.mxu0 0
        %1523 = vmatprep.subr.bf16.mxu0 0
        %1524 = vmatpush1.bf16.msra.mxu0 0
        %1525 = vmatprep.subr.bf16.mxu0 0
        %1526 = vmatpush1.bf16.msra.mxu0 0
        %1527 = vmatprep.subr.bf16.mxu0 0
        %1528 = vmatpush1.bf16.msra.mxu0 0
        %1529 = vmatprep.subr.bf16.mxu0 0
        %1530 = vmatpush1.bf16.msra.mxu0 0
        %1531 = vmatprep.subr.bf16.mxu0 0
        %1532 = vmatpush1.bf16.msra.mxu0 0
        %1533 = vmatprep.subr.bf16.mxu0 0
        %1534 = vmatpush1.bf16.msra.mxu0 0
        %1535 = vmatprep.subr.bf16.mxu0 0
        %1536 = vmatpush1.bf16.msra.mxu0 0
        %1537 = vmatprep.subr.bf16.mxu0 0
        %1538 = vmatpush1.bf16.msra.mxu0 0
        %1539 = vmatprep.subr.bf16.mxu0 0
        %1540 = vmatpush1.bf16.msra.mxu0 0
        %1541 = vmatprep.subr.bf16.mxu0 0
        %1542 = vmatpush1.bf16.msra.mxu0 0
        %1543 = vmatprep.subr.bf16.mxu0 0
        %1544 = vmatpush1.bf16.msra.mxu0 0
        %1545 = vmatprep.subr.bf16.mxu0 0
        %1546 = vmatpush1.bf16.msra.mxu0 0
        %1547 = vmatprep.subr.bf16.mxu0 0
        %1548 = vmatpush1.bf16.msra.mxu0 0
        %1549 = vmatprep.mubr.bf16.mxu0 0
        %1550 = vmatmul.mubr.bf16.gmra.mrb[0].mxu0 %v1515
        %v1551 = vpop.f32.mrb[0].mxu0
        %v1552 = vadd.f32 0.0, %v1551
        %v1553 = vpop.f32.mrb[0].mxu0
        %v1554 = vpop.f32.mrb[0].mxu0
        %v1555 = vadd.f32 0.0, %v1554
        %v1556 = vpop.f32.mrb[0].mxu0
        %1557 = vdwg.mxu0
        %v1559 = vsel %vm1329, %v1507, 0
        %1561 = vmatprep.subr.bf16.mxu0 0
        %1562 = vmatpush1.bf16.msra.mxu0 %v903
        %1563 = vmatprep.subr.bf16.mxu0 0
        %1564 = vmatpush1.bf16.msra.mxu0 0
        %1565 = vmatprep.subr.bf16.mxu0 0
        %1566 = vmatpush1.bf16.msra.mxu0 0
        %1567 = vmatprep.subr.bf16.mxu0 0
        %1568 = vmatpush1.bf16.msra.mxu0 0
        %1569 = vmatprep.subr.bf16.mxu0 0
        %1570 = vmatpush1.bf16.msra.mxu0 0
        %1571 = vmatprep.subr.bf16.mxu0 0
        %1572 = vmatpush1.bf16.msra.mxu0 0
        %1573 = vmatprep.subr.bf16.mxu0 0
        %1574 = vmatpush1.bf16.msra.mxu0 0
        %1575 = vmatprep.subr.bf16.mxu0 0
        %1576 = vmatpush1.bf16.msra.mxu0 0
        %1577 = vmatprep.subr.bf16.mxu0 0
        %1578 = vmatpush1.bf16.msra.mxu0 0
        %1579 = vmatprep.subr.bf16.mxu0 0
        %1580 = vmatpush1.bf16.msra.mxu0 0
        %1581 = vmatprep.subr.bf16.mxu0 0
        %1582 = vmatpush1.bf16.msra.mxu0 0
        %1583 = vmatprep.subr.bf16.mxu0 0
        %1584 = vmatpush1.bf16.msra.mxu0 0
        %1585 = vmatprep.subr.bf16.mxu0 0
        %1586 = vmatpush1.bf16.msra.mxu0 0
        %1587 = vmatprep.subr.bf16.mxu0 0
        %1588 = vmatpush1.bf16.msra.mxu0 0
        %1589 = vmatprep.subr.bf16.mxu0 0
        %1590 = vmatpush1.bf16.msra.mxu0 0
        %1591 = vmatprep.subr.bf16.mxu0 0
        %1592 = vmatpush1.bf16.msra.mxu0 0
        %1593 = vmatprep.mubr.bf16.mxu0 0
        %1594 = vmatmul.mubr.bf16.gmra.mrb[0].mxu0 %v1559
        %v1595 = vpop.f32.mrb[0].mxu0
        %v1596 = vadd.f32 0.0, %v1595
        %v1597 = vpop.f32.mrb[0].mxu0
        %v1598 = vpop.f32.mrb[0].mxu0
        %v1599 = vadd.f32 0.0, %v1598
        %v1600 = vpop.f32.mrb[0].mxu0
        %1601 = vdwg.mxu0
        %v1603 = vsel %vm1329, %v1508, 0
        %1605 = vmatprep.subr.bf16.mxu0 0
        %1606 = vmatpush1.bf16.msra.mxu0 %v935
        %1607 = vmatprep.subr.bf16.mxu0 0
        %1608 = vmatpush1.bf16.msra.mxu0 0
        %1609 = vmatprep.subr.bf16.mxu0 0
        %1610 = vmatpush1.bf16.msra.mxu0 0
        %1611 = vmatprep.subr.bf16.mxu0 0
        %1612 = vmatpush1.bf16.msra.mxu0 0
        %1613 = vmatprep.subr.bf16.mxu0 0
        %1614 = vmatpush1.bf16.msra.mxu0 0
        %1615 = vmatprep.subr.bf16.mxu0 0
        %1616 = vmatpush1.bf16.msra.mxu0 0
        %1617 = vmatprep.subr.bf16.mxu0 0
        %1618 = vmatpush1.bf16.msra.mxu0 0
        %1619 = vmatprep.subr.bf16.mxu0 0
        %1620 = vmatpush1.bf16.msra.mxu0 0
        %1621 = vmatprep.subr.bf16.mxu0 0
        %1622 = vmatpush1.bf16.msra.mxu0 0
        %1623 = vmatprep.subr.bf16.mxu0 0
        %1624 = vmatpush1.bf16.msra.mxu0 0
        %1625 = vmatprep.subr.bf16.mxu0 0
        %1626 = vmatpush1.bf16.msra.mxu0 0
        %1627 = vmatprep.subr.bf16.mxu0 0
        %1628 = vmatpush1.bf16.msra.mxu0 0
        %1629 = vmatprep.subr.bf16.mxu0 0
        %1630 = vmatpush1.bf16.msra.mxu0 0
        %1631 = vmatprep.subr.bf16.mxu0 0
        %1632 = vmatpush1.bf16.msra.mxu0 0
        %1633 = vmatprep.subr.bf16.mxu0 0
        %1634 = vmatpush1.bf16.msra.mxu0 0
        %1635 = vmatprep.subr.bf16.mxu0 0
        %1636 = vmatpush1.bf16.msra.mxu0 0
        %1637 = vmatprep.mubr.bf16.mxu0 0
        %1638 = vmatmul.mubr.bf16.gmra.mrb[0].mxu0 %v1603
        %v1639 = vpop.f32.mrb[0].mxu0
        %v1640 = vadd.f32 0.0, %v1639
        %v1641 = vpop.f32.mrb[0].mxu0
        %v1642 = vpop.f32.mrb[0].mxu0
        %v1643 = vadd.f32 0.0, %v1642
        %v1644 = vpop.f32.mrb[0].mxu0
        %1645 = vdwg.mxu0
        %v1647 = vsel %vm1329, %v1509, 0
        %1649 = vmatprep.subr.bf16.mxu0 0
        %1650 = vmatpush1.bf16.msra.mxu0 %v937
        %1651 = vmatprep.subr.bf16.mxu0 0
        %1652 = vmatpush1.bf16.msra.mxu0 0
        %1653 = vmatprep.subr.bf16.mxu0 0
        %1654 = vmatpush1.bf16.msra.mxu0 0
        %1655 = vmatprep.subr.bf16.mxu0 0
        %1656 = vmatpush1.bf16.msra.mxu0 0
        %1657 = vmatprep.subr.bf16.mxu0 0
        %1658 = vmatpush1.bf16.msra.mxu0 0
        %1659 = vmatprep.subr.bf16.mxu0 0
        %1660 = vmatpush1.bf16.msra.mxu0 0
        %1661 = vmatprep.subr.bf16.mxu0 0
        %1662 = vmatpush1.bf16.msra.mxu0 0
        %1663 = vmatprep.subr.bf16.mxu0 0
        %1664 = vmatpush1.bf16.msra.mxu0 0
        %1665 = vmatprep.subr.bf16.mxu0 0
        %1666 = vmatpush1.bf16.msra.mxu0 0
        %1667 = vmatprep.subr.bf16.mxu0 0
        %1668 = vmatpush1.bf16.msra.mxu0 0
        %1669 = vmatprep.subr.bf16.mxu0 0
        %1670 = vmatpush1.bf16.msra.mxu0 0
        %1671 = vmatprep.subr.bf16.mxu0 0
        %1672 = vmatpush1.bf16.msra.mxu0 0
        %1673 = vmatprep.subr.bf16.mxu0 0
        %1674 = vmatpush1.bf16.msra.mxu0 0
        %1675 = vmatprep.subr.bf16.mxu0 0
        %1676 = vmatpush1.bf16.msra.mxu0 0
        %1677 = vmatprep.subr.bf16.mxu0 0
        %1678 = vmatpush1.bf16.msra.mxu0 0
        %1679 = vmatprep.subr.bf16.mxu0 0
        %1680 = vmatpush1.bf16.msra.mxu0 0
        %1681 = vmatprep.mubr.bf16.mxu0 0
        %1682 = vmatmul.mubr.bf16.gmra.mrb[0].mxu0 %v1647
        %v1683 = vpop.f32.mrb[0].mxu0
        %v1684 = vadd.f32 0.0, %v1683
        %v1685 = vpop.f32.mrb[0].mxu0
        %v1686 = vpop.f32.mrb[0].mxu0
        %v1687 = vadd.f32 0.0, %v1686
        %v1688 = vpop.f32.mrb[0].mxu0
        %1689 = vdwg.mxu0
        %v1691 = vsel %vm1329, %v1510, 0
        %1693 = vmatprep.subr.bf16.mxu0 0
        %1694 = vmatpush1.bf16.msra.mxu0 %v941
        %1695 = vmatprep.subr.bf16.mxu0 0
        %1696 = vmatpush1.bf16.msra.mxu0 0
        %1697 = vmatprep.subr.bf16.mxu0 0
        %1698 = vmatpush1.bf16.msra.mxu0 0
        %1699 = vmatprep.subr.bf16.mxu0 0
        %1700 = vmatpush1.bf16.msra.mxu0 0
        %1701 = vmatprep.subr.bf16.mxu0 0
        %1702 = vmatpush1.bf16.msra.mxu0 0
        %1703 = vmatprep.subr.bf16.mxu0 0
        %1704 = vmatpush1.bf16.msra.mxu0 0
        %1705 = vmatprep.subr.bf16.mxu0 0
        %1706 = vmatpush1.bf16.msra.mxu0 0
        %1707 = vmatprep.subr.bf16.mxu0 0
        %1708 = vmatpush1.bf16.msra.mxu0 0
        %1709 = vmatprep.subr.bf16.mxu0 0
        %1710 = vmatpush1.bf16.msra.mxu0 0
        %1711 = vmatprep.subr.bf16.mxu0 0
        %1712 = vmatpush1.bf16.msra.mxu0 0
        %1713 = vmatprep.subr.bf16.mxu0 0
        %1714 = vmatpush1.bf16.msra.mxu0 0
        %1715 = vmatprep.subr.bf16.mxu0 0
        %1716 = vmatpush1.bf16.msra.mxu0 0
        %1717 = vmatprep.subr.bf16.mxu0 0
        %1718 = vmatpush1.bf16.msra.mxu0 0
        %1719 = vmatprep.subr.bf16.mxu0 0
        %1720 = vmatpush1.bf16.msra.mxu0 0
        %1721 = vmatprep.subr.bf16.mxu0 0
        %1722 = vmatpush1.bf16.msra.mxu0 0
        %1723 = vmatprep.subr.bf16.mxu0 0
        %1724 = vmatpush1.bf16.msra.mxu0 0
        %1725 = vmatprep.mubr.bf16.mxu0 0
        %1726 = vmatmul.mubr.bf16.gmra.mrb[0].mxu0 %v1691
        %v1727 = vpop.f32.mrb[0].mxu0
        %v1728 = vadd.f32 0.0, %v1727
        %v1729 = vpop.f32.mrb[0].mxu0
        %v1730 = vpop.f32.mrb[0].mxu0
        %v1731 = vadd.f32 0.0, %v1730
        %v1732 = vpop.f32.mrb[0].mxu0
        %1733 = vdwg.mxu0
        %v1735 = vsel %vm1329, %v1511, 0
        %1737 = vmatprep.subr.bf16.mxu0 0
        %1738 = vmatpush1.bf16.msra.mxu0 %v943
        %1739 = vmatprep.subr.bf16.mxu0 0
        %1740 = vmatpush1.bf16.msra.mxu0 0
        %1741 = vmatprep.subr.bf16.mxu0 0
        %1742 = vmatpush1.bf16.msra.mxu0 0
        %1743 = vmatprep.subr.bf16.mxu0 0
        %1744 = vmatpush1.bf16.msra.mxu0 0
        %1745 = vmatprep.subr.bf16.mxu0 0
        %1746 = vmatpush1.bf16.msra.mxu0 0
        %1747 = vmatprep.subr.bf16.mxu0 0
        %1748 = vmatpush1.bf16.msra.mxu0 0
        %1749 = vmatprep.subr.bf16.mxu0 0
        %1750 = vmatpush1.bf16.msra.mxu0 0
        %1751 = vmatprep.subr.bf16.mxu0 0
        %1752 = vmatpush1.bf16.msra.mxu0 0
        %1753 = vmatprep.subr.bf16.mxu0 0
        %1754 = vmatpush1.bf16.msra.mxu0 0
        %1755 = vmatprep.subr.bf16.mxu0 0
        %1756 = vmatpush1.bf16.msra.mxu0 0
        %1757 = vmatprep.subr.bf16.mxu0 0
        %1758 = vmatpush1.bf16.msra.mxu0 0
        %1759 = vmatprep.subr.bf16.mxu0 0
        %1760 = vmatpush1.bf16.msra.mxu0 0
        %1761 = vmatprep.subr.bf16.mxu0 0
        %1762 = vmatpush1.bf16.msra.mxu0 0
        %1763 = vmatprep.subr.bf16.mxu0 0
        %1764 = vmatpush1.bf16.msra.mxu0 0
        %1765 = vmatprep.subr.bf16.mxu0 0
        %1766 = vmatpush1.bf16.msra.mxu0 0
        %1767 = vmatprep.subr.bf16.mxu0 0
        %1768 = vmatpush1.bf16.msra.mxu0 0
        %1769 = vmatprep.mubr.bf16.mxu0 0
        %1770 = vmatmul.mubr.bf16.gmra.mrb[0].mxu0 %v1735
        %v1771 = vpop.f32.mrb[0].mxu0
        %v1772 = vadd.f32 0.0, %v1771
        %v1773 = vpop.f32.mrb[0].mxu0
        %v1774 = vpop.f32.mrb[0].mxu0
        %v1775 = vadd.f32 0.0, %v1774
        %v1776 = vpop.f32.mrb[0].mxu0
        %1777 = vdwg.mxu0
        %v1779 = vsel %vm1329, %v1512, 0
        %1781 = vmatprep.subr.bf16.mxu0 0
        %1782 = vmatpush1.bf16.msra.mxu0 %v947
        %1783 = vmatprep.subr.bf16.mxu0 0
        %1784 = vmatpush1.bf16.msra.mxu0 0
        %1785 = vmatprep.subr.bf16.mxu0 0
        %1786 = vmatpush1.bf16.msra.mxu0 0
        %1787 = vmatprep.subr.bf16.mxu0 0
        %1788 = vmatpush1.bf16.msra.mxu0 0
        %1789 = vmatprep.subr.bf16.mxu0 0
        %1790 = vmatpush1.bf16.msra.mxu0 0
        %1791 = vmatprep.subr.bf16.mxu0 0
        %1792 = vmatpush1.bf16.msra.mxu0 0
        %1793 = vmatprep.subr.bf16.mxu0 0
        %1794 = vmatpush1.bf16.msra.mxu0 0
        %1795 = vmatprep.subr.bf16.mxu0 0
        %1796 = vmatpush1.bf16.msra.mxu0 0
        %1797 = vmatprep.subr.bf16.mxu0 0
        %1798 = vmatpush1.bf16.msra.mxu0 0
        %1799 = vmatprep.subr.bf16.mxu0 0
        %1800 = vmatpush1.bf16.msra.mxu0 0
        %1801 = vmatprep.subr.bf16.mxu0 0
        %1802 = vmatpush1.bf16.msra.mxu0 0
        %1803 = vmatprep.subr.bf16.mxu0 0
        %1804 = vmatpush1.bf16.msra.mxu0 0
        %1805 = vmatprep.subr.bf16.mxu0 0
        %1806 = vmatpush1.bf16.msra.mxu0 0
        %1807 = vmatprep.subr.bf16.mxu0 0
        %1808 = vmatpush1.bf16.msra.mxu0 0
        %1809 = vmatprep.subr.bf16.mxu0 0
        %1810 = vmatpush1.bf16.msra.mxu0 0
        %1811 = vmatprep.subr.bf16.mxu0 0
        %1812 = vmatpush1.bf16.msra.mxu0 0
        %1813 = vmatprep.mubr.bf16.mxu0 0
        %1814 = vmatmul.mubr.bf16.gmra.mrb[0].mxu0 %v1779
        %v1815 = vpop.f32.mrb[0].mxu0
        %v1816 = vadd.f32 0.0, %v1815
        %v1817 = vpop.f32.mrb[0].mxu0
        %v1818 = vpop.f32.mrb[0].mxu0
        %v1819 = vadd.f32 0.0, %v1818
        %v1820 = vpop.f32.mrb[0].mxu0
        %1821 = vdwg.mxu0
        %v1823 = vsel %vm1329, %v1513, 0
        %1825 = vmatprep.subr.bf16.mxu0 0
        %1826 = vmatpush1.bf16.msra.mxu0 %v949
        %1827 = vmatprep.subr.bf16.mxu0 0
        %1828 = vmatpush1.bf16.msra.mxu0 0
        %1829 = vmatprep.subr.bf16.mxu0 0
        %1830 = vmatpush1.bf16.msra.mxu0 0
        %1831 = vmatprep.subr.bf16.mxu0 0
        %1832 = vmatpush1.bf16.msra.mxu0 0
        %1833 = vmatprep.subr.bf16.mxu0 0
        %1834 = vmatpush1.bf16.msra.mxu0 0
        %1835 = vmatprep.subr.bf16.mxu0 0
        %1836 = vmatpush1.bf16.msra.mxu0 0
        %1837 = vmatprep.subr.bf16.mxu0 0
        %1838 = vmatpush1.bf16.msra.mxu0 0
        %1839 = vmatprep.subr.bf16.mxu0 0
        %1840 = vmatpush1.bf16.msra.mxu0 0
        %1841 = vmatprep.subr.bf16.mxu0 0
        %1842 = vmatpush1.bf16.msra.mxu0 0
        %1843 = vmatprep.subr.bf16.mxu0 0
        %1844 = vmatpush1.bf16.msra.mxu0 0
        %1845 = vmatprep.subr.bf16.mxu0 0
        %1846 = vmatpush1.bf16.msra.mxu0 0
        %1847 = vmatprep.subr.bf16.mxu0 0
        %1848 = vmatpush1.bf16.msra.mxu0 0
        %1849 = vmatprep.subr.bf16.mxu0 0
        %1850 = vmatpush1.bf16.msra.mxu0 0
        %1851 = vmatprep.subr.bf16.mxu0 0
        %1852 = vmatpush1.bf16.msra.mxu0 0
        %1853 = vmatprep.subr.bf16.mxu0 0
        %1854 = vmatpush1.bf16.msra.mxu0 0
        %1855 = vmatprep.subr.bf16.mxu0 0
        %1856 = vmatpush1.bf16.msra.mxu0 0
        %1857 = vmatprep.mubr.bf16.mxu0 0
        %1858 = vmatmul.mubr.bf16.gmra.mrb[0].mxu0 %v1823
        %v1859 = vpop.f32.mrb[0].mxu0
        %v1860 = vadd.f32 0.0, %v1859
        %v1861 = vpop.f32.mrb[0].mxu0
        %v1862 = vpop.f32.mrb[0].mxu0
        %v1863 = vadd.f32 0.0, %v1862
        %v1864 = vpop.f32.mrb[0].mxu0
        %1865 = vdwg.mxu0
        %v1866 = vpack.c.bf16 %v1555, %v1552
        %v1867 = vpack.c.bf16 %v1599, %v1596
        %v1868 = vpack.c.bf16 %v1643, %v1640
        %v1869 = vpack.c.bf16 %v1687, %v1684
        %v1870 = vpack.c.bf16 %v1731, %v1728
        %v1871 = vpack.c.bf16 %v1775, %v1772
        %v1872 = vpack.c.bf16 %v1819, %v1816
        %v1873 = vpack.c.bf16 %v1863, %v1860
        %v1874 = vld [vmem:[#allocation10] sm:$0xf]
        %v1875 = vld [vmem:[#allocation10 + $0x4] sm:$0xf]
        %v1876 = vld [vmem:[#allocation10 + $0x8] sm:$0xf]
        %v1877 = vld [vmem:[#allocation10 + $0xc] sm:$0xf]
        %s1878 = scalar_lea.vmem [#allocation10], 16
        %v1879 = vld [vmem:[%s1878] sm:$0xf]
        %v1880 = vld [vmem:[%s1878 + $0x4] sm:$0xf]
        %v1881 = vld [vmem:[%s1878 + $0x8] sm:$0xf]
        %v1882 = vld [vmem:[%s1878 + $0xc] sm:$0xf]
        %v1887 = vunpack.c.l.b16 %v1879
        %v1888 = vunpack.c.l.b16 %v1880
        %v1889 = vunpack.c.l.b16 %v1881
        %v1890 = vunpack.c.l.b16 %v1882
        %v1891 = vpack.c.b16 %v1888, %v1887
        %v1892 = vpack.c.b16 %v1890, %v1889
        %v1896 = vsel %vm952, %v1868, 0
        %v1899 = vsel %vm952, %v1869, 0
        %1901 = vmatprep.subr.bf16.mxu0 0
        %1902 = vmatpush1.bf16.msra.mxu0 %v1891
        %1903 = vmatprep.subr.bf16.mxu0 0
        %1904 = vmatpush1.bf16.msra.mxu0 %v1892
        %1905 = vmatprep.subr.bf16.mxu0 0
        %1906 = vmatpush1.bf16.msra.mxu0 0
        %1907 = vmatprep.subr.bf16.mxu0 0
        %1908 = vmatpush1.bf16.msra.mxu0 0
        %1909 = vmatprep.subr.bf16.mxu0 0
        %1910 = vmatpush1.bf16.msra.mxu0 0
        %1911 = vmatprep.subr.bf16.mxu0 0
        %1912 = vmatpush1.bf16.msra.mxu0 0
        %1913 = vmatprep.subr.bf16.mxu0 0
        %1914 = vmatpush1.bf16.msra.mxu0 0
        %1915 = vmatprep.subr.bf16.mxu0 0
        %1916 = vmatpush1.bf16.msra.mxu0 0
        %1917 = vmatprep.subr.bf16.mxu0 0
        %1918 = vmatpush1.bf16.msra.mxu0 0
        %1919 = vmatprep.subr.bf16.mxu0 0
        %1920 = vmatpush1.bf16.msra.mxu0 0
        %1921 = vmatprep.subr.bf16.mxu0 0
        %1922 = vmatpush1.bf16.msra.mxu0 0
        %1923 = vmatprep.subr.bf16.mxu0 0
        %1924 = vmatpush1.bf16.msra.mxu0 0
        %1925 = vmatprep.subr.bf16.mxu0 0
        %1926 = vmatpush1.bf16.msra.mxu0 0
        %1927 = vmatprep.subr.bf16.mxu0 0
        %1928 = vmatpush1.bf16.msra.mxu0 0
        %1929 = vmatprep.subr.bf16.mxu0 0
        %1930 = vmatpush1.bf16.msra.mxu0 0
        %1931 = vmatprep.subr.bf16.mxu0 0
        %1932 = vmatpush1.bf16.msra.mxu0 0
        %1933 = vmatprep.mubr.bf16.mxu0 0
        %1934 = vmatmul.mubr.bf16.gmra.mrb[0].mxu0 %v1896
        %v1935 = vpop.f32.mrb[0].mxu0
        %v1936 = vadd.f32 0.0, %v1935
        %v1937 = vpop.f32.mrb[0].mxu0
        %v1938 = vpop.f32.mrb[0].mxu0
        %v1939 = vadd.f32 0.0, %v1938
        %v1940 = vpop.f32.mrb[0].mxu0
        %1941 = vmatprep.mubr.bf16.mxu0 0
        %1942 = vmatmul.mubr.bf16.gmra.mrb[0].mxu0 %v1899
        %v1943 = vpop.f32.mrb[0].mxu0
        %v1944 = vadd.f32 0.0, %v1943
        %v1945 = vpop.f32.mrb[0].mxu0
        %v1946 = vpop.f32.mrb[0].mxu0
        %v1947 = vadd.f32 0.0, %v1946
        %v1948 = vpop.f32.mrb[0].mxu0
        %1949 = vdwg.mxu0
        %v1954 = vunpack.c.l.b16 %v1874
        %v1955 = vunpack.c.l.b16 %v1875
        %v1956 = vunpack.c.l.b16 %v1876
        %v1957 = vunpack.c.l.b16 %v1877
        %v1958 = vpack.c.b16 %v1955, %v1954
        %v1959 = vpack.c.b16 %v1957, %v1956
        %v1963 = vsel %vm952, %v1866, 0
        %v1966 = vsel %vm952, %v1867, 0
        %1968 = vmatprep.subr.bf16.mxu0 0
        %1969 = vmatpush1.bf16.msra.mxu0 %v1958
        %1970 = vmatprep.subr.bf16.mxu0 0
        %1971 = vmatpush1.bf16.msra.mxu0 %v1959
        %1972 = vmatprep.subr.bf16.mxu0 0
        %1973 = vmatpush1.bf16.msra.mxu0 0
        %1974 = vmatprep.subr.bf16.mxu0 0
        %1975 = vmatpush1.bf16.msra.mxu0 0
        %1976 = vmatprep.subr.bf16.mxu0 0
        %1977 = vmatpush1.bf16.msra.mxu0 0
        %1978 = vmatprep.subr.bf16.mxu0 0
        %1979 = vmatpush1.bf16.msra.mxu0 0
        %1980 = vmatprep.subr.bf16.mxu0 0
        %1981 = vmatpush1.bf16.msra.mxu0 0
        %1982 = vmatprep.subr.bf16.mxu0 0
        %1983 = vmatpush1.bf16.msra.mxu0 0
        %1984 = vmatprep.subr.bf16.mxu0 0
        %1985 = vmatpush1.bf16.msra.mxu0 0
        %1986 = vmatprep.subr.bf16.mxu0 0
        %1987 = vmatpush1.bf16.msra.mxu0 0
        %1988 = vmatprep.subr.bf16.mxu0 0
        %1989 = vmatpush1.bf16.msra.mxu0 0
        %1990 = vmatprep.subr.bf16.mxu0 0
        %1991 = vmatpush1.bf16.msra.mxu0 0
        %1992 = vmatprep.subr.bf16.mxu0 0
        %1993 = vmatpush1.bf16.msra.mxu0 0
        %1994 = vmatprep.subr.bf16.mxu0 0
        %1995 = vmatpush1.bf16.msra.mxu0 0
        %1996 = vmatprep.subr.bf16.mxu0 0
        %1997 = vmatpush1.bf16.msra.mxu0 0
        %1998 = vmatprep.subr.bf16.mxu0 0
        %1999 = vmatpush1.bf16.msra.mxu0 0
        %2000 = vmatprep.mubr.bf16.mxu0 0
        %2001 = vmatmul.mubr.bf16.gmra.mrb[0].mxu0 %v1963
        %v2002 = vpop.f32.mrb[0].mxu0
        %v2003 = vadd.f32 %v1936, %v2002
        %v2004 = vpop.f32.mrb[0].mxu0
        %v2005 = vpop.f32.mrb[0].mxu0
        %v2006 = vadd.f32 %v1939, %v2005
        %v2007 = vpop.f32.mrb[0].mxu0
        %2008 = vmatprep.mubr.bf16.mxu0 0
        %2009 = vmatmul.mubr.bf16.gmra.mrb[0].mxu0 %v1966
        %v2010 = vpop.f32.mrb[0].mxu0
        %v2011 = vadd.f32 %v1944, %v2010
        %v2012 = vpop.f32.mrb[0].mxu0
        %v2013 = vpop.f32.mrb[0].mxu0
        %v2014 = vadd.f32 %v1947, %v2013
        %v2015 = vpop.f32.mrb[0].mxu0
        %2016 = vdwg.mxu0
        %s2017 = scalar_lea.vmem [#allocation10], 32
        %v2018 = vld [vmem:[%s2017] sm:$0xf]
        %v2019 = vld [vmem:[%s2017 + $0x4] sm:$0xf]
        %v2020 = vld [vmem:[%s2017 + $0x8] sm:$0xf]
        %v2021 = vld [vmem:[%s2017 + $0xc] sm:$0xf]
        %v2026 = vunpack.c.l.b16 %v2018
        %v2027 = vunpack.c.l.b16 %v2019
        %v2028 = vunpack.c.l.b16 %v2020
        %v2029 = vunpack.c.l.b16 %v2021
        %v2030 = vpack.c.b16 %v2027, %v2026
        %v2031 = vpack.c.b16 %v2029, %v2028
        %v2035 = vsel %vm952, %v1870, 0
        %v2038 = vsel %vm952, %v1871, 0
        %2040 = vmatprep.subr.bf16.mxu0 0
        %2041 = vmatpush1.bf16.msra.mxu0 %v2030
        %2042 = vmatprep.subr.bf16.mxu0 0
        %2043 = vmatpush1.bf16.msra.mxu0 %v2031
        %2044 = vmatprep.subr.bf16.mxu0 0
        %2045 = vmatpush1.bf16.msra.mxu0 0
        %2046 = vmatprep.subr.bf16.mxu0 0
        %2047 = vmatpush1.bf16.msra.mxu0 0
        %2048 = vmatprep.subr.bf16.mxu0 0
        %2049 = vmatpush1.bf16.msra.mxu0 0
        %2050 = vmatprep.subr.bf16.mxu0 0
        %2051 = vmatpush1.bf16.msra.mxu0 0
        %2052 = vmatprep.subr.bf16.mxu0 0
        %2053 = vmatpush1.bf16.msra.mxu0 0
        %2054 = vmatprep.subr.bf16.mxu0 0
        %2055 = vmatpush1.bf16.msra.mxu0 0
        %2056 = vmatprep.subr.bf16.mxu0 0
        %2057 = vmatpush1.bf16.msra.mxu0 0
        %2058 = vmatprep.subr.bf16.mxu0 0
        %2059 = vmatpush1.bf16.msra.mxu0 0
        %2060 = vmatprep.subr.bf16.mxu0 0
        %2061 = vmatpush1.bf16.msra.mxu0 0
        %2062 = vmatprep.subr.bf16.mxu0 0
        %2063 = vmatpush1.bf16.msra.mxu0 0
        %2064 = vmatprep.subr.bf16.mxu0 0
        %2065 = vmatpush1.bf16.msra.mxu0 0
        %2066 = vmatprep.subr.bf16.mxu0 0
        %2067 = vmatpush1.bf16.msra.mxu0 0
        %2068 = vmatprep.subr.bf16.mxu0 0
        %2069 = vmatpush1.bf16.msra.mxu0 0
        %2070 = vmatprep.subr.bf16.mxu0 0
        %2071 = vmatpush1.bf16.msra.mxu0 0
        %2072 = vmatprep.mubr.bf16.mxu0 0
        %2073 = vmatmul.mubr.bf16.gmra.mrb[0].mxu0 %v2035
        %v2074 = vpop.f32.mrb[0].mxu0
        %v2075 = vadd.f32 0.0, %v2074
        %v2076 = vpop.f32.mrb[0].mxu0
        %v2077 = vpop.f32.mrb[0].mxu0
        %v2078 = vadd.f32 0.0, %v2077
        %v2079 = vpop.f32.mrb[0].mxu0
        %2080 = vmatprep.mubr.bf16.mxu0 0
        %2081 = vmatmul.mubr.bf16.gmra.mrb[0].mxu0 %v2038
        %v2082 = vpop.f32.mrb[0].mxu0
        %v2083 = vadd.f32 0.0, %v2082
        %v2084 = vpop.f32.mrb[0].mxu0
        %v2085 = vpop.f32.mrb[0].mxu0
        %v2086 = vadd.f32 0.0, %v2085
        %v2087 = vpop.f32.mrb[0].mxu0
        %2088 = vdwg.mxu0
        %v2089 = vadd.f32 %v2003, %v2075
        %v2090 = vadd.f32 %v2006, %v2078
        %v2091 = vadd.f32 %v2011, %v2083
        %v2092 = vadd.f32 %v2014, %v2086
        %s2093 = scalar_lea.vmem [#allocation10], 48
        %v2094 = vld [vmem:[%s2093] sm:$0xf]
        %v2095 = vld [vmem:[%s2093 + $0x4] sm:$0xf]
        %v2096 = vld [vmem:[%s2093 + $0x8] sm:$0xf]
        %v2097 = vld [vmem:[%s2093 + $0xc] sm:$0xf]
        %v2102 = vunpack.c.l.b16 %v2094
        %v2103 = vunpack.c.l.b16 %v2095
        %v2104 = vunpack.c.l.b16 %v2096
        %v2105 = vunpack.c.l.b16 %v2097
        %v2106 = vpack.c.b16 %v2103, %v2102
        %v2107 = vpack.c.b16 %v2105, %v2104
        %v2111 = vsel %vm952, %v1872, 0
        %v2114 = vsel %vm952, %v1873, 0
        %2116 = vmatprep.subr.bf16.mxu0 0
        %2117 = vmatpush1.bf16.msra.mxu0 %v2106
        %2118 = vmatprep.subr.bf16.mxu0 0
        %2119 = vmatpush1.bf16.msra.mxu0 %v2107
        %2120 = vmatprep.subr.bf16.mxu0 0
        %2121 = vmatpush1.bf16.msra.mxu0 0
        %2122 = vmatprep.subr.bf16.mxu0 0
        %2123 = vmatpush1.bf16.msra.mxu0 0
        %2124 = vmatprep.subr.bf16.mxu0 0
        %2125 = vmatpush1.bf16.msra.mxu0 0
        %2126 = vmatprep.subr.bf16.mxu0 0
        %2127 = vmatpush1.bf16.msra.mxu0 0
        %2128 = vmatprep.subr.bf16.mxu0 0
        %2129 = vmatpush1.bf16.msra.mxu0 0
        %2130 = vmatprep.subr.bf16.mxu0 0
        %2131 = vmatpush1.bf16.msra.mxu0 0
        %2132 = vmatprep.subr.bf16.mxu0 0
        %2133 = vmatpush1.bf16.msra.mxu0 0
        %2134 = vmatprep.subr.bf16.mxu0 0
        %2135 = vmatpush1.bf16.msra.mxu0 0
        %2136 = vmatprep.subr.bf16.mxu0 0
        %2137 = vmatpush1.bf16.msra.mxu0 0
        %2138 = vmatprep.subr.bf16.mxu0 0
        %2139 = vmatpush1.bf16.msra.mxu0 0
        %2140 = vmatprep.subr.bf16.mxu0 0
        %2141 = vmatpush1.bf16.msra.mxu0 0
        %2142 = vmatprep.subr.bf16.mxu0 0
        %2143 = vmatpush1.bf16.msra.mxu0 0
        %2144 = vmatprep.subr.bf16.mxu0 0
        %2145 = vmatpush1.bf16.msra.mxu0 0
        %2146 = vmatprep.subr.bf16.mxu0 0
        %2147 = vmatpush1.bf16.msra.mxu0 0
        %2148 = vmatprep.mubr.bf16.mxu0 0
        %2149 = vmatmul.mubr.bf16.gmra.mrb[0].mxu0 %v2111
        %v2150 = vpop.f32.mrb[0].mxu0
        %v2151 = vadd.f32 0.0, %v2150
        %v2152 = vpop.f32.mrb[0].mxu0
        %v2153 = vpop.f32.mrb[0].mxu0
        %v2154 = vadd.f32 0.0, %v2153
        %v2155 = vpop.f32.mrb[0].mxu0
        %2156 = vmatprep.mubr.bf16.mxu0 0
        %2157 = vmatmul.mubr.bf16.gmra.mrb[0].mxu0 %v2114
        %v2158 = vpop.f32.mrb[0].mxu0
        %v2159 = vadd.f32 0.0, %v2158
        %v2160 = vpop.f32.mrb[0].mxu0
        %v2161 = vpop.f32.mrb[0].mxu0
        %v2162 = vadd.f32 0.0, %v2161
        %v2163 = vpop.f32.mrb[0].mxu0
        %2164 = vdwg.mxu0
        %v2165 = vadd.f32 %v2089, %v2151
        %v2166 = vadd.f32 %v2090, %v2154
        %v2167 = vadd.f32 %v2091, %v2159
        %v2168 = vadd.f32 %v2092, %v2162
        %v2169 = vld [vmem:[%s6] sm:$0x1]
        %v2171 = vlaneseq
        %v2172 = vshrl.u32 %v2171, 7
        %v2173 = vsub.s32 0, %v2172
        %v2174 = vrot.slane %v2169, %v2173
        %v2176 = vadd.f32 %v2165, %v2174
        %v2177 = vadd.f32 %v2166, %v2174
        %v2178 = vadd.f32 %v2167, %v2174
        %v2179 = vadd.f32 %v2168, %v2174
        %v2180 = vadd.f32 %v546, %v2176
        %v2181 = vadd.f32 %v547, %v2177
        %v2182 = vadd.f32 %v548, %v2178
        %v2183 = vadd.f32 %v549, %v2179
        %v2184 = vld [vmem:[%s7] sm:$0x1]
        %v2185 = vld [vmem:[%s8] sm:$0x1]
        %2186 = vadd.xlane.f32.xlu0 %v2180
        %v2187 = vpop.xlane.xlu0 %2186
        %2188 = vadd.xlane.f32.xlu0 %v2181
        %v2189 = vpop.xlane.xlu0 %2188
        %2190 = vadd.xlane.f32.xlu0 %v2182
        %v2191 = vpop.xlane.xlu0 %2190
        %2192 = vadd.xlane.f32.xlu0 %v2183
        %v2193 = vpop.xlane.xlu0 %2192
        %v2194 = vmul.f32 %v2187, %v560
        %v2195 = vmul.f32 %v2189, %v560
        %v2196 = vmul.f32 %v2191, %v560
        %v2197 = vmul.f32 %v2193, %v560
        %v2198 = vsub.f32 %v2180, %v2194
        %v2199 = vsub.f32 %v2181, %v2195
        %v2200 = vsub.f32 %v2182, %v2196
        %v2201 = vsub.f32 %v2183, %v2197
        %v2202 = vmul.f32 %v2198, %v2198
        %v2203 = vmul.f32 %v2199, %v2199
        %v2204 = vmul.f32 %v2200, %v2200
        %v2205 = vmul.f32 %v2201, %v2201
        %2206 = vadd.xlane.f32.xlu0 %v2202
        %v2207 = vpop.xlane.xlu0 %2206
        %2208 = vadd.xlane.f32.xlu0 %v2203
        %v2209 = vpop.xlane.xlu0 %2208
        %2210 = vadd.xlane.f32.xlu0 %v2204
        %v2211 = vpop.xlane.xlu0 %2210
        %2212 = vadd.xlane.f32.xlu0 %v2205
        %v2213 = vpop.xlane.xlu0 %2212
        %v2214 = vmul.f32 %v2207, %v560
        %v2215 = vmul.f32 %v2209, %v560
        %v2216 = vmul.f32 %v2211, %v560
        %v2217 = vmul.f32 %v2213, %v560
        %v2218 = vadd.f32 %v2214, 1e-05
        %v2219 = vadd.f32 %v2215, 1e-05
        %v2220 = vadd.f32 %v2216, 1e-05
        %v2221 = vadd.f32 %v2217, 1e-05
        %v2222 = vrsqrt.pop %v2218
        %v2223 = vrsqrt.pop %v2219
        %v2224 = vrsqrt.pop %v2220
        %v2225 = vrsqrt.pop %v2221
        %v2226 = vmul.f32 %v2198, %v2222
        %v2227 = vmul.f32 %v2199, %v2223
        %v2228 = vmul.f32 %v2200, %v2224
        %v2229 = vmul.f32 %v2201, %v2225
        %v2231 = vlaneseq
        %v2232 = vshrl.u32 %v2231, 7
        %v2233 = vsub.s32 0, %v2232
        %v2234 = vrot.slane %v2184, %v2233
        %v2236 = vmul.f32 %v2226, %v2234
        %v2237 = vmul.f32 %v2227, %v2234
        %v2238 = vmul.f32 %v2228, %v2234
        %v2239 = vmul.f32 %v2229, %v2234
        %v2241 = vlaneseq
        %v2242 = vshrl.u32 %v2241, 7
        %v2243 = vsub.s32 0, %v2242
        %v2244 = vrot.slane %v2185, %v2243
        %v2246 = vadd.f32 %v2236, %v2244
        %v2247 = vadd.f32 %v2237, %v2244
        %v2248 = vadd.f32 %v2238, %v2244
        %v2249 = vadd.f32 %v2239, %v2244
        %v2250 = vpack.c.bf16 %v2247, %v2246
        %v2251 = vpack.c.bf16 %v2249, %v2248
        %v2252 = vld [vmem:[#allocation11] sm:$0xff]
        %v2253 = vld [vmem:[#allocation11 + $0x8] sm:$0xff]
        %v2254 = vld [vmem:[#allocation11 + $0x10] sm:$0xff]
        %v2255 = vld [vmem:[#allocation11 + $0x18] sm:$0xff]
        %v2256 = vld [vmem:[#allocation11 + $0x20] sm:$0xff]
        %v2257 = vld [vmem:[#allocation11 + $0x28] sm:$0xff]
        %v2258 = vld [vmem:[#allocation11 + $0x30] sm:$0xff]
        %v2259 = vld [vmem:[#allocation11 + $0x38] sm:$0xff]
        %v2260 = vld [vmem:[#allocation11 + $0x40] sm:$0xff]
        %v2261 = vld [vmem:[#allocation11 + $0x48] sm:$0xff]
        %v2262 = vld [vmem:[#allocation11 + $0x50] sm:$0xff]
        %v2263 = vld [vmem:[#allocation11 + $0x58] sm:$0xff]
        %v2264 = vld [vmem:[#allocation11 + $0x60] sm:$0xff]
        %v2265 = vld [vmem:[#allocation11 + $0x68] sm:$0xff]
        %v2266 = vld [vmem:[#allocation11 + $0x70] sm:$0xff]
        %v2267 = vld [vmem:[#allocation11 + $0x78] sm:$0xff]
        %v2268 = vld [vmem:[#allocation11 + $0x80] sm:$0xff]
        %v2269 = vld [vmem:[#allocation11 + $0x88] sm:$0xff]
        %v2270 = vld [vmem:[#allocation11 + $0x90] sm:$0xff]
        %v2271 = vld [vmem:[#allocation11 + $0x98] sm:$0xff]
        %v2272 = vld [vmem:[#allocation11 + $0xa0] sm:$0xff]
        %v2273 = vld [vmem:[#allocation11 + $0xa8] sm:$0xff]
        %v2274 = vld [vmem:[#allocation11 + $0xb0] sm:$0xff]
        %v2275 = vld [vmem:[#allocation11 + $0xb8] sm:$0xff]
        %v2276 = vld [vmem:[#allocation11 + $0xc0] sm:$0xff]
        %v2277 = vld [vmem:[#allocation11 + $0xc8] sm:$0xff]
        %v2278 = vld [vmem:[#allocation11 + $0xd0] sm:$0xff]
        %v2279 = vld [vmem:[#allocation11 + $0xd8] sm:$0xff]
        %v2280 = vld [vmem:[#allocation11 + $0xe0] sm:$0xff]
        %v2281 = vld [vmem:[#allocation11 + $0xe8] sm:$0xff]
        %v2282 = vld [vmem:[#allocation11 + $0xf0] sm:$0xff]
        %v2283 = vld [vmem:[#allocation11 + $0xf8] sm:$0xff]
        %v2284 = vld [vmem:[%s10] sm:$0xf]
        %v2286 = vlaneseq
        %v2287 = vshrl.u32 %v2286, 7
        %v2288 = vsub.s32 0, %v2287
        %v2289 = vrot.slane %v2284, %v2288
        %v2290 = vlaneseq
        %v2291 = vshrl.u32 %v2290, 7
        %v2292 = vsub.s32 1, %v2291
        %v2293 = vrot.slane %v2284, %v2292
        %v2294 = vlaneseq
        %v2295 = vshrl.u32 %v2294, 7
        %v2296 = vsub.s32 2, %v2295
        %v2297 = vrot.slane %v2284, %v2296
        %v2298 = vlaneseq
        %v2299 = vshrl.u32 %v2298, 7
        %v2300 = vsub.s32 3, %v2299
        %v2301 = vrot.slane %v2284, %v2300
        %v2338 = vunpack.c.l.b16 %v2252
        %v2339 = vunpack.c.h.b16 %v2252
        %v2340 = vunpack.c.l.b16 %v2253
        %v2341 = vunpack.c.h.b16 %v2253
        %v2342 = vunpack.c.l.b16 %v2254
        %v2343 = vunpack.c.h.b16 %v2254
        %v2344 = vunpack.c.l.b16 %v2255
        %v2345 = vunpack.c.h.b16 %v2255
        %v2346 = vunpack.c.l.b16 %v2256
        %v2347 = vunpack.c.h.b16 %v2256
        %v2348 = vunpack.c.l.b16 %v2257
        %v2349 = vunpack.c.h.b16 %v2257
        %v2350 = vunpack.c.l.b16 %v2258
        %v2351 = vunpack.c.h.b16 %v2258
        %v2352 = vunpack.c.l.b16 %v2259
        %v2353 = vunpack.c.h.b16 %v2259
        %v2354 = vunpack.c.l.b16 %v2260
        %v2355 = vunpack.c.h.b16 %v2260
        %v2356 = vunpack.c.l.b16 %v2261
        %v2357 = vunpack.c.h.b16 %v2261
        %v2358 = vunpack.c.l.b16 %v2262
        %v2359 = vunpack.c.h.b16 %v2262
        %v2360 = vunpack.c.l.b16 %v2263
        %v2361 = vunpack.c.h.b16 %v2263
        %v2362 = vunpack.c.l.b16 %v2264
        %v2363 = vunpack.c.h.b16 %v2264
        %v2364 = vunpack.c.l.b16 %v2265
        %v2365 = vunpack.c.h.b16 %v2265
        %v2366 = vunpack.c.l.b16 %v2266
        %v2367 = vunpack.c.h.b16 %v2266
        %v2368 = vunpack.c.l.b16 %v2267
        %v2369 = vunpack.c.h.b16 %v2267
        %v2370 = vunpack.c.l.b16 %v2268
        %v2371 = vunpack.c.h.b16 %v2268
        %v2372 = vunpack.c.l.b16 %v2269
        %v2373 = vunpack.c.h.b16 %v2269
        %v2374 = vunpack.c.l.b16 %v2270
        %v2375 = vunpack.c.h.b16 %v2270
        %v2376 = vunpack.c.l.b16 %v2271
        %v2377 = vunpack.c.h.b16 %v2271
        %v2378 = vunpack.c.l.b16 %v2272
        %v2379 = vunpack.c.h.b16 %v2272
        %v2380 = vunpack.c.l.b16 %v2273
        %v2381 = vunpack.c.h.b16 %v2273
        %v2382 = vunpack.c.l.b16 %v2274
        %v2383 = vunpack.c.h.b16 %v2274
        %v2384 = vunpack.c.l.b16 %v2275
        %v2385 = vunpack.c.h.b16 %v2275
        %v2386 = vunpack.c.l.b16 %v2276
        %v2387 = vunpack.c.h.b16 %v2276
        %v2388 = vunpack.c.l.b16 %v2277
        %v2389 = vunpack.c.h.b16 %v2277
        %v2390 = vunpack.c.l.b16 %v2278
        %v2391 = vunpack.c.h.b16 %v2278
        %v2392 = vunpack.c.l.b16 %v2279
        %v2393 = vunpack.c.h.b16 %v2279
        %v2394 = vunpack.c.l.b16 %v2280
        %v2395 = vunpack.c.h.b16 %v2280
        %v2396 = vunpack.c.l.b16 %v2281
        %v2397 = vunpack.c.h.b16 %v2281
        %v2398 = vunpack.c.l.b16 %v2282
        %v2399 = vunpack.c.h.b16 %v2282
        %v2400 = vunpack.c.l.b16 %v2283
        %v2401 = vunpack.c.h.b16 %v2283
        %v2402 = vpack.c.b16 %v2342, %v2338
        %v2403 = vpack.c.b16 %v2343, %v2339
        %v2404 = vpack.c.b16 %v2344, %v2340
        %v2405 = vpack.c.b16 %v2345, %v2341
        %v2406 = vpack.c.b16 %v2350, %v2346
        %v2407 = vpack.c.b16 %v2351, %v2347
        %v2408 = vpack.c.b16 %v2352, %v2348
        %v2409 = vpack.c.b16 %v2353, %v2349
        %v2410 = vpack.c.b16 %v2358, %v2354
        %v2411 = vpack.c.b16 %v2359, %v2355
        %v2412 = vpack.c.b16 %v2360, %v2356
        %v2413 = vpack.c.b16 %v2361, %v2357
        %v2414 = vpack.c.b16 %v2366, %v2362
        %v2415 = vpack.c.b16 %v2367, %v2363
        %v2416 = vpack.c.b16 %v2368, %v2364
        %v2417 = vpack.c.b16 %v2369, %v2365
        %v2418 = vpack.c.b16 %v2374, %v2370
        %v2419 = vpack.c.b16 %v2375, %v2371
        %v2420 = vpack.c.b16 %v2376, %v2372
        %v2421 = vpack.c.b16 %v2377, %v2373
        %v2422 = vpack.c.b16 %v2382, %v2378
        %v2423 = vpack.c.b16 %v2383, %v2379
        %v2424 = vpack.c.b16 %v2384, %v2380
        %v2425 = vpack.c.b16 %v2385, %v2381
        %v2426 = vpack.c.b16 %v2390, %v2386
        %v2427 = vpack.c.b16 %v2391, %v2387
        %v2428 = vpack.c.b16 %v2392, %v2388
        %v2429 = vpack.c.b16 %v2393, %v2389
        %v2430 = vpack.c.b16 %v2398, %v2394
        %v2431 = vpack.c.b16 %v2399, %v2395
        %v2432 = vpack.c.b16 %v2400, %v2396
        %v2433 = vpack.c.b16 %v2401, %v2397
        %2466 = vmatprep.subr.bf16.mxu0 %v2403
        %2467 = vmatpush1.bf16.msra.mxu0 %v2402
        %2468 = vmatprep.subr.bf16.mxu0 %v2407
        %2469 = vmatpush1.bf16.msra.mxu0 %v2406
        %2470 = vmatprep.subr.bf16.mxu0 %v2411
        %2471 = vmatpush1.bf16.msra.mxu0 %v2410
        %2472 = vmatprep.subr.bf16.mxu0 %v2415
        %2473 = vmatpush1.bf16.msra.mxu0 %v2414
        %2474 = vmatprep.subr.bf16.mxu0 %v2419
        %2475 = vmatpush1.bf16.msra.mxu0 %v2418
        %2476 = vmatprep.subr.bf16.mxu0 %v2423
        %2477 = vmatpush1.bf16.msra.mxu0 %v2422
        %2478 = vmatprep.subr.bf16.mxu0 %v2427
        %2479 = vmatpush1.bf16.msra.mxu0 %v2426
        %2480 = vmatprep.subr.bf16.mxu0 %v2431
        %2481 = vmatpush1.bf16.msra.mxu0 %v2430
        %2482 = vmatprep.subr.bf16.mxu0 0
        %2483 = vmatpush1.bf16.msra.mxu0 0
        %2484 = vmatprep.subr.bf16.mxu0 0
        %2485 = vmatpush1.bf16.msra.mxu0 0
        %2486 = vmatprep.subr.bf16.mxu0 0
        %2487 = vmatpush1.bf16.msra.mxu0 0
        %2488 = vmatprep.subr.bf16.mxu0 0
        %2489 = vmatpush1.bf16.msra.mxu0 0
        %2490 = vmatprep.subr.bf16.mxu0 0
        %2491 = vmatpush1.bf16.msra.mxu0 0
        %2492 = vmatprep.subr.bf16.mxu0 0
        %2493 = vmatpush1.bf16.msra.mxu0 0
        %2494 = vmatprep.subr.bf16.mxu0 0
        %2495 = vmatpush1.bf16.msra.mxu0 0
        %2496 = vmatprep.subr.bf16.mxu0 0
        %2497 = vmatpush1.bf16.msra.mxu0 0
        %2498 = vmatprep.mubr.bf16.mxu0 0
        %2499 = vmatmul.mubr.bf16.gmra.mrb[0].mxu0 %v2250
        %v2500 = vpop.f32.mrb[0].mxu0
        %v2501 = vadd.f32 %v2289, %v2500
        %v2502 = vpop.f32.mrb[0].mxu0
        %v2503 = vadd.f32 %v2293, %v2502
        %v2504 = vpop.f32.mrb[0].mxu0
        %v2505 = vadd.f32 %v2289, %v2504
        %v2506 = vpop.f32.mrb[0].mxu0
        %v2507 = vadd.f32 %v2293, %v2506
        %2508 = vmatprep.mubr.bf16.mxu0 0
        %2509 = vmatmul.mubr.bf16.gmra.mrb[0].mxu0 %v2251
        %v2510 = vpop.f32.mrb[0].mxu0
        %v2511 = vadd.f32 %v2289, %v2510
        %v2512 = vpop.f32.mrb[0].mxu0
        %v2513 = vadd.f32 %v2293, %v2512
        %v2514 = vpop.f32.mrb[0].mxu0
        %v2515 = vadd.f32 %v2289, %v2514
        %v2516 = vpop.f32.mrb[0].mxu0
        %v2517 = vadd.f32 %v2293, %v2516
        %2518 = vdwg.mxu0
        %2519 = vmatprep.subr.bf16.mxu0 %v2405
        %2520 = vmatpush1.bf16.msra.mxu0 %v2404
        %2521 = vmatprep.subr.bf16.mxu0 %v2409
        %2522 = vmatpush1.bf16.msra.mxu0 %v2408
        %2523 = vmatprep.subr.bf16.mxu0 %v2413
        %2524 = vmatpush1.bf16.msra.mxu0 %v2412
        %2525 = vmatprep.subr.bf16.mxu0 %v2417
        %2526 = vmatpush1.bf16.msra.mxu0 %v2416
        %2527 = vmatprep.subr.bf16.mxu0 %v2421
        %2528 = vmatpush1.bf16.msra.mxu0 %v2420
        %2529 = vmatprep.subr.bf16.mxu0 %v2425
        %2530 = vmatpush1.bf16.msra.mxu0 %v2424
        %2531 = vmatprep.subr.bf16.mxu0 %v2429
        %2532 = vmatpush1.bf16.msra.mxu0 %v2428
        %2533 = vmatprep.subr.bf16.mxu0 %v2433
        %2534 = vmatpush1.bf16.msra.mxu0 %v2432
        %2535 = vmatprep.subr.bf16.mxu0 0
        %2536 = vmatpush1.bf16.msra.mxu0 0
        %2537 = vmatprep.subr.bf16.mxu0 0
        %2538 = vmatpush1.bf16.msra.mxu0 0
        %2539 = vmatprep.subr.bf16.mxu0 0
        %2540 = vmatpush1.bf16.msra.mxu0 0
        %2541 = vmatprep.subr.bf16.mxu0 0
        %2542 = vmatpush1.bf16.msra.mxu0 0
        %2543 = vmatprep.subr.bf16.mxu0 0
        %2544 = vmatpush1.bf16.msra.mxu0 0
        %2545 = vmatprep.subr.bf16.mxu0 0
        %2546 = vmatpush1.bf16.msra.mxu0 0
        %2547 = vmatprep.subr.bf16.mxu0 0
        %2548 = vmatpush1.bf16.msra.mxu0 0
        %2549 = vmatprep.subr.bf16.mxu0 0
        %2550 = vmatpush1.bf16.msra.mxu0 0
        %2551 = vmatprep.mubr.bf16.mxu0 0
        %2552 = vmatmul.mubr.bf16.gmra.mrb[0].mxu0 %v2250
        %v2553 = vpop.f32.mrb[0].mxu0
        %v2554 = vadd.f32 %v2297, %v2553
        %v2555 = vpop.f32.mrb[0].mxu0
        %v2556 = vadd.f32 %v2301, %v2555
        %v2557 = vpop.f32.mrb[0].mxu0
        %v2558 = vadd.f32 %v2297, %v2557
        %v2559 = vpop.f32.mrb[0].mxu0
        %v2560 = vadd.f32 %v2301, %v2559
        %2561 = vmatprep.mubr.bf16.mxu0 0
        %2562 = vmatmul.mubr.bf16.gmra.mrb[0].mxu0 %v2251
        %v2563 = vpop.f32.mrb[0].mxu0
        %v2564 = vadd.f32 %v2297, %v2563
        %v2565 = vpop.f32.mrb[0].mxu0
        %v2566 = vadd.f32 %v2301, %v2565
        %v2567 = vpop.f32.mrb[0].mxu0
        %v2568 = vadd.f32 %v2297, %v2567
        %v2569 = vpop.f32.mrb[0].mxu0
        %v2570 = vadd.f32 %v2301, %v2569
        %2571 = vdwg.mxu0
        %v2572 = vmul.f32 %v2501, 1.702
        %v2573 = vmul.f32 %v2503, 1.702
        %v2574 = vmul.f32 %v2554, 1.702
        %v2575 = vmul.f32 %v2556, 1.702
        %v2576 = vmul.f32 %v2505, 1.702
        %v2577 = vmul.f32 %v2507, 1.702
        %v2578 = vmul.f32 %v2558, 1.702
        %v2579 = vmul.f32 %v2560, 1.702
        %v2580 = vmul.f32 %v2511, 1.702
        %v2581 = vmul.f32 %v2513, 1.702
        %v2582 = vmul.f32 %v2564, 1.702
        %v2583 = vmul.f32 %v2566, 1.702
        %v2584 = vmul.f32 %v2515, 1.702
        %v2585 = vmul.f32 %v2517, 1.702
        %v2586 = vmul.f32 %v2568, 1.702
        %v2587 = vmul.f32 %v2570, 1.702
        %v2588 = vxor.u32 %v2572, 2147483648
        %v2589 = vxor.u32 %v2573, 2147483648
        %v2590 = vxor.u32 %v2574, 2147483648
        %v2591 = vxor.u32 %v2575, 2147483648
        %v2592 = vxor.u32 %v2576, 2147483648
        %v2593 = vxor.u32 %v2577, 2147483648
        %v2594 = vxor.u32 %v2578, 2147483648
        %v2595 = vxor.u32 %v2579, 2147483648
        %v2596 = vxor.u32 %v2580, 2147483648
        %v2597 = vxor.u32 %v2581, 2147483648
        %v2598 = vxor.u32 %v2582, 2147483648
        %v2599 = vxor.u32 %v2583, 2147483648
        %v2600 = vxor.u32 %v2584, 2147483648
        %v2601 = vxor.u32 %v2585, 2147483648
        %v2602 = vxor.u32 %v2586, 2147483648
        %v2603 = vxor.u32 %v2587, 2147483648
        %v2604 = vmul.f32 %v2588, 1.442695
        %v2605 = vpow.pop %v2604
        %v2606 = vmul.f32 %v2589, 1.442695
        %v2607 = vpow.pop %v2606
        %v2608 = vmul.f32 %v2590, 1.442695
        %v2609 = vpow.pop %v2608
        %v2610 = vmul.f32 %v2591, 1.442695
        %v2611 = vpow.pop %v2610
        %v2612 = vmul.f32 %v2592, 1.442695
        %v2613 = vpow.pop %v2612
        %v2614 = vmul.f32 %v2593, 1.442695
        %v2615 = vpow.pop %v2614
        %v2616 = vmul.f32 %v2594, 1.442695
        %v2617 = vpow.pop %v2616
        %v2618 = vmul.f32 %v2595, 1.442695
        %v2619 = vpow.pop %v2618
        %v2620 = vmul.f32 %v2596, 1.442695
        %v2621 = vpow.pop %v2620
        %v2622 = vmul.f32 %v2597, 1.442695
        %v2623 = vpow.pop %v2622
        %v2624 = vmul.f32 %v2598, 1.442695
        %v2625 = vpow.pop %v2624
        %v2626 = vmul.f32 %v2599, 1.442695
        %v2627 = vpow.pop %v2626
        %v2628 = vmul.f32 %v2600, 1.442695
        %v2629 = vpow.pop %v2628
        %v2630 = vmul.f32 %v2601, 1.442695
        %v2631 = vpow.pop %v2630
        %v2632 = vmul.f32 %v2602, 1.442695
        %v2633 = vpow.pop %v2632
        %v2634 = vmul.f32 %v2603, 1.442695
        %v2635 = vpow.pop %v2634
        %v2636 = vadd.f32 %v2605, 1.0
        %v2637 = vadd.f32 %v2607, 1.0
        %v2638 = vadd.f32 %v2609, 1.0
        %v2639 = vadd.f32 %v2611, 1.0
        %v2640 = vadd.f32 %v2613, 1.0
        %v2641 = vadd.f32 %v2615, 1.0
        %v2642 = vadd.f32 %v2617, 1.0
        %v2643 = vadd.f32 %v2619, 1.0
        %v2644 = vadd.f32 %v2621, 1.0
        %v2645 = vadd.f32 %v2623, 1.0
        %v2646 = vadd.f32 %v2625, 1.0
        %v2647 = vadd.f32 %v2627, 1.0
        %v2648 = vadd.f32 %v2629, 1.0
        %v2649 = vadd.f32 %v2631, 1.0
        %v2650 = vadd.f32 %v2633, 1.0
        %v2651 = vadd.f32 %v2635, 1.0
        %v2652 = vrcp.pop %v2636
        %v2653 = vmul.f32 1.0, %v2652
        %v2654 = vrcp.pop %v2637
        %v2655 = vmul.f32 1.0, %v2654
        %v2656 = vrcp.pop %v2638
        %v2657 = vmul.f32 1.0, %v2656
        %v2658 = vrcp.pop %v2639
        %v2659 = vmul.f32 1.0, %v2658
        %v2660 = vrcp.pop %v2640
        %v2661 = vmul.f32 1.0, %v2660
        %v2662 = vrcp.pop %v2641
        %v2663 = vmul.f32 1.0, %v2662
        %v2664 = vrcp.pop %v2642
        %v2665 = vmul.f32 1.0, %v2664
        %v2666 = vrcp.pop %v2643
        %v2667 = vmul.f32 1.0, %v2666
        %v2668 = vrcp.pop %v2644
        %v2669 = vmul.f32 1.0, %v2668
        %v2670 = vrcp.pop %v2645
        %v2671 = vmul.f32 1.0, %v2670
        %v2672 = vrcp.pop %v2646
        %v2673 = vmul.f32 1.0, %v2672
        %v2674 = vrcp.pop %v2647
        %v2675 = vmul.f32 1.0, %v2674
        %v2676 = vrcp.pop %v2648
        %v2677 = vmul.f32 1.0, %v2676
        %v2678 = vrcp.pop %v2649
        %v2679 = vmul.f32 1.0, %v2678
        %v2680 = vrcp.pop %v2650
        %v2681 = vmul.f32 1.0, %v2680
        %v2682 = vrcp.pop %v2651
        %v2683 = vmul.f32 1.0, %v2682
        %v2684 = vmul.f32 %v2501, %v2653
        %v2685 = vmul.f32 %v2503, %v2655
        %v2686 = vmul.f32 %v2554, %v2657
        %v2687 = vmul.f32 %v2556, %v2659
        %v2688 = vmul.f32 %v2505, %v2661
        %v2689 = vmul.f32 %v2507, %v2663
        %v2690 = vmul.f32 %v2558, %v2665
        %v2691 = vmul.f32 %v2560, %v2667
        %v2692 = vmul.f32 %v2511, %v2669
        %v2693 = vmul.f32 %v2513, %v2671
        %v2694 = vmul.f32 %v2564, %v2673
        %v2695 = vmul.f32 %v2566, %v2675
        %v2696 = vmul.f32 %v2515, %v2677
        %v2697 = vmul.f32 %v2517, %v2679
        %v2698 = vmul.f32 %v2568, %v2681
        %v2699 = vmul.f32 %v2570, %v2683
        %v2700 = vpack.c.bf16 %v2688, %v2684
        %v2701 = vpack.c.bf16 %v2689, %v2685
        %v2702 = vpack.c.bf16 %v2690, %v2686
        %v2703 = vpack.c.bf16 %v2691, %v2687
        %v2704 = vpack.c.bf16 %v2696, %v2692
        %v2705 = vpack.c.bf16 %v2697, %v2693
        %v2706 = vpack.c.bf16 %v2698, %v2694
        %v2707 = vpack.c.bf16 %v2699, %v2695
        %v2708 = vld [vmem:[#allocation13] sm:$0xf]
        %v2709 = vld [vmem:[#allocation13 + $0x4] sm:$0xf]
        %v2710 = vld [vmem:[#allocation13 + $0x8] sm:$0xf]
        %v2711 = vld [vmem:[#allocation13 + $0xc] sm:$0xf]
        %v2712 = vld [vmem:[#allocation13 + $0x10] sm:$0xf]
        %v2713 = vld [vmem:[#allocation13 + $0x14] sm:$0xf]
        %v2714 = vld [vmem:[#allocation13 + $0x18] sm:$0xf]
        %v2715 = vld [vmem:[#allocation13 + $0x1c] sm:$0xf]
        %v2716 = vld [vmem:[#allocation13 + $0x20] sm:$0xf]
        %v2717 = vld [vmem:[#allocation13 + $0x24] sm:$0xf]
        %v2718 = vld [vmem:[#allocation13 + $0x28] sm:$0xf]
        %v2719 = vld [vmem:[#allocation13 + $0x2c] sm:$0xf]
        %v2720 = vld [vmem:[#allocation13 + $0x30] sm:$0xf]
        %v2721 = vld [vmem:[#allocation13 + $0x34] sm:$0xf]
        %v2722 = vld [vmem:[#allocation13 + $0x38] sm:$0xf]
        %v2723 = vld [vmem:[#allocation13 + $0x3c] sm:$0xf]
        %v2724 = vld [vmem:[#allocation13 + $0x40] sm:$0xf]
        %v2725 = vld [vmem:[#allocation13 + $0x44] sm:$0xf]
        %v2726 = vld [vmem:[#allocation13 + $0x48] sm:$0xf]
        %v2727 = vld [vmem:[#allocation13 + $0x4c] sm:$0xf]
        %v2728 = vld [vmem:[#allocation13 + $0x50] sm:$0xf]
        %v2729 = vld [vmem:[#allocation13 + $0x54] sm:$0xf]
        %v2730 = vld [vmem:[#allocation13 + $0x58] sm:$0xf]
        %v2731 = vld [vmem:[#allocation13 + $0x5c] sm:$0xf]
        %v2732 = vld [vmem:[#allocation13 + $0x60] sm:$0xf]
        %v2733 = vld [vmem:[#allocation13 + $0x64] sm:$0xf]
        %v2734 = vld [vmem:[#allocation13 + $0x68] sm:$0xf]
        %v2735 = vld [vmem:[#allocation13 + $0x6c] sm:$0xf]
        %v2736 = vld [vmem:[#allocation13 + $0x70] sm:$0xf]
        %v2737 = vld [vmem:[#allocation13 + $0x74] sm:$0xf]
        %v2738 = vld [vmem:[#allocation13 + $0x78] sm:$0xf]
        %v2739 = vld [vmem:[#allocation13 + $0x7c] sm:$0xf]
        %v2740 = vld [vmem:[#allocation13 + $0x80] sm:$0xf]
        %v2741 = vld [vmem:[#allocation13 + $0x84] sm:$0xf]
        %v2742 = vld [vmem:[#allocation13 + $0x88] sm:$0xf]
        %v2743 = vld [vmem:[#allocation13 + $0x8c] sm:$0xf]
        %v2744 = vld [vmem:[#allocation13 + $0x90] sm:$0xf]
        %v2745 = vld [vmem:[#allocation13 + $0x94] sm:$0xf]
        %v2746 = vld [vmem:[#allocation13 + $0x98] sm:$0xf]
        %v2747 = vld [vmem:[#allocation13 + $0x9c] sm:$0xf]
        %v2748 = vld [vmem:[#allocation13 + $0xa0] sm:$0xf]
        %v2749 = vld [vmem:[#allocation13 + $0xa4] sm:$0xf]
        %v2750 = vld [vmem:[#allocation13 + $0xa8] sm:$0xf]
        %v2751 = vld [vmem:[#allocation13 + $0xac] sm:$0xf]
        %v2752 = vld [vmem:[#allocation13 + $0xb0] sm:$0xf]
        %v2753 = vld [vmem:[#allocation13 + $0xb4] sm:$0xf]
        %v2754 = vld [vmem:[#allocation13 + $0xb8] sm:$0xf]
        %v2755 = vld [vmem:[#allocation13 + $0xbc] sm:$0xf]
        %v2756 = vld [vmem:[#allocation13 + $0xc0] sm:$0xf]
        %v2757 = vld [vmem:[#allocation13 + $0xc4] sm:$0xf]
        %v2758 = vld [vmem:[#allocation13 + $0xc8] sm:$0xf]
        %v2759 = vld [vmem:[#allocation13 + $0xcc] sm:$0xf]
        %v2760 = vld [vmem:[#allocation13 + $0xd0] sm:$0xf]
        %v2761 = vld [vmem:[#allocation13 + $0xd4] sm:$0xf]
        %v2762 = vld [vmem:[#allocation13 + $0xd8] sm:$0xf]
        %v2763 = vld [vmem:[#allocation13 + $0xdc] sm:$0xf]
        %v2764 = vld [vmem:[#allocation13 + $0xe0] sm:$0xf]
        %v2765 = vld [vmem:[#allocation13 + $0xe4] sm:$0xf]
        %v2766 = vld [vmem:[#allocation13 + $0xe8] sm:$0xf]
        %v2767 = vld [vmem:[#allocation13 + $0xec] sm:$0xf]
        %v2768 = vld [vmem:[#allocation13 + $0xf0] sm:$0xf]
        %v2769 = vld [vmem:[#allocation13 + $0xf4] sm:$0xf]
        %v2770 = vld [vmem:[#allocation13 + $0xf8] sm:$0xf]
        %v2771 = vld [vmem:[#allocation13 + $0xfc] sm:$0xf]
        %v2772 = vld [vmem:[%s12] sm:$0x1]
        %v2774 = vlaneseq
        %v2775 = vshrl.u32 %v2774, 7
        %v2776 = vsub.s32 0, %v2775
        %v2777 = vrot.slane %v2772, %v2776
        %v2843 = vunpack.c.l.b16 %v2708
        %v2844 = vunpack.c.l.b16 %v2709
        %v2845 = vunpack.c.l.b16 %v2710
        %v2846 = vunpack.c.l.b16 %v2711
        %v2847 = vunpack.c.l.b16 %v2712
        %v2848 = vunpack.c.l.b16 %v2713
        %v2849 = vunpack.c.l.b16 %v2714
        %v2850 = vunpack.c.l.b16 %v2715
        %v2851 = vunpack.c.l.b16 %v2716
        %v2852 = vunpack.c.l.b16 %v2717
        %v2853 = vunpack.c.l.b16 %v2718
        %v2854 = vunpack.c.l.b16 %v2719
        %v2855 = vunpack.c.l.b16 %v2720
        %v2856 = vunpack.c.l.b16 %v2721
        %v2857 = vunpack.c.l.b16 %v2722
        %v2858 = vunpack.c.l.b16 %v2723
        %v2859 = vunpack.c.l.b16 %v2724
        %v2860 = vunpack.c.l.b16 %v2725
        %v2861 = vunpack.c.l.b16 %v2726
        %v2862 = vunpack.c.l.b16 %v2727
        %v2863 = vunpack.c.l.b16 %v2728
        %v2864 = vunpack.c.l.b16 %v2729
        %v2865 = vunpack.c.l.b16 %v2730
        %v2866 = vunpack.c.l.b16 %v2731
        %v2867 = vunpack.c.l.b16 %v2732
        %v2868 = vunpack.c.l.b16 %v2733
        %v2869 = vunpack.c.l.b16 %v2734
        %v2870 = vunpack.c.l.b16 %v2735
        %v2871 = vunpack.c.l.b16 %v2736
        %v2872 = vunpack.c.l.b16 %v2737
        %v2873 = vunpack.c.l.b16 %v2738
        %v2874 = vunpack.c.l.b16 %v2739
        %v2875 = vunpack.c.l.b16 %v2740
        %v2876 = vunpack.c.l.b16 %v2741
        %v2877 = vunpack.c.l.b16 %v2742
        %v2878 = vunpack.c.l.b16 %v2743
        %v2879 = vunpack.c.l.b16 %v2744
        %v2880 = vunpack.c.l.b16 %v2745
        %v2881 = vunpack.c.l.b16 %v2746
        %v2882 = vunpack.c.l.b16 %v2747
        %v2883 = vunpack.c.l.b16 %v2748
        %v2884 = vunpack.c.l.b16 %v2749
        %v2885 = vunpack.c.l.b16 %v2750
        %v2886 = vunpack.c.l.b16 %v2751
        %v2887 = vunpack.c.l.b16 %v2752
        %v2888 = vunpack.c.l.b16 %v2753
        %v2889 = vunpack.c.l.b16 %v2754
        %v2890 = vunpack.c.l.b16 %v2755
        %v2891 = vunpack.c.l.b16 %v2756
        %v2892 = vunpack.c.l.b16 %v2757
        %v2893 = vunpack.c.l.b16 %v2758
        %v2894 = vunpack.c.l.b16 %v2759
        %v2895 = vunpack.c.l.b16 %v2760
        %v2896 = vunpack.c.l.b16 %v2761
        %v2897 = vunpack.c.l.b16 %v2762
        %v2898 = vunpack.c.l.b16 %v2763
        %v2899 = vunpack.c.l.b16 %v2764
        %v2900 = vunpack.c.l.b16 %v2765
        %v2901 = vunpack.c.l.b16 %v2766
        %v2902 = vunpack.c.l.b16 %v2767
        %v2903 = vunpack.c.l.b16 %v2768
        %v2904 = vunpack.c.l.b16 %v2769
        %v2905 = vunpack.c.l.b16 %v2770
        %v2906 = vunpack.c.l.b16 %v2771
        %v2907 = vpack.c.b16 %v2844, %v2843
        %v2908 = vpack.c.b16 %v2846, %v2845
        %v2909 = vpack.c.b16 %v2848, %v2847
        %v2910 = vpack.c.b16 %v2850, %v2849
        %v2911 = vpack.c.b16 %v2852, %v2851
        %v2912 = vpack.c.b16 %v2854, %v2853
        %v2913 = vpack.c.b16 %v2856, %v2855
        %v2914 = vpack.c.b16 %v2858, %v2857
        %v2915 = vpack.c.b16 %v2860, %v2859
        %v2916 = vpack.c.b16 %v2862, %v2861
        %v2917 = vpack.c.b16 %v2864, %v2863
        %v2918 = vpack.c.b16 %v2866, %v2865
        %v2919 = vpack.c.b16 %v2868, %v2867
        %v2920 = vpack.c.b16 %v2870, %v2869
        %v2921 = vpack.c.b16 %v2872, %v2871
        %v2922 = vpack.c.b16 %v2874, %v2873
        %v2923 = vpack.c.b16 %v2876, %v2875
        %v2924 = vpack.c.b16 %v2878, %v2877
        %v2925 = vpack.c.b16 %v2880, %v2879
        %v2926 = vpack.c.b16 %v2882, %v2881
        %v2927 = vpack.c.b16 %v2884, %v2883
        %v2928 = vpack.c.b16 %v2886, %v2885
        %v2929 = vpack.c.b16 %v2888, %v2887
        %v2930 = vpack.c.b16 %v2890, %v2889
        %v2931 = vpack.c.b16 %v2892, %v2891
        %v2932 = vpack.c.b16 %v2894, %v2893
        %v2933 = vpack.c.b16 %v2896, %v2895
        %v2934 = vpack.c.b16 %v2898, %v2897
        %v2935 = vpack.c.b16 %v2900, %v2899
        %v2936 = vpack.c.b16 %v2902, %v2901
        %v2937 = vpack.c.b16 %v2904, %v2903
        %v2938 = vpack.c.b16 %v2906, %v2905
        %2971 = vmatprep.subr.bf16.mxu0 0
        %2972 = vmatpush1.bf16.msra.mxu0 %v2907
        %2973 = vmatprep.subr.bf16.mxu0 0
        %2974 = vmatpush1.bf16.msra.mxu0 %v2908
        %2975 = vmatprep.subr.bf16.mxu0 0
        %2976 = vmatpush1.bf16.msra.mxu0 %v2909
        %2977 = vmatprep.subr.bf16.mxu0 0
        %2978 = vmatpush1.bf16.msra.mxu0 %v2910
        %2979 = vmatprep.subr.bf16.mxu0 0
        %2980 = vmatpush1.bf16.msra.mxu0 %v2911
        %2981 = vmatprep.subr.bf16.mxu0 0
        %2982 = vmatpush1.bf16.msra.mxu0 %v2912
        %2983 = vmatprep.subr.bf16.mxu0 0
        %2984 = vmatpush1.bf16.msra.mxu0 %v2913
        %2985 = vmatprep.subr.bf16.mxu0 0
        %2986 = vmatpush1.bf16.msra.mxu0 %v2914
        %2987 = vmatprep.subr.bf16.mxu0 0
        %2988 = vmatpush1.bf16.msra.mxu0 %v2915
        %2989 = vmatprep.subr.bf16.mxu0 0
        %2990 = vmatpush1.bf16.msra.mxu0 %v2916
        %2991 = vmatprep.subr.bf16.mxu0 0
        %2992 = vmatpush1.bf16.msra.mxu0 %v2917
        %2993 = vmatprep.subr.bf16.mxu0 0
        %2994 = vmatpush1.bf16.msra.mxu0 %v2918
        %2995 = vmatprep.subr.bf16.mxu0 0
        %2996 = vmatpush1.bf16.msra.mxu0 %v2919
        %2997 = vmatprep.subr.bf16.mxu0 0
        %2998 = vmatpush1.bf16.msra.mxu0 %v2920
        %2999 = vmatprep.subr.bf16.mxu0 0
        %3000 = vmatpush1.bf16.msra.mxu0 %v2921
        %3001 = vmatprep.subr.bf16.mxu0 0
        %3002 = vmatpush1.bf16.msra.mxu0 %v2922
        %3003 = vmatprep.mubr.bf16.mxu0 %v2701
        %3004 = vmatmul.mubr.bf16.gmra.mrb[0].mxu0 %v2700
        %v3005 = vpop.f32.mrb[0].mxu0
        %v3006 = vadd.f32 %v2777, %v3005
        %v3007 = vpop.f32.mrb[0].mxu0
        %v3008 = vpop.f32.mrb[0].mxu0
        %v3009 = vadd.f32 %v2777, %v3008
        %v3010 = vpop.f32.mrb[0].mxu0
        %3011 = vmatprep.mubr.bf16.mxu0 %v2705
        %3012 = vmatmul.mubr.bf16.gmra.mrb[0].mxu0 %v2704
        %v3013 = vpop.f32.mrb[0].mxu0
        %v3014 = vadd.f32 %v2777, %v3013
        %v3015 = vpop.f32.mrb[0].mxu0
        %v3016 = vpop.f32.mrb[0].mxu0
        %v3017 = vadd.f32 %v2777, %v3016
        %v3018 = vpop.f32.mrb[0].mxu0
        %3019 = vdwg.mxu0
        %3020 = vmatprep.subr.bf16.mxu0 0
        %3021 = vmatpush1.bf16.msra.mxu0 %v2923
        %3022 = vmatprep.subr.bf16.mxu0 0
        %3023 = vmatpush1.bf16.msra.mxu0 %v2924
        %3024 = vmatprep.subr.bf16.mxu0 0
        %3025 = vmatpush1.bf16.msra.mxu0 %v2925
        %3026 = vmatprep.subr.bf16.mxu0 0
        %3027 = vmatpush1.bf16.msra.mxu0 %v2926
        %3028 = vmatprep.subr.bf16.mxu0 0
        %3029 = vmatpush1.bf16.msra.mxu0 %v2927
        %3030 = vmatprep.subr.bf16.mxu0 0
        %3031 = vmatpush1.bf16.msra.mxu0 %v2928
        %3032 = vmatprep.subr.bf16.mxu0 0
        %3033 = vmatpush1.bf16.msra.mxu0 %v2929
        %3034 = vmatprep.subr.bf16.mxu0 0
        %3035 = vmatpush1.bf16.msra.mxu0 %v2930
        %3036 = vmatprep.subr.bf16.mxu0 0
        %3037 = vmatpush1.bf16.msra.mxu0 %v2931
        %3038 = vmatprep.subr.bf16.mxu0 0
        %3039 = vmatpush1.bf16.msra.mxu0 %v2932
        %3040 = vmatprep.subr.bf16.mxu0 0
        %3041 = vmatpush1.bf16.msra.mxu0 %v2933
        %3042 = vmatprep.subr.bf16.mxu0 0
        %3043 = vmatpush1.bf16.msra.mxu0 %v2934
        %3044 = vmatprep.subr.bf16.mxu0 0
        %3045 = vmatpush1.bf16.msra.mxu0 %v2935
        %3046 = vmatprep.subr.bf16.mxu0 0
        %3047 = vmatpush1.bf16.msra.mxu0 %v2936
        %3048 = vmatprep.subr.bf16.mxu0 0
        %3049 = vmatpush1.bf16.msra.mxu0 %v2937
        %3050 = vmatprep.subr.bf16.mxu0 0
        %3051 = vmatpush1.bf16.msra.mxu0 %v2938
        %3052 = vmatprep.mubr.bf16.mxu0 %v2703
        %3053 = vmatmul.mubr.bf16.gmra.mrb[0].mxu0 %v2702
        %v3054 = vpop.f32.mrb[0].mxu0
        %v3055 = vadd.f32 %v3006, %v3054
        %v3056 = vpop.f32.mrb[0].mxu0
        %v3057 = vpop.f32.mrb[0].mxu0
        %v3058 = vadd.f32 %v3009, %v3057
        %v3059 = vpop.f32.mrb[0].mxu0
        %3060 = vmatprep.mubr.bf16.mxu0 %v2707
        %3061 = vmatmul.mubr.bf16.gmra.mrb[0].mxu0 %v2706
        %v3062 = vpop.f32.mrb[0].mxu0
        %v3063 = vadd.f32 %v3014, %v3062
        %v3064 = vpop.f32.mrb[0].mxu0
        %v3065 = vpop.f32.mrb[0].mxu0
        %v3066 = vadd.f32 %v3017, %v3065
        %v3067 = vpop.f32.mrb[0].mxu0
        %3068 = vdwg.mxu0
        %v3069 = vadd.f32 %v2180, %v3055
        %v3070 = vadd.f32 %v2181, %v3058
        %v3071 = vadd.f32 %v2182, %v3063
        %v3072 = vadd.f32 %v2183, %v3066
        %3073 = vst [vmem:[%s542] sm:$0xff] %v3069
        %3074 = vst [vmem:[%s542 + $0x8] sm:$0xff] %v3070
        %3075 = vst [vmem:[%s542 + $0x10] sm:$0xff] %v3071
        %3076 = vst [vmem:[%s542 + $0x18] sm:$0xff] %v3072
        %s3077 = sand.u32 %s319, 1
        %s3078 = scalar_lea.sflag [#allocation4], %s3077
        %s3079 = sand.u32 %s319, 1
        %s3080 = smul.addr %s3079, 32
        %s3081 = scalar_lea.vmem [#allocation14], %s3080
        // Predicated region
        $region101: #{tpu_custom_call.1} parent=71 // pred_check
          %p3082 = pneg %p329
        $region102: #{tpu_custom_call.1} parent=71 // pred_check_branch
          %3084 = sbr.rel (%p3082) target = $region104
        $region103: #{tpu_custom_call.1} parent=71 // pred_region
          %s3085 = smul.u32 2, %s33
          %s3087 = ssub.s32 512, 512
          %3088 = vsyncadd %s3078, %s3087
          %s3089 = smul.addr %s3085, 2
          %s3090 = smul.addr %s3089, 128
          %s3091 = scalar_lea.hbm %s13, %s3090
          %s3092 = sshll.u32 %s3081, 4
          %s3093 = int_to_ptr.vmem [resolvable:$true] %s3092
          %3098 = dma.vmem_to_hbm [thread:$0]  %s3093, 512, %s3091, %s3078, 128, 128, 8
        $region104: #{tpu_custom_call.1} parent=71 // pred_fallthru
          _
      $region72: #{tpu_custom_call.1} parent=5 // pred_fallthru
        _
      %p3099 = scmp.le.s32.totalorder 2, %s28
      // Predicated region
      $region105: #{tpu_custom_call.1} parent=5 // pred_check
        %p3100 = pneg %p3099
      $region106: #{tpu_custom_call.1} parent=5 // pred_check_branch
        %3102 = sbr.rel (%p3100) target = $region108
      $region107: #{tpu_custom_call.1} parent=5 // pred_region
        %s3103 = ssub.s32 %s28, 2
        // Predicated region
        $region109: #{tpu_custom_call.1} parent=107 // pred_check
          %p3104 = pneg %p335
        $region110: #{tpu_custom_call.1} parent=107 // pred_check_branch
          %3106 = sbr.rel (%p3104) target = $region112
        $region111: #{tpu_custom_call.1} parent=107 // pred_region
          %s3107 = sand.u32 %s320, 1
          %s3108 = scalar_lea.sflag [#allocation4], %s3107
          %s3109 = sand.u32 %s320, 1
          %s3110 = smul.addr %s3109, 32
          %s3111 = scalar_lea.vmem [#allocation14], %s3110
          %3112 = dma.done %s3108, 512
        $region112: #{tpu_custom_call.1} parent=107 // pred_fallthru
          _
      $region108: #{tpu_custom_call.1} parent=5 // pred_fallthru
        _
    $region6: #{tpu_custom_call.1} parent=1 // loop_footer
      %s32 = sadd.s32 1, %s28
    $region7: #{tpu_custom_call.1} parent=1 // loop_footer_branch
      %27 = sbr.rel target = $region3
    $region8: #{tpu_custom_call.1} parent=1 // loop_exit
      _
    %3113 = vsyncpa [#allocation3], 1
    %s3114 = scalar_lea.sflag [#allocation3], 1
    %3115 = vsyncpa %s3114, 1
    %3116 = vsyncpa [#allocation6], 1
    %3117 = vsyncpa [#allocation9], 1
    %3118 = vsyncpa [#allocation12], 1
    %3119 = vsyncpa [#allocation4], 1
    %s3120 = scalar_lea.sflag [#allocation4], 1
    %3121 = vsyncpa %s3120, 1

</llo_original>
